<compile_context>
chip_gen: v7x
topology: tpu7x:2x2x1
jax: 0.10.0
libtpu: 0.0.40
codegen_flags: <defaults>
</compile_context>

<pallas_src>
import math

import jax
import jax.numpy as jnp
from jax.experimental import pallas as pl
from jax.experimental.pallas import tpu as pltpu


# ---------------------------------------------------------------------------
# Fused Pallas kernel: DMA gather + GCN + 5 linears + weighted fusion concat
# ---------------------------------------------------------------------------

def _ibmea_fused_kernel(
    idx_ref,                       # (N,) int32, SMEM     entity indices
    adj_ref,                       # (N, N) f32, VMEM     row-normalized adjacency
    ent_hbm,                       # (ENT_NUM, D_in) f32  embedding table (HBM / pl.ANY)
    gc1_w_ref, gc1_b_ref, gc2_w_ref,          # GCN params (f32, VMEM)
    bias_ref,                      # (1, 192) f32  packed [img_b|att_b|rel_b|gc2_b|name_b|char_b]
    wlane_ref,                     # (1, 192) f32  fusion weights expanded over lanes
    img_f_ref, img_w_ref,          # bf16 features / weights
    rel_f_ref, rel_w_ref,
    att_f_ref, att_w_ref,
    name_f_ref, name_w_ref,
    char_f_ref, char_w_ref,
    slab_o,                        # (N, 192) f32  unscaled [img|att|rel|gph|name|char]
    joint_o,                       # (N, 192) f32  fusion-weighted concat
    ent_buf,                       # VMEM scratch (N, D_in) f32
    gather_sem,                    # DMA semaphores (N,)
):
    f32 = jnp.float32
    n = adj_ref.shape[0]

    # --- entity-embedding gather: N row DMAs HBM -> VMEM (start all, wait all)
    # (indices are assumed in-range, matching PyTorch index-select contract)
    copies = []
    for i in range(n):
        row = idx_ref[i]
        cp = pltpu.make_async_copy(
            ent_hbm.at[pl.ds(row, 1), :],
            ent_buf.at[pl.ds(i, 1), :],
            gather_sem.at[i])
        cp.start()
        copies.append(cp)
    for cp in copies:
        cp.wait()
    ent_x = ent_buf[...]

    # --- SimpleGCN: relu(adj @ (x W1) + b1) ; adj @ (h W2)
    #     (gc2_b is folded into the packed slab bias; dropout = identity)
    adj = adj_ref[...]
    s1 = jnp.dot(ent_x, gc1_w_ref[...], preferred_element_type=f32)
    h = jnp.maximum(
        jnp.dot(adj, s1, preferred_element_type=f32) + gc1_b_ref[...], 0.0)
    s2 = jnp.dot(h, gc2_w_ref[...], preferred_element_type=f32)
    gph = jnp.dot(adj, s2, preferred_element_type=f32)

    # --- modality linears (bf16 inputs, f32 accumulate; biases in slab bias)
    img = jnp.dot(img_f_ref[...], img_w_ref[...], preferred_element_type=f32)
    rel = jnp.dot(rel_f_ref[...], rel_w_ref[...], preferred_element_type=f32)
    att = jnp.dot(att_f_ref[...], att_w_ref[...], preferred_element_type=f32)
    name = jnp.dot(name_f_ref[...], name_w_ref[...], preferred_element_type=f32)
    char = jnp.dot(char_f_ref[...], char_w_ref[...], preferred_element_type=f32)

    # --- assemble one lane-dense slab; two wide stores total
    slab = jnp.concatenate([img, att, rel, gph, name, char], axis=-1) + bias_ref[...]
    slab_o[...] = slab
    joint_o[...] = slab * wlane_ref[...]


# ---------------------------------------------------------------------------
# pallas_call wrapper
# ---------------------------------------------------------------------------

def ib_multimodal_forward(params, input_idx, adj, img_features, rel_features,
                          att_features, name_features, char_features):
    f32, bf16 = jnp.float32, jnp.bfloat16
    n = int(input_idx.shape[0])
    in_dim = params["entity_emb"].shape[1]
    hid = params["gc1_w"].shape[1]
    out_d = params["gc2_w"].shape[1]
    img_d = params["img_fc"][0].shape[1]
    attr_d = params["rel_fc"][0].shape[1]
    char_d = params["char_fc"][0].shape[1]
    slab_d = img_d + attr_d + attr_d + out_d + char_d + char_d

    # Packed (1, slab_d) bias in slab order [img, att, rel, gph, name, char].
    bias_slab = jnp.concatenate(
        [params["img_fc"][1], params["att_fc"][1], params["rel_fc"][1],
         params["gc2_b"], params["name_fc"][1], params["char_fc"][1]],
        axis=0).reshape(1, slab_d).astype(f32)

    # Fusion weights expanded to one value per output lane (slab order).
    w = params["fusion_w"]
    w_lane = jnp.concatenate(
        [jnp.full((img_d,), w[0], f32), jnp.full((attr_d,), w[1], f32),
         jnp.full((attr_d,), w[2], f32), jnp.full((out_d,), w[3], f32),
         jnp.full((char_d,), w[4], f32), jnp.full((char_d,), w[5], f32)],
        axis=0).reshape(1, slab_d)

    operands = [
        input_idx.astype(jnp.int32),                                  # SMEM
        adj.astype(f32),                                              # VMEM
        params["entity_emb"].astype(f32),                             # HBM (pl.ANY)
        params["gc1_w"].astype(f32),
        params["gc1_b"].reshape(1, hid).astype(f32),
        params["gc2_w"].astype(f32),
        bias_slab,
        w_lane,
        img_features.astype(bf16), params["img_fc"][0].astype(bf16),
        rel_features.astype(bf16), params["rel_fc"][0].astype(bf16),
        att_features.astype(bf16), params["att_fc"][0].astype(bf16),
        name_features.astype(bf16), params["name_fc"][0].astype(bf16),
        char_features.astype(bf16), params["char_fc"][0].astype(bf16),
    ]

    vmem = pl.BlockSpec(memory_space=pltpu.MemorySpace.VMEM)
    smem = pl.BlockSpec(memory_space=pltpu.MemorySpace.SMEM)
    hbm = pl.BlockSpec(memory_space=pl.ANY)
    in_specs = [smem, vmem, hbm] + [vmem] * (len(operands) - 3)

    out_shape = (jax.ShapeDtypeStruct((n, slab_d), f32),   # unscaled slab
                 jax.ShapeDtypeStruct((n, slab_d), f32))   # weighted joint
    out_specs = (pl.BlockSpec(memory_space=pltpu.MemorySpace.VMEM),
                 pl.BlockSpec(memory_space=pltpu.MemorySpace.VMEM))

    slab, joint = pl.pallas_call(
        _ibmea_fused_kernel,
        out_shape=out_shape,
        in_specs=in_specs,
        out_specs=out_specs,
        scratch_shapes=[pltpu.VMEM((n, in_dim), f32),
                        pltpu.SemaphoreType.DMA((n,))],
    )(*operands)

    # Per-modality views are cheap slices of the lane-dense slab.
    o = 0
    img = slab[:, o:o + img_d]; o += img_d
    att = slab[:, o:o + attr_d]; o += attr_d
    rel = slab[:, o:o + attr_d]; o += attr_d
    gph = slab[:, o:o + out_d]; o += out_d
    name = slab[:, o:o + char_d]; o += char_d
    char = slab[:, o:o + char_d]
    return gph, img, rel, att, name, char, joint


# ---------------------------------------------------------------------------
# Parameter initialization (deterministic, shapes from IBMultiModal.__init__)
# ---------------------------------------------------------------------------

ENT_NUM = 32
N = 16                   # number of entities fed to forward (input_idx length)
INPUT_DIM = 32           # n_units[0]
HID_DIM = 32             # n_units[1]
OUT_DIM = 32             # n_units[-1]
ATTR_DIM = 32
IMG_DIM = 32
CHAR_DIM = 32
IMG_FEATURE_DIM = 64
CHAR_FEATURE_DIM = 100
REL_FEATURE_DIM = 1000   # fixed by nn.Linear(1000, attr_dim)
ATT_FEATURE_DIM = 1000   # fixed by nn.Linear(1000, attr_dim)
NAME_FEATURE_DIM = 300   # fixed by nn.Linear(300, char_dim)


def _init_linear(key, d_in, d_out):
    kw, kb = jax.random.split(key)
    bound = 1.0 / math.sqrt(d_in)
    w = jax.random.uniform(kw, (d_in, d_out), jnp.float32, -bound, bound)
    b = jax.random.uniform(kb, (d_out,), jnp.float32, -bound, bound)
    return w, b


def init_params(key):
    ks = jax.random.split(key, 10)
    params = {}
    params["entity_emb"] = (
        jax.random.normal(ks[0], (ENT_NUM, INPUT_DIM), jnp.float32)
        * (1.0 / math.sqrt(ENT_NUM)))
    params["gc1_w"], params["gc1_b"] = _init_linear(ks[1], INPUT_DIM, HID_DIM)
    params["gc2_w"], params["gc2_b"] = _init_linear(ks[2], HID_DIM, OUT_DIM)
    params["img_fc"] = _init_linear(ks[3], IMG_FEATURE_DIM, IMG_DIM)
    params["rel_fc"] = _init_linear(ks[4], REL_FEATURE_DIM, ATTR_DIM)
    params["att_fc"] = _init_linear(ks[5], ATT_FEATURE_DIM, ATTR_DIM)
    params["name_fc"] = _init_linear(ks[6], NAME_FEATURE_DIM, CHAR_DIM)
    params["char_fc"] = _init_linear(ks[7], CHAR_FEATURE_DIM, CHAR_DIM)
    params["fusion_w"] = jnp.ones((6,), jnp.float32)   # MultiModalFusion init
    return params


# ---------------------------------------------------------------------------
# Pure-JAX reference (bf16 on the modality linears to match the kernel path)
# ---------------------------------------------------------------------------

def _ref_forward(params, input_idx, adj, img_f, rel_f, att_f, name_f, char_f):
    f32, bf16 = jnp.float32, jnp.bfloat16
    hp = jax.lax.Precision.HIGHEST
    x = jnp.take(params["entity_emb"], input_idx, axis=0)
    h = jnp.maximum(
        jnp.dot(adj, jnp.dot(x, params["gc1_w"], precision=hp), precision=hp)
        + params["gc1_b"], 0.0)
    gph = jnp.dot(adj, jnp.dot(h, params["gc2_w"], precision=hp),
                  precision=hp) + params["gc2_b"]

    def lin(feat, wb):
        w_, b_ = wb
        return jnp.dot(feat.astype(bf16), w_.astype(bf16),
                       preferred_element_type=f32) + b_

    img = lin(img_f, params["img_fc"])
    rel = lin(rel_f, params["rel_fc"])
    att = lin(att_f, params["att_fc"])
    name = lin(name_f, params["name_fc"])
    char = lin(char_f, params["char_fc"])
    w = params["fusion_w"]
    joint = jnp.concatenate(
        [w[0] * img, w[1] * att, w[2] * rel, w[3] * gph, w[4] * name, w[5] * char],
        axis=-1)
    return gph, img, rel, att, name, char, joint


# ---------------------------------------------------------------------------
# Main
# ---------------------------------------------------------------------------

if __name__ == "__main__":
    key = jax.random.PRNGKey(0)
    kp, ki, ka, k1, k2, k3, k4, k5 = jax.random.split(key, 8)

    params = init_params(kp)

    input_idx = jax.random.randint(ki, (N,), 0, ENT_NUM)
    # row-normalized dense adjacency with self-loops
    adj_raw = (jax.random.uniform(ka, (N, N)) > 0.7).astype(jnp.float32)
    adj_raw = adj_raw + jnp.eye(N, dtype=jnp.float32)
    adj = adj_raw / jnp.sum(adj_raw, axis=-1, keepdims=True)

    img_features = jax.random.normal(k1, (N, IMG_FEATURE_DIM), jnp.float32)
    rel_features = jax.random.normal(k2, (N, REL_FEATURE_DIM), jnp.float32)
    att_features = jax.random.normal(k3, (N, ATT_FEATURE_DIM), jnp.float32)
    name_features = jax.random.normal(k4, (N, NAME_FEATURE_DIM), jnp.float32)
    char_features = jax.random.normal(k5, (N, CHAR_FEATURE_DIM), jnp.float32)

    outs = ib_multimodal_forward(params, input_idx, adj, img_features,
                                 rel_features, att_features, name_features,
                                 char_features)
    outs = jax.block_until_ready(outs)

    refs = _ref_forward(params, input_idx, adj, img_features, rel_features,
                        att_features, name_features, char_features)
    names = ["gph", "img", "rel", "att", "name", "char", "joint"]
    for nm, o, r in zip(names, outs, refs):
        assert o.shape == r.shape, (nm, o.shape, r.shape)
        assert jnp.allclose(o, r, atol=5e-3, rtol=5e-3), nm

    print("KERNEL_OK")
</pallas_src>

<mosaic_0001>
module attributes {stable_mosaic.version = 11 : i64} {
  func.func @_ibmea_fused_kernel(%arg0: memref<16xi32, #tpu.memory_space<smem>>, %arg1: memref<16x16xf32, #tpu.memory_space<vmem>>, %arg2: memref<32x32xf32, #tpu.memory_space<any>>, %arg3: memref<32x32xf32, #tpu.memory_space<vmem>>, %arg4: memref<1x32xf32, #tpu.memory_space<vmem>>, %arg5: memref<32x32xf32, #tpu.memory_space<vmem>>, %arg6: memref<1x192xf32, #tpu.memory_space<vmem>>, %arg7: memref<1x192xf32, #tpu.memory_space<vmem>>, %arg8: memref<16x64xbf16, #tpu.memory_space<vmem>>, %arg9: memref<64x32xbf16, #tpu.memory_space<vmem>>, %arg10: memref<16x1000xbf16, #tpu.memory_space<vmem>>, %arg11: memref<1000x32xbf16, #tpu.memory_space<vmem>>, %arg12: memref<16x1000xbf16, #tpu.memory_space<vmem>>, %arg13: memref<1000x32xbf16, #tpu.memory_space<vmem>>, %arg14: memref<16x300xbf16, #tpu.memory_space<vmem>>, %arg15: memref<300x32xbf16, #tpu.memory_space<vmem>>, %arg16: memref<16x100xbf16, #tpu.memory_space<vmem>>, %arg17: memref<100x32xbf16, #tpu.memory_space<vmem>>, %arg18: memref<16x192xf32, #tpu.memory_space<vmem>>, %arg19: memref<16x192xf32, #tpu.memory_space<vmem>>, %arg20: memref<16x32xf32, #tpu.memory_space<vmem>>, %arg21: memref<16x!tpu.dma_semaphore, #tpu.memory_space<semaphore_mem>>) attributes {dimension_semantics = [], scalar_prefetch = 0 : i64, scratch_operands = 2 : i64, tpu.core_type = #tpu.core_type<tc>} {
    %c0 = arith.constant 0 : index
    %0 = memref.load %arg0[%c0] : memref<16xi32, #tpu.memory_space<smem>>
    %c0_i32 = arith.constant 0 : i32
    %c0_i32_0 = arith.constant 0 : i32
    %1 = tpu.memref_slice %arg2[%0, %c0_i32_0] : memref<32x32xf32, #tpu.memory_space<any>> -> memref<1x32xf32, #tpu.memory_space<any>>
    %c0_i32_1 = arith.constant 0 : i32
    %c0_i32_2 = arith.constant 0 : i32
    %2 = tpu.memref_slice %arg20[%c0_i32_1, %c0_i32_2] : memref<16x32xf32, #tpu.memory_space<vmem>> -> memref<1x32xf32, #tpu.memory_space<vmem>>
    %3 = tpu.memref_slice %arg21[%c0_i32] : memref<16x!tpu.dma_semaphore, #tpu.memory_space<semaphore_mem>> -> memref<1x!tpu.dma_semaphore, #tpu.memory_space<semaphore_mem>>
    %4 = tpu.memref_squeeze %3 : memref<1x!tpu.dma_semaphore, #tpu.memory_space<semaphore_mem>> -> memref<!tpu.dma_semaphore, #tpu.memory_space<semaphore_mem>>
    tpu.enqueue_dma source(%1 : memref<1x32xf32, #tpu.memory_space<any>>) target(%2 : memref<1x32xf32, #tpu.memory_space<vmem>>) target_semaphore(%4 : memref<!tpu.dma_semaphore, #tpu.memory_space<semaphore_mem>>)
    %c1 = arith.constant 1 : index
    %5 = memref.load %arg0[%c1] : memref<16xi32, #tpu.memory_space<smem>>
    %c1_i32 = arith.constant 1 : i32
    %c0_i32_3 = arith.constant 0 : i32
    %6 = tpu.memref_slice %arg2[%5, %c0_i32_3] : memref<32x32xf32, #tpu.memory_space<any>> -> memref<1x32xf32, #tpu.memory_space<any>>
    %c1_i32_4 = arith.constant 1 : i32
    %c0_i32_5 = arith.constant 0 : i32
    %7 = tpu.memref_slice %arg20[%c1_i32_4, %c0_i32_5] : memref<16x32xf32, #tpu.memory_space<vmem>> -> memref<1x32xf32, #tpu.memory_space<vmem>>
    %8 = tpu.memref_slice %arg21[%c1_i32] : memref<16x!tpu.dma_semaphore, #tpu.memory_space<semaphore_mem>> -> memref<1x!tpu.dma_semaphore, #tpu.memory_space<semaphore_mem>>
    %9 = tpu.memref_squeeze %8 : memref<1x!tpu.dma_semaphore, #tpu.memory_space<semaphore_mem>> -> memref<!tpu.dma_semaphore, #tpu.memory_space<semaphore_mem>>
    tpu.enqueue_dma source(%6 : memref<1x32xf32, #tpu.memory_space<any>>) target(%7 : memref<1x32xf32, #tpu.memory_space<vmem>>) target_semaphore(%9 : memref<!tpu.dma_semaphore, #tpu.memory_space<semaphore_mem>>)
    %c2 = arith.constant 2 : index
    %10 = memref.load %arg0[%c2] : memref<16xi32, #tpu.memory_space<smem>>
    %c2_i32 = arith.constant 2 : i32
    %c0_i32_6 = arith.constant 0 : i32
    %11 = tpu.memref_slice %arg2[%10, %c0_i32_6] : memref<32x32xf32, #tpu.memory_space<any>> -> memref<1x32xf32, #tpu.memory_space<any>>
    %c2_i32_7 = arith.constant 2 : i32
    %c0_i32_8 = arith.constant 0 : i32
    %12 = tpu.memref_slice %arg20[%c2_i32_7, %c0_i32_8] : memref<16x32xf32, #tpu.memory_space<vmem>> -> memref<1x32xf32, #tpu.memory_space<vmem>>
    %13 = tpu.memref_slice %arg21[%c2_i32] : memref<16x!tpu.dma_semaphore, #tpu.memory_space<semaphore_mem>> -> memref<1x!tpu.dma_semaphore, #tpu.memory_space<semaphore_mem>>
    %14 = tpu.memref_squeeze %13 : memref<1x!tpu.dma_semaphore, #tpu.memory_space<semaphore_mem>> -> memref<!tpu.dma_semaphore, #tpu.memory_space<semaphore_mem>>
    tpu.enqueue_dma source(%11 : memref<1x32xf32, #tpu.memory_space<any>>) target(%12 : memref<1x32xf32, #tpu.memory_space<vmem>>) target_semaphore(%14 : memref<!tpu.dma_semaphore, #tpu.memory_space<semaphore_mem>>)
    %c3 = arith.constant 3 : index
    %15 = memref.load %arg0[%c3] : memref<16xi32, #tpu.memory_space<smem>>
    %c3_i32 = arith.constant 3 : i32
    %c0_i32_9 = arith.constant 0 : i32
    %16 = tpu.memref_slice %arg2[%15, %c0_i32_9] : memref<32x32xf32, #tpu.memory_space<any>> -> memref<1x32xf32, #tpu.memory_space<any>>
    %c3_i32_10 = arith.constant 3 : i32
    %c0_i32_11 = arith.constant 0 : i32
    %17 = tpu.memref_slice %arg20[%c3_i32_10, %c0_i32_11] : memref<16x32xf32, #tpu.memory_space<vmem>> -> memref<1x32xf32, #tpu.memory_space<vmem>>
    %18 = tpu.memref_slice %arg21[%c3_i32] : memref<16x!tpu.dma_semaphore, #tpu.memory_space<semaphore_mem>> -> memref<1x!tpu.dma_semaphore, #tpu.memory_space<semaphore_mem>>
    %19 = tpu.memref_squeeze %18 : memref<1x!tpu.dma_semaphore, #tpu.memory_space<semaphore_mem>> -> memref<!tpu.dma_semaphore, #tpu.memory_space<semaphore_mem>>
    tpu.enqueue_dma source(%16 : memref<1x32xf32, #tpu.memory_space<any>>) target(%17 : memref<1x32xf32, #tpu.memory_space<vmem>>) target_semaphore(%19 : memref<!tpu.dma_semaphore, #tpu.memory_space<semaphore_mem>>)
    %c4 = arith.constant 4 : index
    %20 = memref.load %arg0[%c4] : memref<16xi32, #tpu.memory_space<smem>>
    %c4_i32 = arith.constant 4 : i32
    %c0_i32_12 = arith.constant 0 : i32
    %21 = tpu.memref_slice %arg2[%20, %c0_i32_12] : memref<32x32xf32, #tpu.memory_space<any>> -> memref<1x32xf32, #tpu.memory_space<any>>
    %c4_i32_13 = arith.constant 4 : i32
    %c0_i32_14 = arith.constant 0 : i32
    %22 = tpu.memref_slice %arg20[%c4_i32_13, %c0_i32_14] : memref<16x32xf32, #tpu.memory_space<vmem>> -> memref<1x32xf32, #tpu.memory_space<vmem>>
    %23 = tpu.memref_slice %arg21[%c4_i32] : memref<16x!tpu.dma_semaphore, #tpu.memory_space<semaphore_mem>> -> memref<1x!tpu.dma_semaphore, #tpu.memory_space<semaphore_mem>>
    %24 = tpu.memref_squeeze %23 : memref<1x!tpu.dma_semaphore, #tpu.memory_space<semaphore_mem>> -> memref<!tpu.dma_semaphore, #tpu.memory_space<semaphore_mem>>
    tpu.enqueue_dma source(%21 : memref<1x32xf32, #tpu.memory_space<any>>) target(%22 : memref<1x32xf32, #tpu.memory_space<vmem>>) target_semaphore(%24 : memref<!tpu.dma_semaphore, #tpu.memory_space<semaphore_mem>>)
    %c5 = arith.constant 5 : index
    %25 = memref.load %arg0[%c5] : memref<16xi32, #tpu.memory_space<smem>>
    %c5_i32 = arith.constant 5 : i32
    %c0_i32_15 = arith.constant 0 : i32
    %26 = tpu.memref_slice %arg2[%25, %c0_i32_15] : memref<32x32xf32, #tpu.memory_space<any>> -> memref<1x32xf32, #tpu.memory_space<any>>
    %c5_i32_16 = arith.constant 5 : i32
    %c0_i32_17 = arith.constant 0 : i32
    %27 = tpu.memref_slice %arg20[%c5_i32_16, %c0_i32_17] : memref<16x32xf32, #tpu.memory_space<vmem>> -> memref<1x32xf32, #tpu.memory_space<vmem>>
    %28 = tpu.memref_slice %arg21[%c5_i32] : memref<16x!tpu.dma_semaphore, #tpu.memory_space<semaphore_mem>> -> memref<1x!tpu.dma_semaphore, #tpu.memory_space<semaphore_mem>>
    %29 = tpu.memref_squeeze %28 : memref<1x!tpu.dma_semaphore, #tpu.memory_space<semaphore_mem>> -> memref<!tpu.dma_semaphore, #tpu.memory_space<semaphore_mem>>
    tpu.enqueue_dma source(%26 : memref<1x32xf32, #tpu.memory_space<any>>) target(%27 : memref<1x32xf32, #tpu.memory_space<vmem>>) target_semaphore(%29 : memref<!tpu.dma_semaphore, #tpu.memory_space<semaphore_mem>>)
    %c6 = arith.constant 6 : index
    %30 = memref.load %arg0[%c6] : memref<16xi32, #tpu.memory_space<smem>>
    %c6_i32 = arith.constant 6 : i32
    %c0_i32_18 = arith.constant 0 : i32
    %31 = tpu.memref_slice %arg2[%30, %c0_i32_18] : memref<32x32xf32, #tpu.memory_space<any>> -> memref<1x32xf32, #tpu.memory_space<any>>
    %c6_i32_19 = arith.constant 6 : i32
    %c0_i32_20 = arith.constant 0 : i32
    %32 = tpu.memref_slice %arg20[%c6_i32_19, %c0_i32_20] : memref<16x32xf32, #tpu.memory_space<vmem>> -> memref<1x32xf32, #tpu.memory_space<vmem>>
    %33 = tpu.memref_slice %arg21[%c6_i32] : memref<16x!tpu.dma_semaphore, #tpu.memory_space<semaphore_mem>> -> memref<1x!tpu.dma_semaphore, #tpu.memory_space<semaphore_mem>>
    %34 = tpu.memref_squeeze %33 : memref<1x!tpu.dma_semaphore, #tpu.memory_space<semaphore_mem>> -> memref<!tpu.dma_semaphore, #tpu.memory_space<semaphore_mem>>
    tpu.enqueue_dma source(%31 : memref<1x32xf32, #tpu.memory_space<any>>) target(%32 : memref<1x32xf32, #tpu.memory_space<vmem>>) target_semaphore(%34 : memref<!tpu.dma_semaphore, #tpu.memory_space<semaphore_mem>>)
    %c7 = arith.constant 7 : index
    %35 = memref.load %arg0[%c7] : memref<16xi32, #tpu.memory_space<smem>>
    %c7_i32 = arith.constant 7 : i32
    %c0_i32_21 = arith.constant 0 : i32
    %36 = tpu.memref_slice %arg2[%35, %c0_i32_21] : memref<32x32xf32, #tpu.memory_space<any>> -> memref<1x32xf32, #tpu.memory_space<any>>
    %c7_i32_22 = arith.constant 7 : i32
    %c0_i32_23 = arith.constant 0 : i32
    %37 = tpu.memref_slice %arg20[%c7_i32_22, %c0_i32_23] : memref<16x32xf32, #tpu.memory_space<vmem>> -> memref<1x32xf32, #tpu.memory_space<vmem>>
    %38 = tpu.memref_slice %arg21[%c7_i32] : memref<16x!tpu.dma_semaphore, #tpu.memory_space<semaphore_mem>> -> memref<1x!tpu.dma_semaphore, #tpu.memory_space<semaphore_mem>>
    %39 = tpu.memref_squeeze %38 : memref<1x!tpu.dma_semaphore, #tpu.memory_space<semaphore_mem>> -> memref<!tpu.dma_semaphore, #tpu.memory_space<semaphore_mem>>
    tpu.enqueue_dma source(%36 : memref<1x32xf32, #tpu.memory_space<any>>) target(%37 : memref<1x32xf32, #tpu.memory_space<vmem>>) target_semaphore(%39 : memref<!tpu.dma_semaphore, #tpu.memory_space<semaphore_mem>>)
    %c8 = arith.constant 8 : index
    %40 = memref.load %arg0[%c8] : memref<16xi32, #tpu.memory_space<smem>>
    %c8_i32 = arith.constant 8 : i32
    %c0_i32_24 = arith.constant 0 : i32
    %41 = tpu.memref_slice %arg2[%40, %c0_i32_24] : memref<32x32xf32, #tpu.memory_space<any>> -> memref<1x32xf32, #tpu.memory_space<any>>
    %c8_i32_25 = arith.constant 8 : i32
    %c0_i32_26 = arith.constant 0 : i32
    %42 = tpu.memref_slice %arg20[%c8_i32_25, %c0_i32_26] : memref<16x32xf32, #tpu.memory_space<vmem>> -> memref<1x32xf32, #tpu.memory_space<vmem>>
    %43 = tpu.memref_slice %arg21[%c8_i32] : memref<16x!tpu.dma_semaphore, #tpu.memory_space<semaphore_mem>> -> memref<1x!tpu.dma_semaphore, #tpu.memory_space<semaphore_mem>>
    %44 = tpu.memref_squeeze %43 : memref<1x!tpu.dma_semaphore, #tpu.memory_space<semaphore_mem>> -> memref<!tpu.dma_semaphore, #tpu.memory_space<semaphore_mem>>
    tpu.enqueue_dma source(%41 : memref<1x32xf32, #tpu.memory_space<any>>) target(%42 : memref<1x32xf32, #tpu.memory_space<vmem>>) target_semaphore(%44 : memref<!tpu.dma_semaphore, #tpu.memory_space<semaphore_mem>>)
    %c9 = arith.constant 9 : index
    %45 = memref.load %arg0[%c9] : memref<16xi32, #tpu.memory_space<smem>>
    %c9_i32 = arith.constant 9 : i32
    %c0_i32_27 = arith.constant 0 : i32
    %46 = tpu.memref_slice %arg2[%45, %c0_i32_27] : memref<32x32xf32, #tpu.memory_space<any>> -> memref<1x32xf32, #tpu.memory_space<any>>
    %c9_i32_28 = arith.constant 9 : i32
    %c0_i32_29 = arith.constant 0 : i32
    %47 = tpu.memref_slice %arg20[%c9_i32_28, %c0_i32_29] : memref<16x32xf32, #tpu.memory_space<vmem>> -> memref<1x32xf32, #tpu.memory_space<vmem>>
    %48 = tpu.memref_slice %arg21[%c9_i32] : memref<16x!tpu.dma_semaphore, #tpu.memory_space<semaphore_mem>> -> memref<1x!tpu.dma_semaphore, #tpu.memory_space<semaphore_mem>>
    %49 = tpu.memref_squeeze %48 : memref<1x!tpu.dma_semaphore, #tpu.memory_space<semaphore_mem>> -> memref<!tpu.dma_semaphore, #tpu.memory_space<semaphore_mem>>
    tpu.enqueue_dma source(%46 : memref<1x32xf32, #tpu.memory_space<any>>) target(%47 : memref<1x32xf32, #tpu.memory_space<vmem>>) target_semaphore(%49 : memref<!tpu.dma_semaphore, #tpu.memory_space<semaphore_mem>>)
    %c10 = arith.constant 10 : index
    %50 = memref.load %arg0[%c10] : memref<16xi32, #tpu.memory_space<smem>>
    %c10_i32 = arith.constant 10 : i32
    %c0_i32_30 = arith.constant 0 : i32
    %51 = tpu.memref_slice %arg2[%50, %c0_i32_30] : memref<32x32xf32, #tpu.memory_space<any>> -> memref<1x32xf32, #tpu.memory_space<any>>
    %c10_i32_31 = arith.constant 10 : i32
    %c0_i32_32 = arith.constant 0 : i32
    %52 = tpu.memref_slice %arg20[%c10_i32_31, %c0_i32_32] : memref<16x32xf32, #tpu.memory_space<vmem>> -> memref<1x32xf32, #tpu.memory_space<vmem>>
    %53 = tpu.memref_slice %arg21[%c10_i32] : memref<16x!tpu.dma_semaphore, #tpu.memory_space<semaphore_mem>> -> memref<1x!tpu.dma_semaphore, #tpu.memory_space<semaphore_mem>>
    %54 = tpu.memref_squeeze %53 : memref<1x!tpu.dma_semaphore, #tpu.memory_space<semaphore_mem>> -> memref<!tpu.dma_semaphore, #tpu.memory_space<semaphore_mem>>
    tpu.enqueue_dma source(%51 : memref<1x32xf32, #tpu.memory_space<any>>) target(%52 : memref<1x32xf32, #tpu.memory_space<vmem>>) target_semaphore(%54 : memref<!tpu.dma_semaphore, #tpu.memory_space<semaphore_mem>>)
    %c11 = arith.constant 11 : index
    %55 = memref.load %arg0[%c11] : memref<16xi32, #tpu.memory_space<smem>>
    %c11_i32 = arith.constant 11 : i32
    %c0_i32_33 = arith.constant 0 : i32
    %56 = tpu.memref_slice %arg2[%55, %c0_i32_33] : memref<32x32xf32, #tpu.memory_space<any>> -> memref<1x32xf32, #tpu.memory_space<any>>
    %c11_i32_34 = arith.constant 11 : i32
    %c0_i32_35 = arith.constant 0 : i32
    %57 = tpu.memref_slice %arg20[%c11_i32_34, %c0_i32_35] : memref<16x32xf32, #tpu.memory_space<vmem>> -> memref<1x32xf32, #tpu.memory_space<vmem>>
    %58 = tpu.memref_slice %arg21[%c11_i32] : memref<16x!tpu.dma_semaphore, #tpu.memory_space<semaphore_mem>> -> memref<1x!tpu.dma_semaphore, #tpu.memory_space<semaphore_mem>>
    %59 = tpu.memref_squeeze %58 : memref<1x!tpu.dma_semaphore, #tpu.memory_space<semaphore_mem>> -> memref<!tpu.dma_semaphore, #tpu.memory_space<semaphore_mem>>
    tpu.enqueue_dma source(%56 : memref<1x32xf32, #tpu.memory_space<any>>) target(%57 : memref<1x32xf32, #tpu.memory_space<vmem>>) target_semaphore(%59 : memref<!tpu.dma_semaphore, #tpu.memory_space<semaphore_mem>>)
    %c12 = arith.constant 12 : index
    %60 = memref.load %arg0[%c12] : memref<16xi32, #tpu.memory_space<smem>>
    %c12_i32 = arith.constant 12 : i32
    %c0_i32_36 = arith.constant 0 : i32
    %61 = tpu.memref_slice %arg2[%60, %c0_i32_36] : memref<32x32xf32, #tpu.memory_space<any>> -> memref<1x32xf32, #tpu.memory_space<any>>
    %c12_i32_37 = arith.constant 12 : i32
    %c0_i32_38 = arith.constant 0 : i32
    %62 = tpu.memref_slice %arg20[%c12_i32_37, %c0_i32_38] : memref<16x32xf32, #tpu.memory_space<vmem>> -> memref<1x32xf32, #tpu.memory_space<vmem>>
    %63 = tpu.memref_slice %arg21[%c12_i32] : memref<16x!tpu.dma_semaphore, #tpu.memory_space<semaphore_mem>> -> memref<1x!tpu.dma_semaphore, #tpu.memory_space<semaphore_mem>>
    %64 = tpu.memref_squeeze %63 : memref<1x!tpu.dma_semaphore, #tpu.memory_space<semaphore_mem>> -> memref<!tpu.dma_semaphore, #tpu.memory_space<semaphore_mem>>
    tpu.enqueue_dma source(%61 : memref<1x32xf32, #tpu.memory_space<any>>) target(%62 : memref<1x32xf32, #tpu.memory_space<vmem>>) target_semaphore(%64 : memref<!tpu.dma_semaphore, #tpu.memory_space<semaphore_mem>>)
    %c13 = arith.constant 13 : index
    %65 = memref.load %arg0[%c13] : memref<16xi32, #tpu.memory_space<smem>>
    %c13_i32 = arith.constant 13 : i32
    %c0_i32_39 = arith.constant 0 : i32
    %66 = tpu.memref_slice %arg2[%65, %c0_i32_39] : memref<32x32xf32, #tpu.memory_space<any>> -> memref<1x32xf32, #tpu.memory_space<any>>
    %c13_i32_40 = arith.constant 13 : i32
    %c0_i32_41 = arith.constant 0 : i32
    %67 = tpu.memref_slice %arg20[%c13_i32_40, %c0_i32_41] : memref<16x32xf32, #tpu.memory_space<vmem>> -> memref<1x32xf32, #tpu.memory_space<vmem>>
    %68 = tpu.memref_slice %arg21[%c13_i32] : memref<16x!tpu.dma_semaphore, #tpu.memory_space<semaphore_mem>> -> memref<1x!tpu.dma_semaphore, #tpu.memory_space<semaphore_mem>>
    %69 = tpu.memref_squeeze %68 : memref<1x!tpu.dma_semaphore, #tpu.memory_space<semaphore_mem>> -> memref<!tpu.dma_semaphore, #tpu.memory_space<semaphore_mem>>
    tpu.enqueue_dma source(%66 : memref<1x32xf32, #tpu.memory_space<any>>) target(%67 : memref<1x32xf32, #tpu.memory_space<vmem>>) target_semaphore(%69 : memref<!tpu.dma_semaphore, #tpu.memory_space<semaphore_mem>>)
    %c14 = arith.constant 14 : index
    %70 = memref.load %arg0[%c14] : memref<16xi32, #tpu.memory_space<smem>>
    %c14_i32 = arith.constant 14 : i32
    %c0_i32_42 = arith.constant 0 : i32
    %71 = tpu.memref_slice %arg2[%70, %c0_i32_42] : memref<32x32xf32, #tpu.memory_space<any>> -> memref<1x32xf32, #tpu.memory_space<any>>
    %c14_i32_43 = arith.constant 14 : i32
    %c0_i32_44 = arith.constant 0 : i32
    %72 = tpu.memref_slice %arg20[%c14_i32_43, %c0_i32_44] : memref<16x32xf32, #tpu.memory_space<vmem>> -> memref<1x32xf32, #tpu.memory_space<vmem>>
    %73 = tpu.memref_slice %arg21[%c14_i32] : memref<16x!tpu.dma_semaphore, #tpu.memory_space<semaphore_mem>> -> memref<1x!tpu.dma_semaphore, #tpu.memory_space<semaphore_mem>>
    %74 = tpu.memref_squeeze %73 : memref<1x!tpu.dma_semaphore, #tpu.memory_space<semaphore_mem>> -> memref<!tpu.dma_semaphore, #tpu.memory_space<semaphore_mem>>
    tpu.enqueue_dma source(%71 : memref<1x32xf32, #tpu.memory_space<any>>) target(%72 : memref<1x32xf32, #tpu.memory_space<vmem>>) target_semaphore(%74 : memref<!tpu.dma_semaphore, #tpu.memory_space<semaphore_mem>>)
    %c15 = arith.constant 15 : index
    %75 = memref.load %arg0[%c15] : memref<16xi32, #tpu.memory_space<smem>>
    %c15_i32 = arith.constant 15 : i32
    %c0_i32_45 = arith.constant 0 : i32
    %76 = tpu.memref_slice %arg2[%75, %c0_i32_45] : memref<32x32xf32, #tpu.memory_space<any>> -> memref<1x32xf32, #tpu.memory_space<any>>
    %c15_i32_46 = arith.constant 15 : i32
    %c0_i32_47 = arith.constant 0 : i32
    %77 = tpu.memref_slice %arg20[%c15_i32_46, %c0_i32_47] : memref<16x32xf32, #tpu.memory_space<vmem>> -> memref<1x32xf32, #tpu.memory_space<vmem>>
    %78 = tpu.memref_slice %arg21[%c15_i32] : memref<16x!tpu.dma_semaphore, #tpu.memory_space<semaphore_mem>> -> memref<1x!tpu.dma_semaphore, #tpu.memory_space<semaphore_mem>>
    %79 = tpu.memref_squeeze %78 : memref<1x!tpu.dma_semaphore, #tpu.memory_space<semaphore_mem>> -> memref<!tpu.dma_semaphore, #tpu.memory_space<semaphore_mem>>
    tpu.enqueue_dma source(%76 : memref<1x32xf32, #tpu.memory_space<any>>) target(%77 : memref<1x32xf32, #tpu.memory_space<vmem>>) target_semaphore(%79 : memref<!tpu.dma_semaphore, #tpu.memory_space<semaphore_mem>>)
    %c0_i32_48 = arith.constant 0 : i32
    %c0_i32_49 = arith.constant 0 : i32
    %80 = tpu.memref_slice %arg2[%0, %c0_i32_49] : memref<32x32xf32, #tpu.memory_space<any>> -> memref<1x32xf32, #tpu.memory_space<any>>
    %c0_i32_50 = arith.constant 0 : i32
    %c0_i32_51 = arith.constant 0 : i32
    %81 = tpu.memref_slice %arg20[%c0_i32_50, %c0_i32_51] : memref<16x32xf32, #tpu.memory_space<vmem>> -> memref<1x32xf32, #tpu.memory_space<vmem>>
    %82 = tpu.memref_slice %arg21[%c0_i32_48] : memref<16x!tpu.dma_semaphore, #tpu.memory_space<semaphore_mem>> -> memref<1x!tpu.dma_semaphore, #tpu.memory_space<semaphore_mem>>
    %83 = tpu.memref_squeeze %82 : memref<1x!tpu.dma_semaphore, #tpu.memory_space<semaphore_mem>> -> memref<!tpu.dma_semaphore, #tpu.memory_space<semaphore_mem>>
    tpu.wait_dma2 semaphore(%83 : memref<!tpu.dma_semaphore, #tpu.memory_space<semaphore_mem>>) src(%80 : memref<1x32xf32, #tpu.memory_space<any>>) dst(%81 : memref<1x32xf32, #tpu.memory_space<vmem>>)
    %c1_i32_52 = arith.constant 1 : i32
    %c0_i32_53 = arith.constant 0 : i32
    %84 = tpu.memref_slice %arg2[%5, %c0_i32_53] : memref<32x32xf32, #tpu.memory_space<any>> -> memref<1x32xf32, #tpu.memory_space<any>>
    %c1_i32_54 = arith.constant 1 : i32
    %c0_i32_55 = arith.constant 0 : i32
    %85 = tpu.memref_slice %arg20[%c1_i32_54, %c0_i32_55] : memref<16x32xf32, #tpu.memory_space<vmem>> -> memref<1x32xf32, #tpu.memory_space<vmem>>
    %86 = tpu.memref_slice %arg21[%c1_i32_52] : memref<16x!tpu.dma_semaphore, #tpu.memory_space<semaphore_mem>> -> memref<1x!tpu.dma_semaphore, #tpu.memory_space<semaphore_mem>>
    %87 = tpu.memref_squeeze %86 : memref<1x!tpu.dma_semaphore, #tpu.memory_space<semaphore_mem>> -> memref<!tpu.dma_semaphore, #tpu.memory_space<semaphore_mem>>
    tpu.wait_dma2 semaphore(%87 : memref<!tpu.dma_semaphore, #tpu.memory_space<semaphore_mem>>) src(%84 : memref<1x32xf32, #tpu.memory_space<any>>) dst(%85 : memref<1x32xf32, #tpu.memory_space<vmem>>)
    %c2_i32_56 = arith.constant 2 : i32
    %c0_i32_57 = arith.constant 0 : i32
    %88 = tpu.memref_slice %arg2[%10, %c0_i32_57] : memref<32x32xf32, #tpu.memory_space<any>> -> memref<1x32xf32, #tpu.memory_space<any>>
    %c2_i32_58 = arith.constant 2 : i32
    %c0_i32_59 = arith.constant 0 : i32
    %89 = tpu.memref_slice %arg20[%c2_i32_58, %c0_i32_59] : memref<16x32xf32, #tpu.memory_space<vmem>> -> memref<1x32xf32, #tpu.memory_space<vmem>>
    %90 = tpu.memref_slice %arg21[%c2_i32_56] : memref<16x!tpu.dma_semaphore, #tpu.memory_space<semaphore_mem>> -> memref<1x!tpu.dma_semaphore, #tpu.memory_space<semaphore_mem>>
    %91 = tpu.memref_squeeze %90 : memref<1x!tpu.dma_semaphore, #tpu.memory_space<semaphore_mem>> -> memref<!tpu.dma_semaphore, #tpu.memory_space<semaphore_mem>>
    tpu.wait_dma2 semaphore(%91 : memref<!tpu.dma_semaphore, #tpu.memory_space<semaphore_mem>>) src(%88 : memref<1x32xf32, #tpu.memory_space<any>>) dst(%89 : memref<1x32xf32, #tpu.memory_space<vmem>>)
    %c3_i32_60 = arith.constant 3 : i32
    %c0_i32_61 = arith.constant 0 : i32
    %92 = tpu.memref_slice %arg2[%15, %c0_i32_61] : memref<32x32xf32, #tpu.memory_space<any>> -> memref<1x32xf32, #tpu.memory_space<any>>
    %c3_i32_62 = arith.constant 3 : i32
    %c0_i32_63 = arith.constant 0 : i32
    %93 = tpu.memref_slice %arg20[%c3_i32_62, %c0_i32_63] : memref<16x32xf32, #tpu.memory_space<vmem>> -> memref<1x32xf32, #tpu.memory_space<vmem>>
    %94 = tpu.memref_slice %arg21[%c3_i32_60] : memref<16x!tpu.dma_semaphore, #tpu.memory_space<semaphore_mem>> -> memref<1x!tpu.dma_semaphore, #tpu.memory_space<semaphore_mem>>
    %95 = tpu.memref_squeeze %94 : memref<1x!tpu.dma_semaphore, #tpu.memory_space<semaphore_mem>> -> memref<!tpu.dma_semaphore, #tpu.memory_space<semaphore_mem>>
    tpu.wait_dma2 semaphore(%95 : memref<!tpu.dma_semaphore, #tpu.memory_space<semaphore_mem>>) src(%92 : memref<1x32xf32, #tpu.memory_space<any>>) dst(%93 : memref<1x32xf32, #tpu.memory_space<vmem>>)
    %c4_i32_64 = arith.constant 4 : i32
    %c0_i32_65 = arith.constant 0 : i32
    %96 = tpu.memref_slice %arg2[%20, %c0_i32_65] : memref<32x32xf32, #tpu.memory_space<any>> -> memref<1x32xf32, #tpu.memory_space<any>>
    %c4_i32_66 = arith.constant 4 : i32
    %c0_i32_67 = arith.constant 0 : i32
    %97 = tpu.memref_slice %arg20[%c4_i32_66, %c0_i32_67] : memref<16x32xf32, #tpu.memory_space<vmem>> -> memref<1x32xf32, #tpu.memory_space<vmem>>
    %98 = tpu.memref_slice %arg21[%c4_i32_64] : memref<16x!tpu.dma_semaphore, #tpu.memory_space<semaphore_mem>> -> memref<1x!tpu.dma_semaphore, #tpu.memory_space<semaphore_mem>>
    %99 = tpu.memref_squeeze %98 : memref<1x!tpu.dma_semaphore, #tpu.memory_space<semaphore_mem>> -> memref<!tpu.dma_semaphore, #tpu.memory_space<semaphore_mem>>
    tpu.wait_dma2 semaphore(%99 : memref<!tpu.dma_semaphore, #tpu.memory_space<semaphore_mem>>) src(%96 : memref<1x32xf32, #tpu.memory_space<any>>) dst(%97 : memref<1x32xf32, #tpu.memory_space<vmem>>)
    %c5_i32_68 = arith.constant 5 : i32
    %c0_i32_69 = arith.constant 0 : i32
    %100 = tpu.memref_slice %arg2[%25, %c0_i32_69] : memref<32x32xf32, #tpu.memory_space<any>> -> memref<1x32xf32, #tpu.memory_space<any>>
    %c5_i32_70 = arith.constant 5 : i32
    %c0_i32_71 = arith.constant 0 : i32
    %101 = tpu.memref_slice %arg20[%c5_i32_70, %c0_i32_71] : memref<16x32xf32, #tpu.memory_space<vmem>> -> memref<1x32xf32, #tpu.memory_space<vmem>>
    %102 = tpu.memref_slice %arg21[%c5_i32_68] : memref<16x!tpu.dma_semaphore, #tpu.memory_space<semaphore_mem>> -> memref<1x!tpu.dma_semaphore, #tpu.memory_space<semaphore_mem>>
    %103 = tpu.memref_squeeze %102 : memref<1x!tpu.dma_semaphore, #tpu.memory_space<semaphore_mem>> -> memref<!tpu.dma_semaphore, #tpu.memory_space<semaphore_mem>>
    tpu.wait_dma2 semaphore(%103 : memref<!tpu.dma_semaphore, #tpu.memory_space<semaphore_mem>>) src(%100 : memref<1x32xf32, #tpu.memory_space<any>>) dst(%101 : memref<1x32xf32, #tpu.memory_space<vmem>>)
    %c6_i32_72 = arith.constant 6 : i32
    %c0_i32_73 = arith.constant 0 : i32
    %104 = tpu.memref_slice %arg2[%30, %c0_i32_73] : memref<32x32xf32, #tpu.memory_space<any>> -> memref<1x32xf32, #tpu.memory_space<any>>
    %c6_i32_74 = arith.constant 6 : i32
    %c0_i32_75 = arith.constant 0 : i32
    %105 = tpu.memref_slice %arg20[%c6_i32_74, %c0_i32_75] : memref<16x32xf32, #tpu.memory_space<vmem>> -> memref<1x32xf32, #tpu.memory_space<vmem>>
    %106 = tpu.memref_slice %arg21[%c6_i32_72] : memref<16x!tpu.dma_semaphore, #tpu.memory_space<semaphore_mem>> -> memref<1x!tpu.dma_semaphore, #tpu.memory_space<semaphore_mem>>
    %107 = tpu.memref_squeeze %106 : memref<1x!tpu.dma_semaphore, #tpu.memory_space<semaphore_mem>> -> memref<!tpu.dma_semaphore, #tpu.memory_space<semaphore_mem>>
    tpu.wait_dma2 semaphore(%107 : memref<!tpu.dma_semaphore, #tpu.memory_space<semaphore_mem>>) src(%104 : memref<1x32xf32, #tpu.memory_space<any>>) dst(%105 : memref<1x32xf32, #tpu.memory_space<vmem>>)
    %c7_i32_76 = arith.constant 7 : i32
    %c0_i32_77 = arith.constant 0 : i32
    %108 = tpu.memref_slice %arg2[%35, %c0_i32_77] : memref<32x32xf32, #tpu.memory_space<any>> -> memref<1x32xf32, #tpu.memory_space<any>>
    %c7_i32_78 = arith.constant 7 : i32
    %c0_i32_79 = arith.constant 0 : i32
    %109 = tpu.memref_slice %arg20[%c7_i32_78, %c0_i32_79] : memref<16x32xf32, #tpu.memory_space<vmem>> -> memref<1x32xf32, #tpu.memory_space<vmem>>
    %110 = tpu.memref_slice %arg21[%c7_i32_76] : memref<16x!tpu.dma_semaphore, #tpu.memory_space<semaphore_mem>> -> memref<1x!tpu.dma_semaphore, #tpu.memory_space<semaphore_mem>>
    %111 = tpu.memref_squeeze %110 : memref<1x!tpu.dma_semaphore, #tpu.memory_space<semaphore_mem>> -> memref<!tpu.dma_semaphore, #tpu.memory_space<semaphore_mem>>
    tpu.wait_dma2 semaphore(%111 : memref<!tpu.dma_semaphore, #tpu.memory_space<semaphore_mem>>) src(%108 : memref<1x32xf32, #tpu.memory_space<any>>) dst(%109 : memref<1x32xf32, #tpu.memory_space<vmem>>)
    %c8_i32_80 = arith.constant 8 : i32
    %c0_i32_81 = arith.constant 0 : i32
    %112 = tpu.memref_slice %arg2[%40, %c0_i32_81] : memref<32x32xf32, #tpu.memory_space<any>> -> memref<1x32xf32, #tpu.memory_space<any>>
    %c8_i32_82 = arith.constant 8 : i32
    %c0_i32_83 = arith.constant 0 : i32
    %113 = tpu.memref_slice %arg20[%c8_i32_82, %c0_i32_83] : memref<16x32xf32, #tpu.memory_space<vmem>> -> memref<1x32xf32, #tpu.memory_space<vmem>>
    %114 = tpu.memref_slice %arg21[%c8_i32_80] : memref<16x!tpu.dma_semaphore, #tpu.memory_space<semaphore_mem>> -> memref<1x!tpu.dma_semaphore, #tpu.memory_space<semaphore_mem>>
    %115 = tpu.memref_squeeze %114 : memref<1x!tpu.dma_semaphore, #tpu.memory_space<semaphore_mem>> -> memref<!tpu.dma_semaphore, #tpu.memory_space<semaphore_mem>>
    tpu.wait_dma2 semaphore(%115 : memref<!tpu.dma_semaphore, #tpu.memory_space<semaphore_mem>>) src(%112 : memref<1x32xf32, #tpu.memory_space<any>>) dst(%113 : memref<1x32xf32, #tpu.memory_space<vmem>>)
    %c9_i32_84 = arith.constant 9 : i32
    %c0_i32_85 = arith.constant 0 : i32
    %116 = tpu.memref_slice %arg2[%45, %c0_i32_85] : memref<32x32xf32, #tpu.memory_space<any>> -> memref<1x32xf32, #tpu.memory_space<any>>
    %c9_i32_86 = arith.constant 9 : i32
    %c0_i32_87 = arith.constant 0 : i32
    %117 = tpu.memref_slice %arg20[%c9_i32_86, %c0_i32_87] : memref<16x32xf32, #tpu.memory_space<vmem>> -> memref<1x32xf32, #tpu.memory_space<vmem>>
    %118 = tpu.memref_slice %arg21[%c9_i32_84] : memref<16x!tpu.dma_semaphore, #tpu.memory_space<semaphore_mem>> -> memref<1x!tpu.dma_semaphore, #tpu.memory_space<semaphore_mem>>
    %119 = tpu.memref_squeeze %118 : memref<1x!tpu.dma_semaphore, #tpu.memory_space<semaphore_mem>> -> memref<!tpu.dma_semaphore, #tpu.memory_space<semaphore_mem>>
    tpu.wait_dma2 semaphore(%119 : memref<!tpu.dma_semaphore, #tpu.memory_space<semaphore_mem>>) src(%116 : memref<1x32xf32, #tpu.memory_space<any>>) dst(%117 : memref<1x32xf32, #tpu.memory_space<vmem>>)
    %c10_i32_88 = arith.constant 10 : i32
    %c0_i32_89 = arith.constant 0 : i32
    %120 = tpu.memref_slice %arg2[%50, %c0_i32_89] : memref<32x32xf32, #tpu.memory_space<any>> -> memref<1x32xf32, #tpu.memory_space<any>>
    %c10_i32_90 = arith.constant 10 : i32
    %c0_i32_91 = arith.constant 0 : i32
    %121 = tpu.memref_slice %arg20[%c10_i32_90, %c0_i32_91] : memref<16x32xf32, #tpu.memory_space<vmem>> -> memref<1x32xf32, #tpu.memory_space<vmem>>
    %122 = tpu.memref_slice %arg21[%c10_i32_88] : memref<16x!tpu.dma_semaphore, #tpu.memory_space<semaphore_mem>> -> memref<1x!tpu.dma_semaphore, #tpu.memory_space<semaphore_mem>>
    %123 = tpu.memref_squeeze %122 : memref<1x!tpu.dma_semaphore, #tpu.memory_space<semaphore_mem>> -> memref<!tpu.dma_semaphore, #tpu.memory_space<semaphore_mem>>
    tpu.wait_dma2 semaphore(%123 : memref<!tpu.dma_semaphore, #tpu.memory_space<semaphore_mem>>) src(%120 : memref<1x32xf32, #tpu.memory_space<any>>) dst(%121 : memref<1x32xf32, #tpu.memory_space<vmem>>)
    %c11_i32_92 = arith.constant 11 : i32
    %c0_i32_93 = arith.constant 0 : i32
    %124 = tpu.memref_slice %arg2[%55, %c0_i32_93] : memref<32x32xf32, #tpu.memory_space<any>> -> memref<1x32xf32, #tpu.memory_space<any>>
    %c11_i32_94 = arith.constant 11 : i32
    %c0_i32_95 = arith.constant 0 : i32
    %125 = tpu.memref_slice %arg20[%c11_i32_94, %c0_i32_95] : memref<16x32xf32, #tpu.memory_space<vmem>> -> memref<1x32xf32, #tpu.memory_space<vmem>>
    %126 = tpu.memref_slice %arg21[%c11_i32_92] : memref<16x!tpu.dma_semaphore, #tpu.memory_space<semaphore_mem>> -> memref<1x!tpu.dma_semaphore, #tpu.memory_space<semaphore_mem>>
    %127 = tpu.memref_squeeze %126 : memref<1x!tpu.dma_semaphore, #tpu.memory_space<semaphore_mem>> -> memref<!tpu.dma_semaphore, #tpu.memory_space<semaphore_mem>>
    tpu.wait_dma2 semaphore(%127 : memref<!tpu.dma_semaphore, #tpu.memory_space<semaphore_mem>>) src(%124 : memref<1x32xf32, #tpu.memory_space<any>>) dst(%125 : memref<1x32xf32, #tpu.memory_space<vmem>>)
    %c12_i32_96 = arith.constant 12 : i32
    %c0_i32_97 = arith.constant 0 : i32
    %128 = tpu.memref_slice %arg2[%60, %c0_i32_97] : memref<32x32xf32, #tpu.memory_space<any>> -> memref<1x32xf32, #tpu.memory_space<any>>
    %c12_i32_98 = arith.constant 12 : i32
    %c0_i32_99 = arith.constant 0 : i32
    %129 = tpu.memref_slice %arg20[%c12_i32_98, %c0_i32_99] : memref<16x32xf32, #tpu.memory_space<vmem>> -> memref<1x32xf32, #tpu.memory_space<vmem>>
    %130 = tpu.memref_slice %arg21[%c12_i32_96] : memref<16x!tpu.dma_semaphore, #tpu.memory_space<semaphore_mem>> -> memref<1x!tpu.dma_semaphore, #tpu.memory_space<semaphore_mem>>
    %131 = tpu.memref_squeeze %130 : memref<1x!tpu.dma_semaphore, #tpu.memory_space<semaphore_mem>> -> memref<!tpu.dma_semaphore, #tpu.memory_space<semaphore_mem>>
    tpu.wait_dma2 semaphore(%131 : memref<!tpu.dma_semaphore, #tpu.memory_space<semaphore_mem>>) src(%128 : memref<1x32xf32, #tpu.memory_space<any>>) dst(%129 : memref<1x32xf32, #tpu.memory_space<vmem>>)
    %c13_i32_100 = arith.constant 13 : i32
    %c0_i32_101 = arith.constant 0 : i32
    %132 = tpu.memref_slice %arg2[%65, %c0_i32_101] : memref<32x32xf32, #tpu.memory_space<any>> -> memref<1x32xf32, #tpu.memory_space<any>>
    %c13_i32_102 = arith.constant 13 : i32
    %c0_i32_103 = arith.constant 0 : i32
    %133 = tpu.memref_slice %arg20[%c13_i32_102, %c0_i32_103] : memref<16x32xf32, #tpu.memory_space<vmem>> -> memref<1x32xf32, #tpu.memory_space<vmem>>
    %134 = tpu.memref_slice %arg21[%c13_i32_100] : memref<16x!tpu.dma_semaphore, #tpu.memory_space<semaphore_mem>> -> memref<1x!tpu.dma_semaphore, #tpu.memory_space<semaphore_mem>>
    %135 = tpu.memref_squeeze %134 : memref<1x!tpu.dma_semaphore, #tpu.memory_space<semaphore_mem>> -> memref<!tpu.dma_semaphore, #tpu.memory_space<semaphore_mem>>
    tpu.wait_dma2 semaphore(%135 : memref<!tpu.dma_semaphore, #tpu.memory_space<semaphore_mem>>) src(%132 : memref<1x32xf32, #tpu.memory_space<any>>) dst(%133 : memref<1x32xf32, #tpu.memory_space<vmem>>)
    %c14_i32_104 = arith.constant 14 : i32
    %c0_i32_105 = arith.constant 0 : i32
    %136 = tpu.memref_slice %arg2[%70, %c0_i32_105] : memref<32x32xf32, #tpu.memory_space<any>> -> memref<1x32xf32, #tpu.memory_space<any>>
    %c14_i32_106 = arith.constant 14 : i32
    %c0_i32_107 = arith.constant 0 : i32
    %137 = tpu.memref_slice %arg20[%c14_i32_106, %c0_i32_107] : memref<16x32xf32, #tpu.memory_space<vmem>> -> memref<1x32xf32, #tpu.memory_space<vmem>>
    %138 = tpu.memref_slice %arg21[%c14_i32_104] : memref<16x!tpu.dma_semaphore, #tpu.memory_space<semaphore_mem>> -> memref<1x!tpu.dma_semaphore, #tpu.memory_space<semaphore_mem>>
    %139 = tpu.memref_squeeze %138 : memref<1x!tpu.dma_semaphore, #tpu.memory_space<semaphore_mem>> -> memref<!tpu.dma_semaphore, #tpu.memory_space<semaphore_mem>>
    tpu.wait_dma2 semaphore(%139 : memref<!tpu.dma_semaphore, #tpu.memory_space<semaphore_mem>>) src(%136 : memref<1x32xf32, #tpu.memory_space<any>>) dst(%137 : memref<1x32xf32, #tpu.memory_space<vmem>>)
    %c15_i32_108 = arith.constant 15 : i32
    %c0_i32_109 = arith.constant 0 : i32
    %140 = tpu.memref_slice %arg2[%75, %c0_i32_109] : memref<32x32xf32, #tpu.memory_space<any>> -> memref<1x32xf32, #tpu.memory_space<any>>
    %c15_i32_110 = arith.constant 15 : i32
    %c0_i32_111 = arith.constant 0 : i32
    %141 = tpu.memref_slice %arg20[%c15_i32_110, %c0_i32_111] : memref<16x32xf32, #tpu.memory_space<vmem>> -> memref<1x32xf32, #tpu.memory_space<vmem>>
    %142 = tpu.memref_slice %arg21[%c15_i32_108] : memref<16x!tpu.dma_semaphore, #tpu.memory_space<semaphore_mem>> -> memref<1x!tpu.dma_semaphore, #tpu.memory_space<semaphore_mem>>
    %143 = tpu.memref_squeeze %142 : memref<1x!tpu.dma_semaphore, #tpu.memory_space<semaphore_mem>> -> memref<!tpu.dma_semaphore, #tpu.memory_space<semaphore_mem>>
    tpu.wait_dma2 semaphore(%143 : memref<!tpu.dma_semaphore, #tpu.memory_space<semaphore_mem>>) src(%140 : memref<1x32xf32, #tpu.memory_space<any>>) dst(%141 : memref<1x32xf32, #tpu.memory_space<vmem>>)
    %c0_112 = arith.constant 0 : index
    %c0_113 = arith.constant 0 : index
    %144 = vector.load %arg20[%c0_112, %c0_113] : memref<16x32xf32, #tpu.memory_space<vmem>>, vector<16x32xf32>
    %c0_114 = arith.constant 0 : index
    %c0_115 = arith.constant 0 : index
    %145 = vector.load %arg1[%c0_114, %c0_115] : memref<16x16xf32, #tpu.memory_space<vmem>>, vector<16x16xf32>
    %c0_116 = arith.constant 0 : index
    %c0_117 = arith.constant 0 : index
    %146 = vector.load %arg3[%c0_116, %c0_117] : memref<32x32xf32, #tpu.memory_space<vmem>>, vector<32x32xf32>
    %cst = arith.constant dense<0.000000e+00> : vector<16x32xf32>
    %147 = tpu.matmul %144, %146, %cst {dimension_numbers = #tpu.dot_dimension_numbers<[1], [0], [0], [1], [0, 0, 1, 1], [], []>} : vector<16x32xf32>, vector<32x32xf32>, vector<16x32xf32> -> vector<16x32xf32>
    %cst_118 = arith.constant dense<0.000000e+00> : vector<16x32xf32>
    %148 = tpu.matmul %145, %147, %cst_118 {dimension_numbers = #tpu.dot_dimension_numbers<[1], [0], [0], [1], [0, 0, 1, 1], [], []>} : vector<16x16xf32>, vector<16x32xf32>, vector<16x32xf32> -> vector<16x32xf32>
    %c0_119 = arith.constant 0 : index
    %c0_120 = arith.constant 0 : index
    %149 = vector.load %arg4[%c0_119, %c0_120] : memref<1x32xf32, #tpu.memory_space<vmem>>, vector<1x32xf32>
    %150 = vector.broadcast %149 : vector<1x32xf32> to vector<16x32xf32>
    %151 = arith.addf %148, %150 : vector<16x32xf32>
    %cst_121 = arith.constant 0.000000e+00 : f32
    %152 = vector.broadcast %cst_121 : f32 to vector<16x32xf32>
    %153 = arith.maximumf %151, %152 : vector<16x32xf32>
    %c0_122 = arith.constant 0 : index
    %c0_123 = arith.constant 0 : index
    %154 = vector.load %arg5[%c0_122, %c0_123] : memref<32x32xf32, #tpu.memory_space<vmem>>, vector<32x32xf32>
    %cst_124 = arith.constant dense<0.000000e+00> : vector<16x32xf32>
    %155 = tpu.matmul %153, %154, %cst_124 {dimension_numbers = #tpu.dot_dimension_numbers<[1], [0], [0], [1], [0, 0, 1, 1], [], []>} : vector<16x32xf32>, vector<32x32xf32>, vector<16x32xf32> -> vector<16x32xf32>
    %cst_125 = arith.constant dense<0.000000e+00> : vector<16x32xf32>
    %156 = tpu.matmul %145, %155, %cst_125 {dimension_numbers = #tpu.dot_dimension_numbers<[1], [0], [0], [1], [0, 0, 1, 1], [], []>} : vector<16x16xf32>, vector<16x32xf32>, vector<16x32xf32> -> vector<16x32xf32>
    %c0_126 = arith.constant 0 : index
    %c0_127 = arith.constant 0 : index
    %157 = vector.load %arg8[%c0_126, %c0_127] : memref<16x64xbf16, #tpu.memory_space<vmem>>, vector<16x64xbf16>
    %c0_128 = arith.constant 0 : index
    %c0_129 = arith.constant 0 : index
    %158 = vector.load %arg9[%c0_128, %c0_129] : memref<64x32xbf16, #tpu.memory_space<vmem>>, vector<64x32xbf16>
    %cst_130 = arith.constant dense<0.000000e+00> : vector<16x32xf32>
    %159 = tpu.matmul %157, %158, %cst_130 {dimension_numbers = #tpu.dot_dimension_numbers<[1], [0], [0], [1], [0, 0, 1, 1], [], []>} : vector<16x64xbf16>, vector<64x32xbf16>, vector<16x32xf32> -> vector<16x32xf32>
    %c0_131 = arith.constant 0 : index
    %c0_132 = arith.constant 0 : index
    %160 = vector.load %arg10[%c0_131, %c0_132] : memref<16x1000xbf16, #tpu.memory_space<vmem>>, vector<16x1000xbf16>
    %c0_133 = arith.constant 0 : index
    %c0_134 = arith.constant 0 : index
    %161 = vector.load %arg11[%c0_133, %c0_134] : memref<1000x32xbf16, #tpu.memory_space<vmem>>, vector<1000x32xbf16>
    %cst_135 = arith.constant dense<0.000000e+00> : vector<16x32xf32>
    %162 = tpu.matmul %160, %161, %cst_135 {dimension_numbers = #tpu.dot_dimension_numbers<[1], [0], [0], [1], [0, 0, 1, 1], [], []>} : vector<16x1000xbf16>, vector<1000x32xbf16>, vector<16x32xf32> -> vector<16x32xf32>
    %c0_136 = arith.constant 0 : index
    %c0_137 = arith.constant 0 : index
    %163 = vector.load %arg12[%c0_136, %c0_137] : memref<16x1000xbf16, #tpu.memory_space<vmem>>, vector<16x1000xbf16>
    %c0_138 = arith.constant 0 : index
    %c0_139 = arith.constant 0 : index
    %164 = vector.load %arg13[%c0_138, %c0_139] : memref<1000x32xbf16, #tpu.memory_space<vmem>>, vector<1000x32xbf16>
    %cst_140 = arith.constant dense<0.000000e+00> : vector<16x32xf32>
    %165 = tpu.matmul %163, %164, %cst_140 {dimension_numbers = #tpu.dot_dimension_numbers<[1], [0], [0], [1], [0, 0, 1, 1], [], []>} : vector<16x1000xbf16>, vector<1000x32xbf16>, vector<16x32xf32> -> vector<16x32xf32>
    %c0_141 = arith.constant 0 : index
    %c0_142 = arith.constant 0 : index
    %166 = vector.load %arg14[%c0_141, %c0_142] : memref<16x300xbf16, #tpu.memory_space<vmem>>, vector<16x300xbf16>
    %c0_143 = arith.constant 0 : index
    %c0_144 = arith.constant 0 : index
    %167 = vector.load %arg15[%c0_143, %c0_144] : memref<300x32xbf16, #tpu.memory_space<vmem>>, vector<300x32xbf16>
    %cst_145 = arith.constant dense<0.000000e+00> : vector<16x32xf32>
    %168 = tpu.matmul %166, %167, %cst_145 {dimension_numbers = #tpu.dot_dimension_numbers<[1], [0], [0], [1], [0, 0, 1, 1], [], []>} : vector<16x300xbf16>, vector<300x32xbf16>, vector<16x32xf32> -> vector<16x32xf32>
    %c0_146 = arith.constant 0 : index
    %c0_147 = arith.constant 0 : index
    %169 = vector.load %arg16[%c0_146, %c0_147] : memref<16x100xbf16, #tpu.memory_space<vmem>>, vector<16x100xbf16>
    %c0_148 = arith.constant 0 : index
    %c0_149 = arith.constant 0 : index
    %170 = vector.load %arg17[%c0_148, %c0_149] : memref<100x32xbf16, #tpu.memory_space<vmem>>, vector<100x32xbf16>
    %cst_150 = arith.constant dense<0.000000e+00> : vector<16x32xf32>
    %171 = tpu.matmul %169, %170, %cst_150 {dimension_numbers = #tpu.dot_dimension_numbers<[1], [0], [0], [1], [0, 0, 1, 1], [], []>} : vector<16x100xbf16>, vector<100x32xbf16>, vector<16x32xf32> -> vector<16x32xf32>
    %172 = tpu.concatenate %159, %165, %162, %156, %168, %171 in 1 : vector<16x32xf32>, vector<16x32xf32>, vector<16x32xf32>, vector<16x32xf32>, vector<16x32xf32>, vector<16x32xf32> -> vector<16x192xf32>
    %c0_151 = arith.constant 0 : index
    %c0_152 = arith.constant 0 : index
    %173 = vector.load %arg6[%c0_151, %c0_152] : memref<1x192xf32, #tpu.memory_space<vmem>>, vector<1x192xf32>
    %174 = vector.broadcast %173 : vector<1x192xf32> to vector<16x192xf32>
    %175 = arith.addf %172, %174 : vector<16x192xf32>
    %c0_153 = arith.constant 0 : index
    %c0_154 = arith.constant 0 : index
    %176 = vector.load %arg18[%c0_153, %c0_154] : memref<16x192xf32, #tpu.memory_space<vmem>>, vector<16x192xf32>
    tpu.vector_store %arg18[%c0_153, %c0_154], %175 {strides = array<i32>} : memref<16x192xf32, #tpu.memory_space<vmem>>, vector<16x192xf32>,
    %c0_155 = arith.constant 0 : index
    %c0_156 = arith.constant 0 : index
    %177 = vector.load %arg7[%c0_155, %c0_156] : memref<1x192xf32, #tpu.memory_space<vmem>>, vector<1x192xf32>
    %178 = vector.broadcast %177 : vector<1x192xf32> to vector<16x192xf32>
    %179 = arith.mulf %175, %178 : vector<16x192xf32>
    %c0_157 = arith.constant 0 : index
    %c0_158 = arith.constant 0 : index
    %180 = vector.load %arg19[%c0_157, %c0_158] : memref<16x192xf32, #tpu.memory_space<vmem>>, vector<16x192xf32>
    tpu.vector_store %arg19[%c0_157, %c0_158], %179 {strides = array<i32>} : memref<16x192xf32, #tpu.memory_space<vmem>>, vector<16x192xf32>,
    return
  }
}

</mosaic_0001>

<llo_original>
// kernel: tpu_custom_call.1
$region0: #{tpu_custom_call.1}
  #allocation0 [shape = 'u32[]', space=smem, size = 0x4, offset = 0x4, fixed_abs, tag = 'smem constant byte address 0x4 - core index']
  #allocation1 [shape = 'u32[144,128]{1,0:T(1,128)}', space=vmem, size = 0x12000, scoped, tag = 'internal scratch']
  #allocation2 [shape = 'f32[16,32]{1,0:T(8,128)}', space=vmem, size = 0x2000, scoped, tag = 'scratch operand']
  #allocation3 [shape = 's32[16]{0}', space=sflag, size = 0x40, scoped, tag = 'scratch operand']
  #allocation10 [shape = 's32[]', space=sflag, size = 0x4, offset = 0, fixed_abs, tag = 'sflag constant byte address 0x0 - dummy sync flag']
  #allocation11 [shape = 's32[]', space=sflag, size = 0x4, offset = 0, fixed_abs, tag = 'sflag constant byte address 0x0 - dummy sync flag']
  #allocation12 [shape = 's32[]', space=sflag, size = 0x4, offset = 0, fixed_abs, tag = 'sflag constant byte address 0x0 - dummy sync flag']
  #allocation13 [shape = 's32[]', space=sflag, size = 0x4, offset = 0, fixed_abs, tag = 'sflag constant byte address 0x0 - dummy sync flag']
  #allocation14 [shape = 's32[]', space=sflag, size = 0x4, offset = 0, fixed_abs, tag = 'sflag constant byte address 0x0 - dummy sync flag']
  #allocation15 [shape = 's32[]', space=sflag, size = 0x4, offset = 0, fixed_abs, tag = 'sflag constant byte address 0x0 - dummy sync flag']
  #allocation16 [shape = 's32[]', space=sflag, size = 0x4, offset = 0, fixed_abs, tag = 'sflag constant byte address 0x0 - dummy sync flag']
  #allocation17 [shape = 's32[]', space=sflag, size = 0x4, offset = 0, fixed_abs, tag = 'sflag constant byte address 0x0 - dummy sync flag']
  #allocation18 [shape = 's32[]', space=sflag, size = 0x4, offset = 0, fixed_abs, tag = 'sflag constant byte address 0x0 - dummy sync flag']
  #allocation19 [shape = 's32[]', space=sflag, size = 0x4, offset = 0, fixed_abs, tag = 'sflag constant byte address 0x0 - dummy sync flag']
  #allocation20 [shape = 's32[]', space=sflag, size = 0x4, offset = 0, fixed_abs, tag = 'sflag constant byte address 0x0 - dummy sync flag']
  #allocation21 [shape = 's32[]', space=sflag, size = 0x4, offset = 0, fixed_abs, tag = 'sflag constant byte address 0x0 - dummy sync flag']
  #allocation22 [shape = 's32[]', space=sflag, size = 0x4, offset = 0, fixed_abs, tag = 'sflag constant byte address 0x0 - dummy sync flag']
  #allocation23 [shape = 's32[]', space=sflag, size = 0x4, offset = 0, fixed_abs, tag = 'sflag constant byte address 0x0 - dummy sync flag']
  #allocation24 [shape = 's32[]', space=sflag, size = 0x4, offset = 0, fixed_abs, tag = 'sflag constant byte address 0x0 - dummy sync flag']
  #allocation25 [shape = 's32[]', space=sflag, size = 0x4, offset = 0, fixed_abs, tag = 'sflag constant byte address 0x0 - dummy sync flag']
  %s0 = inlined_call_operand.vmem [shape: s32[16], index: 0, kind: input, shape index: {}]
  %s1 = inlined_call_operand.vmem [shape: f32[16,16], index: 1, kind: input, shape index: {}]
  %s2 = inlined_call_operand.vmem [shape: f32[32,32], index: 2, kind: input, shape index: {}]
  %s3 = inlined_call_operand.vmem [shape: f32[32,32], index: 3, kind: input, shape index: {}]
  %s4 = inlined_call_operand.vmem [shape: f32[1,32], index: 4, kind: input, shape index: {}]
  %s5 = inlined_call_operand.vmem [shape: f32[32,32], index: 5, kind: input, shape index: {}]
  %s6 = inlined_call_operand.vmem [shape: f32[1,192], index: 6, kind: input, shape index: {}]
  %s7 = inlined_call_operand.vmem [shape: f32[1,192], index: 7, kind: input, shape index: {}]
  %s8 = inlined_call_operand.vmem [shape: bf16[16,64], index: 8, kind: input, shape index: {}]
  %s9 = inlined_call_operand.vmem [shape: bf16[64,32], index: 9, kind: input, shape index: {}]
  %s10 = inlined_call_operand.vmem [shape: bf16[16,1000], index: 10, kind: input, shape index: {}]
  %s11 = inlined_call_operand.vmem [shape: bf16[1000,32], index: 11, kind: input, shape index: {}]
  %s12 = inlined_call_operand.vmem [shape: bf16[16,1000], index: 12, kind: input, shape index: {}]
  %s13 = inlined_call_operand.vmem [shape: bf16[1000,32], index: 13, kind: input, shape index: {}]
  %s14 = inlined_call_operand.vmem [shape: bf16[16,300], index: 14, kind: input, shape index: {}]
  %s15 = inlined_call_operand.vmem [shape: bf16[300,32], index: 15, kind: input, shape index: {}]
  %s16 = inlined_call_operand.vmem [shape: bf16[16,100], index: 16, kind: input, shape index: {}]
  %s17 = inlined_call_operand.vmem [shape: bf16[100,32], index: 17, kind: input, shape index: {}]
  %s18 = inlined_call_operand.hbm [shape: f32[16,192], index: 18, kind: output, shape index: {0}]
  %s19 = inlined_call_operand.hbm [shape: f32[16,192], index: 19, kind: output, shape index: {1}]
  %20 = xla_tuple %s18, %s19
  %s21 = sld [smem:[#allocation0]]
  $region570: #{tpu_custom_call.1} parent=0
    _
  %s23 = ssub.s32 1, %s21
  %s24 = scalar_select 0, %s23, %s21
  $region1: #{tpu_custom_call.1} parent=0
    #allocation4 [shape = 'u8[512]{0}', space=smem, size = 0x200, scoped, tag = 'input window, operand 0, single buffered']
    #allocation5 [shape = 's32[1]{0}', space=sflag, size = 0x4, scoped, tag = 'scoped memory for tpu_custom_call.1']
    #allocation6 [shape = 's32[1]{0}', space=sflag, size = 0x4, scoped, tag = 'scoped memory for tpu_custom_call.1']
    #allocation7 [shape = 'u8[16384]{0}', space=vmem, size = 0x4000, scoped, tag = 'output window, operand 0, single buffered']
    #allocation8 [shape = 'u8[16384]{0}', space=vmem, size = 0x4000, scoped, tag = 'output window, operand 1, single buffered']
    #allocation9 [shape = 's32[1]{0}', space=sflag, size = 0x4, scoped, tag = 'scoped memory for tpu_custom_call.1']
    %25 = vsyncpa [#allocation6], 0
    %26 = vsyncpa [#allocation5], 0
    %27 = vsyncpa [#allocation9], 0
    // Predicated region
    $region2: #{tpu_custom_call.1} parent=1 // pred_check
      _
    $region3: #{tpu_custom_call.1} parent=1 // pred_check_branch
      %29 = sbr.rel (0) target = $region5
    $region4: #{tpu_custom_call.1} parent=1 // pred_region
      %s31 = ssub.s32 16, 16
      %32 = vsyncadd [#allocation6], %s31
      %s34 = sshll.u32 %s0, 4
      %s35 = int_to_ptr.vmem [resolvable:$true] %s34
      %37 = dma.vmem_to_smem %s35, 16, [#allocation4], [#allocation6]
    $region5: #{tpu_custom_call.1} parent=1 // pred_fallthru
      _
    // Predicated region
    $region6: #{tpu_custom_call.1} parent=1 // pred_check
      _
    $region7: #{tpu_custom_call.1} parent=1 // pred_check_branch
      %39 = sbr.rel (0) target = $region9
    $region8: #{tpu_custom_call.1} parent=1 // pred_region
      _
    $region9: #{tpu_custom_call.1} parent=1 // pred_fallthru
      _
    // Predicated region
    $region10: #{tpu_custom_call.1} parent=1 // pred_check
      _
    $region11: #{tpu_custom_call.1} parent=1 // pred_check_branch
      %41 = sbr.rel (0) target = $region13
    $region12: #{tpu_custom_call.1} parent=1 // pred_region
      _
    $region13: #{tpu_custom_call.1} parent=1 // pred_fallthru
      _
    // Predicated region
    $region14: #{tpu_custom_call.1} parent=1 // pred_check
      _
    $region15: #{tpu_custom_call.1} parent=1 // pred_check_branch
      %43 = sbr.rel (0) target = $region17
    $region16: #{tpu_custom_call.1} parent=1 // pred_region
      _
    $region17: #{tpu_custom_call.1} parent=1 // pred_fallthru
      _
    // Predicated region
    $region18: #{tpu_custom_call.1} parent=1 // pred_check
      _
    $region19: #{tpu_custom_call.1} parent=1 // pred_check_branch
      %45 = sbr.rel (0) target = $region21
    $region20: #{tpu_custom_call.1} parent=1 // pred_region
      _
    $region21: #{tpu_custom_call.1} parent=1 // pred_fallthru
      _
    // Predicated region
    $region22: #{tpu_custom_call.1} parent=1 // pred_check
      _
    $region23: #{tpu_custom_call.1} parent=1 // pred_check_branch
      %47 = sbr.rel (0) target = $region25
    $region24: #{tpu_custom_call.1} parent=1 // pred_region
      _
    $region25: #{tpu_custom_call.1} parent=1 // pred_fallthru
      _
    // Predicated region
    $region26: #{tpu_custom_call.1} parent=1 // pred_check
      _
    $region27: #{tpu_custom_call.1} parent=1 // pred_check_branch
      %49 = sbr.rel (0) target = $region29
    $region28: #{tpu_custom_call.1} parent=1 // pred_region
      _
    $region29: #{tpu_custom_call.1} parent=1 // pred_fallthru
      _
    // Predicated region
    $region30: #{tpu_custom_call.1} parent=1 // pred_check
      _
    $region31: #{tpu_custom_call.1} parent=1 // pred_check_branch
      %51 = sbr.rel (0) target = $region33
    $region32: #{tpu_custom_call.1} parent=1 // pred_region
      _
    $region33: #{tpu_custom_call.1} parent=1 // pred_fallthru
      _
    // Predicated region
    $region34: #{tpu_custom_call.1} parent=1 // pred_check
      _
    $region35: #{tpu_custom_call.1} parent=1 // pred_check_branch
      %53 = sbr.rel (0) target = $region37
    $region36: #{tpu_custom_call.1} parent=1 // pred_region
      _
    $region37: #{tpu_custom_call.1} parent=1 // pred_fallthru
      _
    // Predicated region
    $region38: #{tpu_custom_call.1} parent=1 // pred_check
      _
    $region39: #{tpu_custom_call.1} parent=1 // pred_check_branch
      %55 = sbr.rel (0) target = $region41
    $region40: #{tpu_custom_call.1} parent=1 // pred_region
      _
    $region41: #{tpu_custom_call.1} parent=1 // pred_fallthru
      _
    // Predicated region
    $region42: #{tpu_custom_call.1} parent=1 // pred_check
      _
    $region43: #{tpu_custom_call.1} parent=1 // pred_check_branch
      %57 = sbr.rel (0) target = $region45
    $region44: #{tpu_custom_call.1} parent=1 // pred_region
      _
    $region45: #{tpu_custom_call.1} parent=1 // pred_fallthru
      _
    // Predicated region
    $region46: #{tpu_custom_call.1} parent=1 // pred_check
      _
    $region47: #{tpu_custom_call.1} parent=1 // pred_check_branch
      %59 = sbr.rel (0) target = $region49
    $region48: #{tpu_custom_call.1} parent=1 // pred_region
      _
    $region49: #{tpu_custom_call.1} parent=1 // pred_fallthru
      _
    // Predicated region
    $region50: #{tpu_custom_call.1} parent=1 // pred_check
      _
    $region51: #{tpu_custom_call.1} parent=1 // pred_check_branch
      %61 = sbr.rel (0) target = $region53
    $region52: #{tpu_custom_call.1} parent=1 // pred_region
      _
    $region53: #{tpu_custom_call.1} parent=1 // pred_fallthru
      _
    // Predicated region
    $region54: #{tpu_custom_call.1} parent=1 // pred_check
      _
    $region55: #{tpu_custom_call.1} parent=1 // pred_check_branch
      %63 = sbr.rel (0) target = $region57
    $region56: #{tpu_custom_call.1} parent=1 // pred_region
      _
    $region57: #{tpu_custom_call.1} parent=1 // pred_fallthru
      _
    // Predicated region
    $region58: #{tpu_custom_call.1} parent=1 // pred_check
      _
    $region59: #{tpu_custom_call.1} parent=1 // pred_check_branch
      %65 = sbr.rel (0) target = $region61
    $region60: #{tpu_custom_call.1} parent=1 // pred_region
      _
    $region61: #{tpu_custom_call.1} parent=1 // pred_fallthru
      _
    // Predicated region
    $region62: #{tpu_custom_call.1} parent=1 // pred_check
      _
    $region63: #{tpu_custom_call.1} parent=1 // pred_check_branch
      %67 = sbr.rel (0) target = $region65
    $region64: #{tpu_custom_call.1} parent=1 // pred_region
      _
    $region65: #{tpu_custom_call.1} parent=1 // pred_fallthru
      _
    // Predicated region
    $region66: #{tpu_custom_call.1} parent=1 // pred_check
      _
    $region67: #{tpu_custom_call.1} parent=1 // pred_check_branch
      %69 = sbr.rel (0) target = $region69
    $region68: #{tpu_custom_call.1} parent=1 // pred_region
      _
    $region69: #{tpu_custom_call.1} parent=1 // pred_fallthru
      _
    // Predicated region
    $region70: #{tpu_custom_call.1} parent=1 // pred_check
      _
    $region71: #{tpu_custom_call.1} parent=1 // pred_check_branch
      %71 = sbr.rel (0) target = $region73
    $region72: #{tpu_custom_call.1} parent=1 // pred_region
      %72 = dma.done [#allocation6], 16
    $region73: #{tpu_custom_call.1} parent=1 // pred_fallthru
      _
    %73 = sfence
    %s75 = sld [smem:[#allocation4]]
    %s76 = scalar_lea.vmem %s2, %s75
    %p78 = scmp.lt.u32.totalorder 1, 8
    %p79 = pneg %p78
    // Predicated region
    $region74: #{tpu_custom_call.1} parent=1 // pred_check
      _
    $region75: #{tpu_custom_call.1} parent=1 // pred_check_branch
      %81 = sbr.rel (%p78) target = $region77
    $region76: #{tpu_custom_call.1} parent=1 // pred_region
      %s96 = sand.u32 1, 7
      %p97 = scmp.eq.s32.totalorder %s96, 0
      %p98 = pneg %p97
      // Predicated region
      $region89: #{tpu_custom_call.1} parent=76 // pred_check
        _
      $region90: #{tpu_custom_call.1} parent=76 // pred_check_branch
        %100 = sbr.rel (%p97) target = $region92
      $region91: #{tpu_custom_call.1} parent=76 // pred_region
        %s101 = sand.u32 1, 7
        %s102 = ssub.s32 1, %s101
        %s103 = scalar_lea.vmem %s76, %s102
        %s104 = ssub.s32 1, %s101
        %s105 = scalar_lea.vmem [#allocation2], %s104
        %s106 = sshllo.u32 0, %s101
        loop: start=0, step=1, limit=1
        $region93: #{tpu_custom_call.1} parent=91 // loop_pre_header
          _
        $region94: #{tpu_custom_call.1} parent=91 // loop_header
          %s108 = sphi 0, %s112
          %p109 = scmp.ge.s32.totalorder %s108, 1
          %s113 = sphi %s103, %s103
          %s114 = sphi %s105, %s105
        $region95: #{tpu_custom_call.1} parent=91 // loop_header_branch
          %111 = sbr.rel (%p109) target = $region99
        $region96: #{tpu_custom_call.1} parent=91 // loop_body
          %v115 = vld [vmem:[%s113] sm:%s106]
          %116 = vst [vmem:[%s114] sm:%s106] %v115
        $region97: #{tpu_custom_call.1} parent=91 // loop_footer
          %s112 = sadd.s32 1, %s108
        $region98: #{tpu_custom_call.1} parent=91 // loop_footer_branch
          %107 = sbr.rel target = $region94
        $region99: #{tpu_custom_call.1} parent=91 // loop_exit
          _
      $region92: #{tpu_custom_call.1} parent=76 // pred_fallthru
        _
    $region77: #{tpu_custom_call.1} parent=1 // pred_fallthru
      _
    // Predicated region
    $region78: #{tpu_custom_call.1} parent=1 // pred_check
      %p82 = pneg %p78
    $region79: #{tpu_custom_call.1} parent=1 // pred_check_branch
      %84 = sbr.rel (%p82) target = $region81
    $region80: #{tpu_custom_call.1} parent=1 // pred_region
      %s85 = sshllo.u32 0, 1
      loop: start=0, step=1, limit=1
      $region82: #{tpu_custom_call.1} parent=80 // loop_pre_header
        _
      $region83: #{tpu_custom_call.1} parent=80 // loop_header
        %s87 = sphi 0, %s91
        %p88 = scmp.ge.s32.totalorder %s87, 1
        %s92 = sphi %s76, %s76
        %s93 = sphi [#allocation2], [#allocation2]
      $region84: #{tpu_custom_call.1} parent=80 // loop_header_branch
        %90 = sbr.rel (%p88) target = $region88
      $region85: #{tpu_custom_call.1} parent=80 // loop_body
        %v94 = vld [vmem:[%s92] sm:%s85]
        %95 = vst [vmem:[%s93] sm:%s85] %v94
      $region86: #{tpu_custom_call.1} parent=80 // loop_footer
        %s91 = sadd.s32 1, %s87
      $region87: #{tpu_custom_call.1} parent=80 // loop_footer_branch
        %86 = sbr.rel target = $region83
      $region88: #{tpu_custom_call.1} parent=80 // loop_exit
        _
    $region81: #{tpu_custom_call.1} parent=1 // pred_fallthru
      _
    // Predicated region
    $region100: #{tpu_custom_call.1} parent=1 // pred_check
      _
    $region101: #{tpu_custom_call.1} parent=1 // pred_check_branch
      %119 = sbr.rel (0) target = $region103
    $region102: #{tpu_custom_call.1} parent=1 // pred_region
      %120 = vsyncadd [#allocation3], 16
    $region103: #{tpu_custom_call.1} parent=1 // pred_fallthru
      _
    %s121 = sld [smem:[#allocation4 + $0x1]]
    %s122 = scalar_lea.vmem %s2, %s121
    %s123 = scalar_lea.vmem [#allocation2], 1
    %s124 = scalar_lea.sflag [#allocation3], 1
    %p126 = scmp.lt.u32.totalorder 1, 8
    %p127 = pneg %p126
    // Predicated region
    $region104: #{tpu_custom_call.1} parent=1 // pred_check
      _
    $region105: #{tpu_custom_call.1} parent=1 // pred_check_branch
      %129 = sbr.rel (%p126) target = $region107
    $region106: #{tpu_custom_call.1} parent=1 // pred_region
      %s144 = sand.u32 1, 7
      %p145 = scmp.eq.s32.totalorder %s144, 0
      %p146 = pneg %p145
      // Predicated region
      $region119: #{tpu_custom_call.1} parent=106 // pred_check
        _
      $region120: #{tpu_custom_call.1} parent=106 // pred_check_branch
        %148 = sbr.rel (%p145) target = $region122
      $region121: #{tpu_custom_call.1} parent=106 // pred_region
        %s149 = sand.u32 1, 7
        %s150 = ssub.s32 1, %s149
        %s151 = scalar_lea.vmem %s122, %s150
        %s152 = ssub.s32 1, %s149
        %s153 = scalar_lea.vmem %s123, %s152 [#allocation2]
        %s154 = sshllo.u32 0, %s149
        loop: start=0, step=1, limit=1
        $region123: #{tpu_custom_call.1} parent=121 // loop_pre_header
          _
        $region124: #{tpu_custom_call.1} parent=121 // loop_header
          %s156 = sphi 0, %s160
          %p157 = scmp.ge.s32.totalorder %s156, 1
          %s161 = sphi %s151, %s151
          %s162 = sphi %s153, %s153
        $region125: #{tpu_custom_call.1} parent=121 // loop_header_branch
          %159 = sbr.rel (%p157) target = $region129
        $region126: #{tpu_custom_call.1} parent=121 // loop_body
          %v163 = vld [vmem:[%s161] sm:%s154]
          %164 = vst [vmem:[%s162] sm:%s154] %v163
        $region127: #{tpu_custom_call.1} parent=121 // loop_footer
          %s160 = sadd.s32 1, %s156
        $region128: #{tpu_custom_call.1} parent=121 // loop_footer_branch
          %155 = sbr.rel target = $region124
        $region129: #{tpu_custom_call.1} parent=121 // loop_exit
          _
      $region122: #{tpu_custom_call.1} parent=106 // pred_fallthru
        _
    $region107: #{tpu_custom_call.1} parent=1 // pred_fallthru
      _
    // Predicated region
    $region108: #{tpu_custom_call.1} parent=1 // pred_check
      %p130 = pneg %p126
    $region109: #{tpu_custom_call.1} parent=1 // pred_check_branch
      %132 = sbr.rel (%p130) target = $region111
    $region110: #{tpu_custom_call.1} parent=1 // pred_region
      %s133 = sshllo.u32 0, 1
      loop: start=0, step=1, limit=1
      $region112: #{tpu_custom_call.1} parent=110 // loop_pre_header
        _
      $region113: #{tpu_custom_call.1} parent=110 // loop_header
        %s135 = sphi 0, %s139
        %p136 = scmp.ge.s32.totalorder %s135, 1
        %s140 = sphi %s122, %s122
        %s141 = sphi %s123, %s123
      $region114: #{tpu_custom_call.1} parent=110 // loop_header_branch
        %138 = sbr.rel (%p136) target = $region118
      $region115: #{tpu_custom_call.1} parent=110 // loop_body
        %v142 = vld [vmem:[%s140] sm:%s133]
        %143 = vst [vmem:[%s141] sm:%s133] %v142
      $region116: #{tpu_custom_call.1} parent=110 // loop_footer
        %s139 = sadd.s32 1, %s135
      $region117: #{tpu_custom_call.1} parent=110 // loop_footer_branch
        %134 = sbr.rel target = $region113
      $region118: #{tpu_custom_call.1} parent=110 // loop_exit
        _
    $region111: #{tpu_custom_call.1} parent=1 // pred_fallthru
      _
    // Predicated region
    $region130: #{tpu_custom_call.1} parent=1 // pred_check
      _
    $region131: #{tpu_custom_call.1} parent=1 // pred_check_branch
      %167 = sbr.rel (0) target = $region133
    $region132: #{tpu_custom_call.1} parent=1 // pred_region
      %168 = vsyncadd %s124, 16
    $region133: #{tpu_custom_call.1} parent=1 // pred_fallthru
      _
    %s169 = sld [smem:[#allocation4 + $0x2]]
    %s170 = scalar_lea.vmem %s2, %s169
    %s171 = scalar_lea.vmem [#allocation2], 2
    %s172 = scalar_lea.sflag [#allocation3], 2
    %p174 = scmp.lt.u32.totalorder 1, 8
    %p175 = pneg %p174
    // Predicated region
    $region134: #{tpu_custom_call.1} parent=1 // pred_check
      _
    $region135: #{tpu_custom_call.1} parent=1 // pred_check_branch
      %177 = sbr.rel (%p174) target = $region137
    $region136: #{tpu_custom_call.1} parent=1 // pred_region
      %s192 = sand.u32 1, 7
      %p193 = scmp.eq.s32.totalorder %s192, 0
      %p194 = pneg %p193
      // Predicated region
      $region149: #{tpu_custom_call.1} parent=136 // pred_check
        _
      $region150: #{tpu_custom_call.1} parent=136 // pred_check_branch
        %196 = sbr.rel (%p193) target = $region152
      $region151: #{tpu_custom_call.1} parent=136 // pred_region
        %s197 = sand.u32 1, 7
        %s198 = ssub.s32 1, %s197
        %s199 = scalar_lea.vmem %s170, %s198
        %s200 = ssub.s32 1, %s197
        %s201 = scalar_lea.vmem %s171, %s200 [#allocation2]
        %s202 = sshllo.u32 0, %s197
        loop: start=0, step=1, limit=1
        $region153: #{tpu_custom_call.1} parent=151 // loop_pre_header
          _
        $region154: #{tpu_custom_call.1} parent=151 // loop_header
          %s204 = sphi 0, %s208
          %p205 = scmp.ge.s32.totalorder %s204, 1
          %s209 = sphi %s199, %s199
          %s210 = sphi %s201, %s201
        $region155: #{tpu_custom_call.1} parent=151 // loop_header_branch
          %207 = sbr.rel (%p205) target = $region159
        $region156: #{tpu_custom_call.1} parent=151 // loop_body
          %v211 = vld [vmem:[%s209] sm:%s202]
          %212 = vst [vmem:[%s210] sm:%s202] %v211
        $region157: #{tpu_custom_call.1} parent=151 // loop_footer
          %s208 = sadd.s32 1, %s204
        $region158: #{tpu_custom_call.1} parent=151 // loop_footer_branch
          %203 = sbr.rel target = $region154
        $region159: #{tpu_custom_call.1} parent=151 // loop_exit
          _
      $region152: #{tpu_custom_call.1} parent=136 // pred_fallthru
        _
    $region137: #{tpu_custom_call.1} parent=1 // pred_fallthru
      _
    // Predicated region
    $region138: #{tpu_custom_call.1} parent=1 // pred_check
      %p178 = pneg %p174
    $region139: #{tpu_custom_call.1} parent=1 // pred_check_branch
      %180 = sbr.rel (%p178) target = $region141
    $region140: #{tpu_custom_call.1} parent=1 // pred_region
      %s181 = sshllo.u32 0, 1
      loop: start=0, step=1, limit=1
      $region142: #{tpu_custom_call.1} parent=140 // loop_pre_header
        _
      $region143: #{tpu_custom_call.1} parent=140 // loop_header
        %s183 = sphi 0, %s187
        %p184 = scmp.ge.s32.totalorder %s183, 1
        %s188 = sphi %s170, %s170
        %s189 = sphi %s171, %s171
      $region144: #{tpu_custom_call.1} parent=140 // loop_header_branch
        %186 = sbr.rel (%p184) target = $region148
      $region145: #{tpu_custom_call.1} parent=140 // loop_body
        %v190 = vld [vmem:[%s188] sm:%s181]
        %191 = vst [vmem:[%s189] sm:%s181] %v190
      $region146: #{tpu_custom_call.1} parent=140 // loop_footer
        %s187 = sadd.s32 1, %s183
      $region147: #{tpu_custom_call.1} parent=140 // loop_footer_branch
        %182 = sbr.rel target = $region143
      $region148: #{tpu_custom_call.1} parent=140 // loop_exit
        _
    $region141: #{tpu_custom_call.1} parent=1 // pred_fallthru
      _
    // Predicated region
    $region160: #{tpu_custom_call.1} parent=1 // pred_check
      _
    $region161: #{tpu_custom_call.1} parent=1 // pred_check_branch
      %215 = sbr.rel (0) target = $region163
    $region162: #{tpu_custom_call.1} parent=1 // pred_region
      %216 = vsyncadd %s172, 16
    $region163: #{tpu_custom_call.1} parent=1 // pred_fallthru
      _
    %s217 = sld [smem:[#allocation4 + $0x3]]
    %s218 = scalar_lea.vmem %s2, %s217
    %s219 = scalar_lea.vmem [#allocation2], 3
    %s220 = scalar_lea.sflag [#allocation3], 3
    %p222 = scmp.lt.u32.totalorder 1, 8
    %p223 = pneg %p222
    // Predicated region
    $region164: #{tpu_custom_call.1} parent=1 // pred_check
      _
    $region165: #{tpu_custom_call.1} parent=1 // pred_check_branch
      %225 = sbr.rel (%p222) target = $region167
    $region166: #{tpu_custom_call.1} parent=1 // pred_region
      %s240 = sand.u32 1, 7
      %p241 = scmp.eq.s32.totalorder %s240, 0
      %p242 = pneg %p241
      // Predicated region
      $region179: #{tpu_custom_call.1} parent=166 // pred_check
        _
      $region180: #{tpu_custom_call.1} parent=166 // pred_check_branch
        %244 = sbr.rel (%p241) target = $region182
      $region181: #{tpu_custom_call.1} parent=166 // pred_region
        %s245 = sand.u32 1, 7
        %s246 = ssub.s32 1, %s245
        %s247 = scalar_lea.vmem %s218, %s246
        %s248 = ssub.s32 1, %s245
        %s249 = scalar_lea.vmem %s219, %s248 [#allocation2]
        %s250 = sshllo.u32 0, %s245
        loop: start=0, step=1, limit=1
        $region183: #{tpu_custom_call.1} parent=181 // loop_pre_header
          _
        $region184: #{tpu_custom_call.1} parent=181 // loop_header
          %s252 = sphi 0, %s256
          %p253 = scmp.ge.s32.totalorder %s252, 1
          %s257 = sphi %s247, %s247
          %s258 = sphi %s249, %s249
        $region185: #{tpu_custom_call.1} parent=181 // loop_header_branch
          %255 = sbr.rel (%p253) target = $region189
        $region186: #{tpu_custom_call.1} parent=181 // loop_body
          %v259 = vld [vmem:[%s257] sm:%s250]
          %260 = vst [vmem:[%s258] sm:%s250] %v259
        $region187: #{tpu_custom_call.1} parent=181 // loop_footer
          %s256 = sadd.s32 1, %s252
        $region188: #{tpu_custom_call.1} parent=181 // loop_footer_branch
          %251 = sbr.rel target = $region184
        $region189: #{tpu_custom_call.1} parent=181 // loop_exit
          _
      $region182: #{tpu_custom_call.1} parent=166 // pred_fallthru
        _
    $region167: #{tpu_custom_call.1} parent=1 // pred_fallthru
      _
    // Predicated region
    $region168: #{tpu_custom_call.1} parent=1 // pred_check
      %p226 = pneg %p222
    $region169: #{tpu_custom_call.1} parent=1 // pred_check_branch
      %228 = sbr.rel (%p226) target = $region171
    $region170: #{tpu_custom_call.1} parent=1 // pred_region
      %s229 = sshllo.u32 0, 1
      loop: start=0, step=1, limit=1
      $region172: #{tpu_custom_call.1} parent=170 // loop_pre_header
        _
      $region173: #{tpu_custom_call.1} parent=170 // loop_header
        %s231 = sphi 0, %s235
        %p232 = scmp.ge.s32.totalorder %s231, 1
        %s236 = sphi %s218, %s218
        %s237 = sphi %s219, %s219
      $region174: #{tpu_custom_call.1} parent=170 // loop_header_branch
        %234 = sbr.rel (%p232) target = $region178
      $region175: #{tpu_custom_call.1} parent=170 // loop_body
        %v238 = vld [vmem:[%s236] sm:%s229]
        %239 = vst [vmem:[%s237] sm:%s229] %v238
      $region176: #{tpu_custom_call.1} parent=170 // loop_footer
        %s235 = sadd.s32 1, %s231
      $region177: #{tpu_custom_call.1} parent=170 // loop_footer_branch
        %230 = sbr.rel target = $region173
      $region178: #{tpu_custom_call.1} parent=170 // loop_exit
        _
    $region171: #{tpu_custom_call.1} parent=1 // pred_fallthru
      _
    // Predicated region
    $region190: #{tpu_custom_call.1} parent=1 // pred_check
      _
    $region191: #{tpu_custom_call.1} parent=1 // pred_check_branch
      %263 = sbr.rel (0) target = $region193
    $region192: #{tpu_custom_call.1} parent=1 // pred_region
      %264 = vsyncadd %s220, 16
    $region193: #{tpu_custom_call.1} parent=1 // pred_fallthru
      _
    %s265 = sld [smem:[#allocation4 + $0x4]]
    %s266 = scalar_lea.vmem %s2, %s265
    %s267 = scalar_lea.vmem [#allocation2], 4
    %s268 = scalar_lea.sflag [#allocation3], 4
    %p270 = scmp.lt.u32.totalorder 1, 8
    %p271 = pneg %p270
    // Predicated region
    $region194: #{tpu_custom_call.1} parent=1 // pred_check
      _
    $region195: #{tpu_custom_call.1} parent=1 // pred_check_branch
      %273 = sbr.rel (%p270) target = $region197
    $region196: #{tpu_custom_call.1} parent=1 // pred_region
      %s288 = sand.u32 1, 7
      %p289 = scmp.eq.s32.totalorder %s288, 0
      %p290 = pneg %p289
      // Predicated region
      $region209: #{tpu_custom_call.1} parent=196 // pred_check
        _
      $region210: #{tpu_custom_call.1} parent=196 // pred_check_branch
        %292 = sbr.rel (%p289) target = $region212
      $region211: #{tpu_custom_call.1} parent=196 // pred_region
        %s293 = sand.u32 1, 7
        %s294 = ssub.s32 1, %s293
        %s295 = scalar_lea.vmem %s266, %s294
        %s296 = ssub.s32 1, %s293
        %s297 = scalar_lea.vmem %s267, %s296 [#allocation2]
        %s298 = sshllo.u32 0, %s293
        loop: start=0, step=1, limit=1
        $region213: #{tpu_custom_call.1} parent=211 // loop_pre_header
          _
        $region214: #{tpu_custom_call.1} parent=211 // loop_header
          %s300 = sphi 0, %s304
          %p301 = scmp.ge.s32.totalorder %s300, 1
          %s305 = sphi %s295, %s295
          %s306 = sphi %s297, %s297
        $region215: #{tpu_custom_call.1} parent=211 // loop_header_branch
          %303 = sbr.rel (%p301) target = $region219
        $region216: #{tpu_custom_call.1} parent=211 // loop_body
          %v307 = vld [vmem:[%s305] sm:%s298]
          %308 = vst [vmem:[%s306] sm:%s298] %v307
        $region217: #{tpu_custom_call.1} parent=211 // loop_footer
          %s304 = sadd.s32 1, %s300
        $region218: #{tpu_custom_call.1} parent=211 // loop_footer_branch
          %299 = sbr.rel target = $region214
        $region219: #{tpu_custom_call.1} parent=211 // loop_exit
          _
      $region212: #{tpu_custom_call.1} parent=196 // pred_fallthru
        _
    $region197: #{tpu_custom_call.1} parent=1 // pred_fallthru
      _
    // Predicated region
    $region198: #{tpu_custom_call.1} parent=1 // pred_check
      %p274 = pneg %p270
    $region199: #{tpu_custom_call.1} parent=1 // pred_check_branch
      %276 = sbr.rel (%p274) target = $region201
    $region200: #{tpu_custom_call.1} parent=1 // pred_region
      %s277 = sshllo.u32 0, 1
      loop: start=0, step=1, limit=1
      $region202: #{tpu_custom_call.1} parent=200 // loop_pre_header
        _
      $region203: #{tpu_custom_call.1} parent=200 // loop_header
        %s279 = sphi 0, %s283
        %p280 = scmp.ge.s32.totalorder %s279, 1
        %s284 = sphi %s266, %s266
        %s285 = sphi %s267, %s267
      $region204: #{tpu_custom_call.1} parent=200 // loop_header_branch
        %282 = sbr.rel (%p280) target = $region208
      $region205: #{tpu_custom_call.1} parent=200 // loop_body
        %v286 = vld [vmem:[%s284] sm:%s277]
        %287 = vst [vmem:[%s285] sm:%s277] %v286
      $region206: #{tpu_custom_call.1} parent=200 // loop_footer
        %s283 = sadd.s32 1, %s279
      $region207: #{tpu_custom_call.1} parent=200 // loop_footer_branch
        %278 = sbr.rel target = $region203
      $region208: #{tpu_custom_call.1} parent=200 // loop_exit
        _
    $region201: #{tpu_custom_call.1} parent=1 // pred_fallthru
      _
    // Predicated region
    $region220: #{tpu_custom_call.1} parent=1 // pred_check
      _
    $region221: #{tpu_custom_call.1} parent=1 // pred_check_branch
      %311 = sbr.rel (0) target = $region223
    $region222: #{tpu_custom_call.1} parent=1 // pred_region
      %312 = vsyncadd %s268, 16
    $region223: #{tpu_custom_call.1} parent=1 // pred_fallthru
      _
    %s313 = sld [smem:[#allocation4 + $0x5]]
    %s314 = scalar_lea.vmem %s2, %s313
    %s315 = scalar_lea.vmem [#allocation2], 5
    %s316 = scalar_lea.sflag [#allocation3], 5
    %p318 = scmp.lt.u32.totalorder 1, 8
    %p319 = pneg %p318
    // Predicated region
    $region224: #{tpu_custom_call.1} parent=1 // pred_check
      _
    $region225: #{tpu_custom_call.1} parent=1 // pred_check_branch
      %321 = sbr.rel (%p318) target = $region227
    $region226: #{tpu_custom_call.1} parent=1 // pred_region
      %s336 = sand.u32 1, 7
      %p337 = scmp.eq.s32.totalorder %s336, 0
      %p338 = pneg %p337
      // Predicated region
      $region239: #{tpu_custom_call.1} parent=226 // pred_check
        _
      $region240: #{tpu_custom_call.1} parent=226 // pred_check_branch
        %340 = sbr.rel (%p337) target = $region242
      $region241: #{tpu_custom_call.1} parent=226 // pred_region
        %s341 = sand.u32 1, 7
        %s342 = ssub.s32 1, %s341
        %s343 = scalar_lea.vmem %s314, %s342
        %s344 = ssub.s32 1, %s341
        %s345 = scalar_lea.vmem %s315, %s344 [#allocation2]
        %s346 = sshllo.u32 0, %s341
        loop: start=0, step=1, limit=1
        $region243: #{tpu_custom_call.1} parent=241 // loop_pre_header
          _
        $region244: #{tpu_custom_call.1} parent=241 // loop_header
          %s348 = sphi 0, %s352
          %p349 = scmp.ge.s32.totalorder %s348, 1
          %s353 = sphi %s343, %s343
          %s354 = sphi %s345, %s345
        $region245: #{tpu_custom_call.1} parent=241 // loop_header_branch
          %351 = sbr.rel (%p349) target = $region249
        $region246: #{tpu_custom_call.1} parent=241 // loop_body
          %v355 = vld [vmem:[%s353] sm:%s346]
          %356 = vst [vmem:[%s354] sm:%s346] %v355
        $region247: #{tpu_custom_call.1} parent=241 // loop_footer
          %s352 = sadd.s32 1, %s348
        $region248: #{tpu_custom_call.1} parent=241 // loop_footer_branch
          %347 = sbr.rel target = $region244
        $region249: #{tpu_custom_call.1} parent=241 // loop_exit
          _
      $region242: #{tpu_custom_call.1} parent=226 // pred_fallthru
        _
    $region227: #{tpu_custom_call.1} parent=1 // pred_fallthru
      _
    // Predicated region
    $region228: #{tpu_custom_call.1} parent=1 // pred_check
      %p322 = pneg %p318
    $region229: #{tpu_custom_call.1} parent=1 // pred_check_branch
      %324 = sbr.rel (%p322) target = $region231
    $region230: #{tpu_custom_call.1} parent=1 // pred_region
      %s325 = sshllo.u32 0, 1
      loop: start=0, step=1, limit=1
      $region232: #{tpu_custom_call.1} parent=230 // loop_pre_header
        _
      $region233: #{tpu_custom_call.1} parent=230 // loop_header
        %s327 = sphi 0, %s331
        %p328 = scmp.ge.s32.totalorder %s327, 1
        %s332 = sphi %s314, %s314
        %s333 = sphi %s315, %s315
      $region234: #{tpu_custom_call.1} parent=230 // loop_header_branch
        %330 = sbr.rel (%p328) target = $region238
      $region235: #{tpu_custom_call.1} parent=230 // loop_body
        %v334 = vld [vmem:[%s332] sm:%s325]
        %335 = vst [vmem:[%s333] sm:%s325] %v334
      $region236: #{tpu_custom_call.1} parent=230 // loop_footer
        %s331 = sadd.s32 1, %s327
      $region237: #{tpu_custom_call.1} parent=230 // loop_footer_branch
        %326 = sbr.rel target = $region233
      $region238: #{tpu_custom_call.1} parent=230 // loop_exit
        _
    $region231: #{tpu_custom_call.1} parent=1 // pred_fallthru
      _
    // Predicated region
    $region250: #{tpu_custom_call.1} parent=1 // pred_check
      _
    $region251: #{tpu_custom_call.1} parent=1 // pred_check_branch
      %359 = sbr.rel (0) target = $region253
    $region252: #{tpu_custom_call.1} parent=1 // pred_region
      %360 = vsyncadd %s316, 16
    $region253: #{tpu_custom_call.1} parent=1 // pred_fallthru
      _
    %s361 = sld [smem:[#allocation4 + $0x6]]
    %s362 = scalar_lea.vmem %s2, %s361
    %s363 = scalar_lea.vmem [#allocation2], 6
    %s364 = scalar_lea.sflag [#allocation3], 6
    %p366 = scmp.lt.u32.totalorder 1, 8
    %p367 = pneg %p366
    // Predicated region
    $region254: #{tpu_custom_call.1} parent=1 // pred_check
      _
    $region255: #{tpu_custom_call.1} parent=1 // pred_check_branch
      %369 = sbr.rel (%p366) target = $region257
    $region256: #{tpu_custom_call.1} parent=1 // pred_region
      %s384 = sand.u32 1, 7
      %p385 = scmp.eq.s32.totalorder %s384, 0
      %p386 = pneg %p385
      // Predicated region
      $region269: #{tpu_custom_call.1} parent=256 // pred_check
        _
      $region270: #{tpu_custom_call.1} parent=256 // pred_check_branch
        %388 = sbr.rel (%p385) target = $region272
      $region271: #{tpu_custom_call.1} parent=256 // pred_region
        %s389 = sand.u32 1, 7
        %s390 = ssub.s32 1, %s389
        %s391 = scalar_lea.vmem %s362, %s390
        %s392 = ssub.s32 1, %s389
        %s393 = scalar_lea.vmem %s363, %s392 [#allocation2]
        %s394 = sshllo.u32 0, %s389
        loop: start=0, step=1, limit=1
        $region273: #{tpu_custom_call.1} parent=271 // loop_pre_header
          _
        $region274: #{tpu_custom_call.1} parent=271 // loop_header
          %s396 = sphi 0, %s400
          %p397 = scmp.ge.s32.totalorder %s396, 1
          %s401 = sphi %s391, %s391
          %s402 = sphi %s393, %s393
        $region275: #{tpu_custom_call.1} parent=271 // loop_header_branch
          %399 = sbr.rel (%p397) target = $region279
        $region276: #{tpu_custom_call.1} parent=271 // loop_body
          %v403 = vld [vmem:[%s401] sm:%s394]
          %404 = vst [vmem:[%s402] sm:%s394] %v403
        $region277: #{tpu_custom_call.1} parent=271 // loop_footer
          %s400 = sadd.s32 1, %s396
        $region278: #{tpu_custom_call.1} parent=271 // loop_footer_branch
          %395 = sbr.rel target = $region274
        $region279: #{tpu_custom_call.1} parent=271 // loop_exit
          _
      $region272: #{tpu_custom_call.1} parent=256 // pred_fallthru
        _
    $region257: #{tpu_custom_call.1} parent=1 // pred_fallthru
      _
    // Predicated region
    $region258: #{tpu_custom_call.1} parent=1 // pred_check
      %p370 = pneg %p366
    $region259: #{tpu_custom_call.1} parent=1 // pred_check_branch
      %372 = sbr.rel (%p370) target = $region261
    $region260: #{tpu_custom_call.1} parent=1 // pred_region
      %s373 = sshllo.u32 0, 1
      loop: start=0, step=1, limit=1
      $region262: #{tpu_custom_call.1} parent=260 // loop_pre_header
        _
      $region263: #{tpu_custom_call.1} parent=260 // loop_header
        %s375 = sphi 0, %s379
        %p376 = scmp.ge.s32.totalorder %s375, 1
        %s380 = sphi %s362, %s362
        %s381 = sphi %s363, %s363
      $region264: #{tpu_custom_call.1} parent=260 // loop_header_branch
        %378 = sbr.rel (%p376) target = $region268
      $region265: #{tpu_custom_call.1} parent=260 // loop_body
        %v382 = vld [vmem:[%s380] sm:%s373]
        %383 = vst [vmem:[%s381] sm:%s373] %v382
      $region266: #{tpu_custom_call.1} parent=260 // loop_footer
        %s379 = sadd.s32 1, %s375
      $region267: #{tpu_custom_call.1} parent=260 // loop_footer_branch
        %374 = sbr.rel target = $region263
      $region268: #{tpu_custom_call.1} parent=260 // loop_exit
        _
    $region261: #{tpu_custom_call.1} parent=1 // pred_fallthru
      _
    // Predicated region
    $region280: #{tpu_custom_call.1} parent=1 // pred_check
      _
    $region281: #{tpu_custom_call.1} parent=1 // pred_check_branch
      %407 = sbr.rel (0) target = $region283
    $region282: #{tpu_custom_call.1} parent=1 // pred_region
      %408 = vsyncadd %s364, 16
    $region283: #{tpu_custom_call.1} parent=1 // pred_fallthru
      _
    %s409 = sld [smem:[#allocation4 + $0x7]]
    %s410 = scalar_lea.vmem %s2, %s409
    %s411 = scalar_lea.vmem [#allocation2], 7
    %s412 = scalar_lea.sflag [#allocation3], 7
    %p414 = scmp.lt.u32.totalorder 1, 8
    %p415 = pneg %p414
    // Predicated region
    $region284: #{tpu_custom_call.1} parent=1 // pred_check
      _
    $region285: #{tpu_custom_call.1} parent=1 // pred_check_branch
      %417 = sbr.rel (%p414) target = $region287
    $region286: #{tpu_custom_call.1} parent=1 // pred_region
      %s432 = sand.u32 1, 7
      %p433 = scmp.eq.s32.totalorder %s432, 0
      %p434 = pneg %p433
      // Predicated region
      $region299: #{tpu_custom_call.1} parent=286 // pred_check
        _
      $region300: #{tpu_custom_call.1} parent=286 // pred_check_branch
        %436 = sbr.rel (%p433) target = $region302
      $region301: #{tpu_custom_call.1} parent=286 // pred_region
        %s437 = sand.u32 1, 7
        %s438 = ssub.s32 1, %s437
        %s439 = scalar_lea.vmem %s410, %s438
        %s440 = ssub.s32 1, %s437
        %s441 = scalar_lea.vmem %s411, %s440 [#allocation2]
        %s442 = sshllo.u32 0, %s437
        loop: start=0, step=1, limit=1
        $region303: #{tpu_custom_call.1} parent=301 // loop_pre_header
          _
        $region304: #{tpu_custom_call.1} parent=301 // loop_header
          %s444 = sphi 0, %s448
          %p445 = scmp.ge.s32.totalorder %s444, 1
          %s449 = sphi %s439, %s439
          %s450 = sphi %s441, %s441
        $region305: #{tpu_custom_call.1} parent=301 // loop_header_branch
          %447 = sbr.rel (%p445) target = $region309
        $region306: #{tpu_custom_call.1} parent=301 // loop_body
          %v451 = vld [vmem:[%s449] sm:%s442]
          %452 = vst [vmem:[%s450] sm:%s442] %v451
        $region307: #{tpu_custom_call.1} parent=301 // loop_footer
          %s448 = sadd.s32 1, %s444
        $region308: #{tpu_custom_call.1} parent=301 // loop_footer_branch
          %443 = sbr.rel target = $region304
        $region309: #{tpu_custom_call.1} parent=301 // loop_exit
          _
      $region302: #{tpu_custom_call.1} parent=286 // pred_fallthru
        _
    $region287: #{tpu_custom_call.1} parent=1 // pred_fallthru
      _
    // Predicated region
    $region288: #{tpu_custom_call.1} parent=1 // pred_check
      %p418 = pneg %p414
    $region289: #{tpu_custom_call.1} parent=1 // pred_check_branch
      %420 = sbr.rel (%p418) target = $region291
    $region290: #{tpu_custom_call.1} parent=1 // pred_region
      %s421 = sshllo.u32 0, 1
      loop: start=0, step=1, limit=1
      $region292: #{tpu_custom_call.1} parent=290 // loop_pre_header
        _
      $region293: #{tpu_custom_call.1} parent=290 // loop_header
        %s423 = sphi 0, %s427
        %p424 = scmp.ge.s32.totalorder %s423, 1
        %s428 = sphi %s410, %s410
        %s429 = sphi %s411, %s411
      $region294: #{tpu_custom_call.1} parent=290 // loop_header_branch
        %426 = sbr.rel (%p424) target = $region298
      $region295: #{tpu_custom_call.1} parent=290 // loop_body
        %v430 = vld [vmem:[%s428] sm:%s421]
        %431 = vst [vmem:[%s429] sm:%s421] %v430
      $region296: #{tpu_custom_call.1} parent=290 // loop_footer
        %s427 = sadd.s32 1, %s423
      $region297: #{tpu_custom_call.1} parent=290 // loop_footer_branch
        %422 = sbr.rel target = $region293
      $region298: #{tpu_custom_call.1} parent=290 // loop_exit
        _
    $region291: #{tpu_custom_call.1} parent=1 // pred_fallthru
      _
    // Predicated region
    $region310: #{tpu_custom_call.1} parent=1 // pred_check
      _
    $region311: #{tpu_custom_call.1} parent=1 // pred_check_branch
      %455 = sbr.rel (0) target = $region313
    $region312: #{tpu_custom_call.1} parent=1 // pred_region
      %456 = vsyncadd %s412, 16
    $region313: #{tpu_custom_call.1} parent=1 // pred_fallthru
      _
    %s457 = sld [smem:[#allocation4 + $0x8]]
    %s458 = scalar_lea.vmem %s2, %s457
    %s459 = scalar_lea.vmem [#allocation2], 8
    %s460 = scalar_lea.sflag [#allocation3], 8
    %p462 = scmp.lt.u32.totalorder 1, 8
    %p463 = pneg %p462
    // Predicated region
    $region314: #{tpu_custom_call.1} parent=1 // pred_check
      _
    $region315: #{tpu_custom_call.1} parent=1 // pred_check_branch
      %465 = sbr.rel (%p462) target = $region317
    $region316: #{tpu_custom_call.1} parent=1 // pred_region
      %s480 = sand.u32 1, 7
      %p481 = scmp.eq.s32.totalorder %s480, 0
      %p482 = pneg %p481
      // Predicated region
      $region329: #{tpu_custom_call.1} parent=316 // pred_check
        _
      $region330: #{tpu_custom_call.1} parent=316 // pred_check_branch
        %484 = sbr.rel (%p481) target = $region332
      $region331: #{tpu_custom_call.1} parent=316 // pred_region
        %s485 = sand.u32 1, 7
        %s486 = ssub.s32 1, %s485
        %s487 = scalar_lea.vmem %s458, %s486
        %s488 = ssub.s32 1, %s485
        %s489 = scalar_lea.vmem %s459, %s488 [#allocation2]
        %s490 = sshllo.u32 0, %s485
        loop: start=0, step=1, limit=1
        $region333: #{tpu_custom_call.1} parent=331 // loop_pre_header
          _
        $region334: #{tpu_custom_call.1} parent=331 // loop_header
          %s492 = sphi 0, %s496
          %p493 = scmp.ge.s32.totalorder %s492, 1
          %s497 = sphi %s487, %s487
          %s498 = sphi %s489, %s489
        $region335: #{tpu_custom_call.1} parent=331 // loop_header_branch
          %495 = sbr.rel (%p493) target = $region339
        $region336: #{tpu_custom_call.1} parent=331 // loop_body
          %v499 = vld [vmem:[%s497] sm:%s490]
          %500 = vst [vmem:[%s498] sm:%s490] %v499
        $region337: #{tpu_custom_call.1} parent=331 // loop_footer
          %s496 = sadd.s32 1, %s492
        $region338: #{tpu_custom_call.1} parent=331 // loop_footer_branch
          %491 = sbr.rel target = $region334
        $region339: #{tpu_custom_call.1} parent=331 // loop_exit
          _
      $region332: #{tpu_custom_call.1} parent=316 // pred_fallthru
        _
    $region317: #{tpu_custom_call.1} parent=1 // pred_fallthru
      _
    // Predicated region
    $region318: #{tpu_custom_call.1} parent=1 // pred_check
      %p466 = pneg %p462
    $region319: #{tpu_custom_call.1} parent=1 // pred_check_branch
      %468 = sbr.rel (%p466) target = $region321
    $region320: #{tpu_custom_call.1} parent=1 // pred_region
      %s469 = sshllo.u32 0, 1
      loop: start=0, step=1, limit=1
      $region322: #{tpu_custom_call.1} parent=320 // loop_pre_header
        _
      $region323: #{tpu_custom_call.1} parent=320 // loop_header
        %s471 = sphi 0, %s475
        %p472 = scmp.ge.s32.totalorder %s471, 1
        %s476 = sphi %s458, %s458
        %s477 = sphi %s459, %s459
      $region324: #{tpu_custom_call.1} parent=320 // loop_header_branch
        %474 = sbr.rel (%p472) target = $region328
      $region325: #{tpu_custom_call.1} parent=320 // loop_body
        %v478 = vld [vmem:[%s476] sm:%s469]
        %479 = vst [vmem:[%s477] sm:%s469] %v478
      $region326: #{tpu_custom_call.1} parent=320 // loop_footer
        %s475 = sadd.s32 1, %s471
      $region327: #{tpu_custom_call.1} parent=320 // loop_footer_branch
        %470 = sbr.rel target = $region323
      $region328: #{tpu_custom_call.1} parent=320 // loop_exit
        _
    $region321: #{tpu_custom_call.1} parent=1 // pred_fallthru
      _
    // Predicated region
    $region340: #{tpu_custom_call.1} parent=1 // pred_check
      _
    $region341: #{tpu_custom_call.1} parent=1 // pred_check_branch
      %503 = sbr.rel (0) target = $region343
    $region342: #{tpu_custom_call.1} parent=1 // pred_region
      %504 = vsyncadd %s460, 16
    $region343: #{tpu_custom_call.1} parent=1 // pred_fallthru
      _
    %s505 = sld [smem:[#allocation4 + $0x9]]
    %s506 = scalar_lea.vmem %s2, %s505
    %s507 = scalar_lea.vmem [#allocation2], 9
    %s508 = scalar_lea.sflag [#allocation3], 9
    %p510 = scmp.lt.u32.totalorder 1, 8
    %p511 = pneg %p510
    // Predicated region
    $region344: #{tpu_custom_call.1} parent=1 // pred_check
      _
    $region345: #{tpu_custom_call.1} parent=1 // pred_check_branch
      %513 = sbr.rel (%p510) target = $region347
    $region346: #{tpu_custom_call.1} parent=1 // pred_region
      %s528 = sand.u32 1, 7
      %p529 = scmp.eq.s32.totalorder %s528, 0
      %p530 = pneg %p529
      // Predicated region
      $region359: #{tpu_custom_call.1} parent=346 // pred_check
        _
      $region360: #{tpu_custom_call.1} parent=346 // pred_check_branch
        %532 = sbr.rel (%p529) target = $region362
      $region361: #{tpu_custom_call.1} parent=346 // pred_region
        %s533 = sand.u32 1, 7
        %s534 = ssub.s32 1, %s533
        %s535 = scalar_lea.vmem %s506, %s534
        %s536 = ssub.s32 1, %s533
        %s537 = scalar_lea.vmem %s507, %s536 [#allocation2]
        %s538 = sshllo.u32 0, %s533
        loop: start=0, step=1, limit=1
        $region363: #{tpu_custom_call.1} parent=361 // loop_pre_header
          _
        $region364: #{tpu_custom_call.1} parent=361 // loop_header
          %s540 = sphi 0, %s544
          %p541 = scmp.ge.s32.totalorder %s540, 1
          %s545 = sphi %s535, %s535
          %s546 = sphi %s537, %s537
        $region365: #{tpu_custom_call.1} parent=361 // loop_header_branch
          %543 = sbr.rel (%p541) target = $region369
        $region366: #{tpu_custom_call.1} parent=361 // loop_body
          %v547 = vld [vmem:[%s545] sm:%s538]
          %548 = vst [vmem:[%s546] sm:%s538] %v547
        $region367: #{tpu_custom_call.1} parent=361 // loop_footer
          %s544 = sadd.s32 1, %s540
        $region368: #{tpu_custom_call.1} parent=361 // loop_footer_branch
          %539 = sbr.rel target = $region364
        $region369: #{tpu_custom_call.1} parent=361 // loop_exit
          _
      $region362: #{tpu_custom_call.1} parent=346 // pred_fallthru
        _
    $region347: #{tpu_custom_call.1} parent=1 // pred_fallthru
      _
    // Predicated region
    $region348: #{tpu_custom_call.1} parent=1 // pred_check
      %p514 = pneg %p510
    $region349: #{tpu_custom_call.1} parent=1 // pred_check_branch
      %516 = sbr.rel (%p514) target = $region351
    $region350: #{tpu_custom_call.1} parent=1 // pred_region
      %s517 = sshllo.u32 0, 1
      loop: start=0, step=1, limit=1
      $region352: #{tpu_custom_call.1} parent=350 // loop_pre_header
        _
      $region353: #{tpu_custom_call.1} parent=350 // loop_header
        %s519 = sphi 0, %s523
        %p520 = scmp.ge.s32.totalorder %s519, 1
        %s524 = sphi %s506, %s506
        %s525 = sphi %s507, %s507
      $region354: #{tpu_custom_call.1} parent=350 // loop_header_branch
        %522 = sbr.rel (%p520) target = $region358
      $region355: #{tpu_custom_call.1} parent=350 // loop_body
        %v526 = vld [vmem:[%s524] sm:%s517]
        %527 = vst [vmem:[%s525] sm:%s517] %v526
      $region356: #{tpu_custom_call.1} parent=350 // loop_footer
        %s523 = sadd.s32 1, %s519
      $region357: #{tpu_custom_call.1} parent=350 // loop_footer_branch
        %518 = sbr.rel target = $region353
      $region358: #{tpu_custom_call.1} parent=350 // loop_exit
        _
    $region351: #{tpu_custom_call.1} parent=1 // pred_fallthru
      _
    // Predicated region
    $region370: #{tpu_custom_call.1} parent=1 // pred_check
      _
    $region371: #{tpu_custom_call.1} parent=1 // pred_check_branch
      %551 = sbr.rel (0) target = $region373
    $region372: #{tpu_custom_call.1} parent=1 // pred_region
      %552 = vsyncadd %s508, 16
    $region373: #{tpu_custom_call.1} parent=1 // pred_fallthru
      _
    %s553 = sld [smem:[#allocation4 + $0xa]]
    %s554 = scalar_lea.vmem %s2, %s553
    %s555 = scalar_lea.vmem [#allocation2], 10
    %s556 = scalar_lea.sflag [#allocation3], 10
    %p558 = scmp.lt.u32.totalorder 1, 8
    %p559 = pneg %p558
    // Predicated region
    $region374: #{tpu_custom_call.1} parent=1 // pred_check
      _
    $region375: #{tpu_custom_call.1} parent=1 // pred_check_branch
      %561 = sbr.rel (%p558) target = $region377
    $region376: #{tpu_custom_call.1} parent=1 // pred_region
      %s576 = sand.u32 1, 7
      %p577 = scmp.eq.s32.totalorder %s576, 0
      %p578 = pneg %p577
      // Predicated region
      $region389: #{tpu_custom_call.1} parent=376 // pred_check
        _
      $region390: #{tpu_custom_call.1} parent=376 // pred_check_branch
        %580 = sbr.rel (%p577) target = $region392
      $region391: #{tpu_custom_call.1} parent=376 // pred_region
        %s581 = sand.u32 1, 7
        %s582 = ssub.s32 1, %s581
        %s583 = scalar_lea.vmem %s554, %s582
        %s584 = ssub.s32 1, %s581
        %s585 = scalar_lea.vmem %s555, %s584 [#allocation2]
        %s586 = sshllo.u32 0, %s581
        loop: start=0, step=1, limit=1
        $region393: #{tpu_custom_call.1} parent=391 // loop_pre_header
          _
        $region394: #{tpu_custom_call.1} parent=391 // loop_header
          %s588 = sphi 0, %s592
          %p589 = scmp.ge.s32.totalorder %s588, 1
          %s593 = sphi %s583, %s583
          %s594 = sphi %s585, %s585
        $region395: #{tpu_custom_call.1} parent=391 // loop_header_branch
          %591 = sbr.rel (%p589) target = $region399
        $region396: #{tpu_custom_call.1} parent=391 // loop_body
          %v595 = vld [vmem:[%s593] sm:%s586]
          %596 = vst [vmem:[%s594] sm:%s586] %v595
        $region397: #{tpu_custom_call.1} parent=391 // loop_footer
          %s592 = sadd.s32 1, %s588
        $region398: #{tpu_custom_call.1} parent=391 // loop_footer_branch
          %587 = sbr.rel target = $region394
        $region399: #{tpu_custom_call.1} parent=391 // loop_exit
          _
      $region392: #{tpu_custom_call.1} parent=376 // pred_fallthru
        _
    $region377: #{tpu_custom_call.1} parent=1 // pred_fallthru
      _
    // Predicated region
    $region378: #{tpu_custom_call.1} parent=1 // pred_check
      %p562 = pneg %p558
    $region379: #{tpu_custom_call.1} parent=1 // pred_check_branch
      %564 = sbr.rel (%p562) target = $region381
    $region380: #{tpu_custom_call.1} parent=1 // pred_region
      %s565 = sshllo.u32 0, 1
      loop: start=0, step=1, limit=1
      $region382: #{tpu_custom_call.1} parent=380 // loop_pre_header
        _
      $region383: #{tpu_custom_call.1} parent=380 // loop_header
        %s567 = sphi 0, %s571
        %p568 = scmp.ge.s32.totalorder %s567, 1
        %s572 = sphi %s554, %s554
        %s573 = sphi %s555, %s555
      $region384: #{tpu_custom_call.1} parent=380 // loop_header_branch
        %570 = sbr.rel (%p568) target = $region388
      $region385: #{tpu_custom_call.1} parent=380 // loop_body
        %v574 = vld [vmem:[%s572] sm:%s565]
        %575 = vst [vmem:[%s573] sm:%s565] %v574
      $region386: #{tpu_custom_call.1} parent=380 // loop_footer
        %s571 = sadd.s32 1, %s567
      $region387: #{tpu_custom_call.1} parent=380 // loop_footer_branch
        %566 = sbr.rel target = $region383
      $region388: #{tpu_custom_call.1} parent=380 // loop_exit
        _
    $region381: #{tpu_custom_call.1} parent=1 // pred_fallthru
      _
    // Predicated region
    $region400: #{tpu_custom_call.1} parent=1 // pred_check
      _
    $region401: #{tpu_custom_call.1} parent=1 // pred_check_branch
      %599 = sbr.rel (0) target = $region403
    $region402: #{tpu_custom_call.1} parent=1 // pred_region
      %600 = vsyncadd %s556, 16
    $region403: #{tpu_custom_call.1} parent=1 // pred_fallthru
      _
    %s601 = sld [smem:[#allocation4 + $0xb]]
    %s602 = scalar_lea.vmem %s2, %s601
    %s603 = scalar_lea.vmem [#allocation2], 11
    %s604 = scalar_lea.sflag [#allocation3], 11
    %p606 = scmp.lt.u32.totalorder 1, 8
    %p607 = pneg %p606
    // Predicated region
    $region404: #{tpu_custom_call.1} parent=1 // pred_check
      _
    $region405: #{tpu_custom_call.1} parent=1 // pred_check_branch
      %609 = sbr.rel (%p606) target = $region407
    $region406: #{tpu_custom_call.1} parent=1 // pred_region
      %s624 = sand.u32 1, 7
      %p625 = scmp.eq.s32.totalorder %s624, 0
      %p626 = pneg %p625
      // Predicated region
      $region419: #{tpu_custom_call.1} parent=406 // pred_check
        _
      $region420: #{tpu_custom_call.1} parent=406 // pred_check_branch
        %628 = sbr.rel (%p625) target = $region422
      $region421: #{tpu_custom_call.1} parent=406 // pred_region
        %s629 = sand.u32 1, 7
        %s630 = ssub.s32 1, %s629
        %s631 = scalar_lea.vmem %s602, %s630
        %s632 = ssub.s32 1, %s629
        %s633 = scalar_lea.vmem %s603, %s632 [#allocation2]
        %s634 = sshllo.u32 0, %s629
        loop: start=0, step=1, limit=1
        $region423: #{tpu_custom_call.1} parent=421 // loop_pre_header
          _
        $region424: #{tpu_custom_call.1} parent=421 // loop_header
          %s636 = sphi 0, %s640
          %p637 = scmp.ge.s32.totalorder %s636, 1
          %s641 = sphi %s631, %s631
          %s642 = sphi %s633, %s633
        $region425: #{tpu_custom_call.1} parent=421 // loop_header_branch
          %639 = sbr.rel (%p637) target = $region429
        $region426: #{tpu_custom_call.1} parent=421 // loop_body
          %v643 = vld [vmem:[%s641] sm:%s634]
          %644 = vst [vmem:[%s642] sm:%s634] %v643
        $region427: #{tpu_custom_call.1} parent=421 // loop_footer
          %s640 = sadd.s32 1, %s636
        $region428: #{tpu_custom_call.1} parent=421 // loop_footer_branch
          %635 = sbr.rel target = $region424
        $region429: #{tpu_custom_call.1} parent=421 // loop_exit
          _
      $region422: #{tpu_custom_call.1} parent=406 // pred_fallthru
        _
    $region407: #{tpu_custom_call.1} parent=1 // pred_fallthru
      _
    // Predicated region
    $region408: #{tpu_custom_call.1} parent=1 // pred_check
      %p610 = pneg %p606
    $region409: #{tpu_custom_call.1} parent=1 // pred_check_branch
      %612 = sbr.rel (%p610) target = $region411
    $region410: #{tpu_custom_call.1} parent=1 // pred_region
      %s613 = sshllo.u32 0, 1
      loop: start=0, step=1, limit=1
      $region412: #{tpu_custom_call.1} parent=410 // loop_pre_header
        _
      $region413: #{tpu_custom_call.1} parent=410 // loop_header
        %s615 = sphi 0, %s619
        %p616 = scmp.ge.s32.totalorder %s615, 1
        %s620 = sphi %s602, %s602
        %s621 = sphi %s603, %s603
      $region414: #{tpu_custom_call.1} parent=410 // loop_header_branch
        %618 = sbr.rel (%p616) target = $region418
      $region415: #{tpu_custom_call.1} parent=410 // loop_body
        %v622 = vld [vmem:[%s620] sm:%s613]
        %623 = vst [vmem:[%s621] sm:%s613] %v622
      $region416: #{tpu_custom_call.1} parent=410 // loop_footer
        %s619 = sadd.s32 1, %s615
      $region417: #{tpu_custom_call.1} parent=410 // loop_footer_branch
        %614 = sbr.rel target = $region413
      $region418: #{tpu_custom_call.1} parent=410 // loop_exit
        _
    $region411: #{tpu_custom_call.1} parent=1 // pred_fallthru
      _
    // Predicated region
    $region430: #{tpu_custom_call.1} parent=1 // pred_check
      _
    $region431: #{tpu_custom_call.1} parent=1 // pred_check_branch
      %647 = sbr.rel (0) target = $region433
    $region432: #{tpu_custom_call.1} parent=1 // pred_region
      %648 = vsyncadd %s604, 16
    $region433: #{tpu_custom_call.1} parent=1 // pred_fallthru
      _
    %s649 = sld [smem:[#allocation4 + $0xc]]
    %s650 = scalar_lea.vmem %s2, %s649
    %s651 = scalar_lea.vmem [#allocation2], 12
    %s652 = scalar_lea.sflag [#allocation3], 12
    %p654 = scmp.lt.u32.totalorder 1, 8
    %p655 = pneg %p654
    // Predicated region
    $region434: #{tpu_custom_call.1} parent=1 // pred_check
      _
    $region435: #{tpu_custom_call.1} parent=1 // pred_check_branch
      %657 = sbr.rel (%p654) target = $region437
    $region436: #{tpu_custom_call.1} parent=1 // pred_region
      %s672 = sand.u32 1, 7
      %p673 = scmp.eq.s32.totalorder %s672, 0
      %p674 = pneg %p673
      // Predicated region
      $region449: #{tpu_custom_call.1} parent=436 // pred_check
        _
      $region450: #{tpu_custom_call.1} parent=436 // pred_check_branch
        %676 = sbr.rel (%p673) target = $region452
      $region451: #{tpu_custom_call.1} parent=436 // pred_region
        %s677 = sand.u32 1, 7
        %s678 = ssub.s32 1, %s677
        %s679 = scalar_lea.vmem %s650, %s678
        %s680 = ssub.s32 1, %s677
        %s681 = scalar_lea.vmem %s651, %s680 [#allocation2]
        %s682 = sshllo.u32 0, %s677
        loop: start=0, step=1, limit=1
        $region453: #{tpu_custom_call.1} parent=451 // loop_pre_header
          _
        $region454: #{tpu_custom_call.1} parent=451 // loop_header
          %s684 = sphi 0, %s688
          %p685 = scmp.ge.s32.totalorder %s684, 1
          %s689 = sphi %s679, %s679
          %s690 = sphi %s681, %s681
        $region455: #{tpu_custom_call.1} parent=451 // loop_header_branch
          %687 = sbr.rel (%p685) target = $region459
        $region456: #{tpu_custom_call.1} parent=451 // loop_body
          %v691 = vld [vmem:[%s689] sm:%s682]
          %692 = vst [vmem:[%s690] sm:%s682] %v691
        $region457: #{tpu_custom_call.1} parent=451 // loop_footer
          %s688 = sadd.s32 1, %s684
        $region458: #{tpu_custom_call.1} parent=451 // loop_footer_branch
          %683 = sbr.rel target = $region454
        $region459: #{tpu_custom_call.1} parent=451 // loop_exit
          _
      $region452: #{tpu_custom_call.1} parent=436 // pred_fallthru
        _
    $region437: #{tpu_custom_call.1} parent=1 // pred_fallthru
      _
    // Predicated region
    $region438: #{tpu_custom_call.1} parent=1 // pred_check
      %p658 = pneg %p654
    $region439: #{tpu_custom_call.1} parent=1 // pred_check_branch
      %660 = sbr.rel (%p658) target = $region441
    $region440: #{tpu_custom_call.1} parent=1 // pred_region
      %s661 = sshllo.u32 0, 1
      loop: start=0, step=1, limit=1
      $region442: #{tpu_custom_call.1} parent=440 // loop_pre_header
        _
      $region443: #{tpu_custom_call.1} parent=440 // loop_header
        %s663 = sphi 0, %s667
        %p664 = scmp.ge.s32.totalorder %s663, 1
        %s668 = sphi %s650, %s650
        %s669 = sphi %s651, %s651
      $region444: #{tpu_custom_call.1} parent=440 // loop_header_branch
        %666 = sbr.rel (%p664) target = $region448
      $region445: #{tpu_custom_call.1} parent=440 // loop_body
        %v670 = vld [vmem:[%s668] sm:%s661]
        %671 = vst [vmem:[%s669] sm:%s661] %v670
      $region446: #{tpu_custom_call.1} parent=440 // loop_footer
        %s667 = sadd.s32 1, %s663
      $region447: #{tpu_custom_call.1} parent=440 // loop_footer_branch
        %662 = sbr.rel target = $region443
      $region448: #{tpu_custom_call.1} parent=440 // loop_exit
        _
    $region441: #{tpu_custom_call.1} parent=1 // pred_fallthru
      _
    // Predicated region
    $region460: #{tpu_custom_call.1} parent=1 // pred_check
      _
    $region461: #{tpu_custom_call.1} parent=1 // pred_check_branch
      %695 = sbr.rel (0) target = $region463
    $region462: #{tpu_custom_call.1} parent=1 // pred_region
      %696 = vsyncadd %s652, 16
    $region463: #{tpu_custom_call.1} parent=1 // pred_fallthru
      _
    %s697 = sld [smem:[#allocation4 + $0xd]]
    %s698 = scalar_lea.vmem %s2, %s697
    %s699 = scalar_lea.vmem [#allocation2], 13
    %s700 = scalar_lea.sflag [#allocation3], 13
    %p702 = scmp.lt.u32.totalorder 1, 8
    %p703 = pneg %p702
    // Predicated region
    $region464: #{tpu_custom_call.1} parent=1 // pred_check
      _
    $region465: #{tpu_custom_call.1} parent=1 // pred_check_branch
      %705 = sbr.rel (%p702) target = $region467
    $region466: #{tpu_custom_call.1} parent=1 // pred_region
      %s720 = sand.u32 1, 7
      %p721 = scmp.eq.s32.totalorder %s720, 0
      %p722 = pneg %p721
      // Predicated region
      $region479: #{tpu_custom_call.1} parent=466 // pred_check
        _
      $region480: #{tpu_custom_call.1} parent=466 // pred_check_branch
        %724 = sbr.rel (%p721) target = $region482
      $region481: #{tpu_custom_call.1} parent=466 // pred_region
        %s725 = sand.u32 1, 7
        %s726 = ssub.s32 1, %s725
        %s727 = scalar_lea.vmem %s698, %s726
        %s728 = ssub.s32 1, %s725
        %s729 = scalar_lea.vmem %s699, %s728 [#allocation2]
        %s730 = sshllo.u32 0, %s725
        loop: start=0, step=1, limit=1
        $region483: #{tpu_custom_call.1} parent=481 // loop_pre_header
          _
        $region484: #{tpu_custom_call.1} parent=481 // loop_header
          %s732 = sphi 0, %s736
          %p733 = scmp.ge.s32.totalorder %s732, 1
          %s737 = sphi %s727, %s727
          %s738 = sphi %s729, %s729
        $region485: #{tpu_custom_call.1} parent=481 // loop_header_branch
          %735 = sbr.rel (%p733) target = $region489
        $region486: #{tpu_custom_call.1} parent=481 // loop_body
          %v739 = vld [vmem:[%s737] sm:%s730]
          %740 = vst [vmem:[%s738] sm:%s730] %v739
        $region487: #{tpu_custom_call.1} parent=481 // loop_footer
          %s736 = sadd.s32 1, %s732
        $region488: #{tpu_custom_call.1} parent=481 // loop_footer_branch
          %731 = sbr.rel target = $region484
        $region489: #{tpu_custom_call.1} parent=481 // loop_exit
          _
      $region482: #{tpu_custom_call.1} parent=466 // pred_fallthru
        _
    $region467: #{tpu_custom_call.1} parent=1 // pred_fallthru
      _
    // Predicated region
    $region468: #{tpu_custom_call.1} parent=1 // pred_check
      %p706 = pneg %p702
    $region469: #{tpu_custom_call.1} parent=1 // pred_check_branch
      %708 = sbr.rel (%p706) target = $region471
    $region470: #{tpu_custom_call.1} parent=1 // pred_region
      %s709 = sshllo.u32 0, 1
      loop: start=0, step=1, limit=1
      $region472: #{tpu_custom_call.1} parent=470 // loop_pre_header
        _
      $region473: #{tpu_custom_call.1} parent=470 // loop_header
        %s711 = sphi 0, %s715
        %p712 = scmp.ge.s32.totalorder %s711, 1
        %s716 = sphi %s698, %s698
        %s717 = sphi %s699, %s699
      $region474: #{tpu_custom_call.1} parent=470 // loop_header_branch
        %714 = sbr.rel (%p712) target = $region478
      $region475: #{tpu_custom_call.1} parent=470 // loop_body
        %v718 = vld [vmem:[%s716] sm:%s709]
        %719 = vst [vmem:[%s717] sm:%s709] %v718
      $region476: #{tpu_custom_call.1} parent=470 // loop_footer
        %s715 = sadd.s32 1, %s711
      $region477: #{tpu_custom_call.1} parent=470 // loop_footer_branch
        %710 = sbr.rel target = $region473
      $region478: #{tpu_custom_call.1} parent=470 // loop_exit
        _
    $region471: #{tpu_custom_call.1} parent=1 // pred_fallthru
      _
    // Predicated region
    $region490: #{tpu_custom_call.1} parent=1 // pred_check
      _
    $region491: #{tpu_custom_call.1} parent=1 // pred_check_branch
      %743 = sbr.rel (0) target = $region493
    $region492: #{tpu_custom_call.1} parent=1 // pred_region
      %744 = vsyncadd %s700, 16
    $region493: #{tpu_custom_call.1} parent=1 // pred_fallthru
      _
    %s745 = sld [smem:[#allocation4 + $0xe]]
    %s746 = scalar_lea.vmem %s2, %s745
    %s747 = scalar_lea.vmem [#allocation2], 14
    %s748 = scalar_lea.sflag [#allocation3], 14
    %p750 = scmp.lt.u32.totalorder 1, 8
    %p751 = pneg %p750
    // Predicated region
    $region494: #{tpu_custom_call.1} parent=1 // pred_check
      _
    $region495: #{tpu_custom_call.1} parent=1 // pred_check_branch
      %753 = sbr.rel (%p750) target = $region497
    $region496: #{tpu_custom_call.1} parent=1 // pred_region
      %s768 = sand.u32 1, 7
      %p769 = scmp.eq.s32.totalorder %s768, 0
      %p770 = pneg %p769
      // Predicated region
      $region509: #{tpu_custom_call.1} parent=496 // pred_check
        _
      $region510: #{tpu_custom_call.1} parent=496 // pred_check_branch
        %772 = sbr.rel (%p769) target = $region512
      $region511: #{tpu_custom_call.1} parent=496 // pred_region
        %s773 = sand.u32 1, 7
        %s774 = ssub.s32 1, %s773
        %s775 = scalar_lea.vmem %s746, %s774
        %s776 = ssub.s32 1, %s773
        %s777 = scalar_lea.vmem %s747, %s776 [#allocation2]
        %s778 = sshllo.u32 0, %s773
        loop: start=0, step=1, limit=1
        $region513: #{tpu_custom_call.1} parent=511 // loop_pre_header
          _
        $region514: #{tpu_custom_call.1} parent=511 // loop_header
          %s780 = sphi 0, %s784
          %p781 = scmp.ge.s32.totalorder %s780, 1
          %s785 = sphi %s775, %s775
          %s786 = sphi %s777, %s777
        $region515: #{tpu_custom_call.1} parent=511 // loop_header_branch
          %783 = sbr.rel (%p781) target = $region519
        $region516: #{tpu_custom_call.1} parent=511 // loop_body
          %v787 = vld [vmem:[%s785] sm:%s778]
          %788 = vst [vmem:[%s786] sm:%s778] %v787
        $region517: #{tpu_custom_call.1} parent=511 // loop_footer
          %s784 = sadd.s32 1, %s780
        $region518: #{tpu_custom_call.1} parent=511 // loop_footer_branch
          %779 = sbr.rel target = $region514
        $region519: #{tpu_custom_call.1} parent=511 // loop_exit
          _
      $region512: #{tpu_custom_call.1} parent=496 // pred_fallthru
        _
    $region497: #{tpu_custom_call.1} parent=1 // pred_fallthru
      _
    // Predicated region
    $region498: #{tpu_custom_call.1} parent=1 // pred_check
      %p754 = pneg %p750
    $region499: #{tpu_custom_call.1} parent=1 // pred_check_branch
      %756 = sbr.rel (%p754) target = $region501
    $region500: #{tpu_custom_call.1} parent=1 // pred_region
      %s757 = sshllo.u32 0, 1
      loop: start=0, step=1, limit=1
      $region502: #{tpu_custom_call.1} parent=500 // loop_pre_header
        _
      $region503: #{tpu_custom_call.1} parent=500 // loop_header
        %s759 = sphi 0, %s763
        %p760 = scmp.ge.s32.totalorder %s759, 1
        %s764 = sphi %s746, %s746
        %s765 = sphi %s747, %s747
      $region504: #{tpu_custom_call.1} parent=500 // loop_header_branch
        %762 = sbr.rel (%p760) target = $region508
      $region505: #{tpu_custom_call.1} parent=500 // loop_body
        %v766 = vld [vmem:[%s764] sm:%s757]
        %767 = vst [vmem:[%s765] sm:%s757] %v766
      $region506: #{tpu_custom_call.1} parent=500 // loop_footer
        %s763 = sadd.s32 1, %s759
      $region507: #{tpu_custom_call.1} parent=500 // loop_footer_branch
        %758 = sbr.rel target = $region503
      $region508: #{tpu_custom_call.1} parent=500 // loop_exit
        _
    $region501: #{tpu_custom_call.1} parent=1 // pred_fallthru
      _
    // Predicated region
    $region520: #{tpu_custom_call.1} parent=1 // pred_check
      _
    $region521: #{tpu_custom_call.1} parent=1 // pred_check_branch
      %791 = sbr.rel (0) target = $region523
    $region522: #{tpu_custom_call.1} parent=1 // pred_region
      %792 = vsyncadd %s748, 16
    $region523: #{tpu_custom_call.1} parent=1 // pred_fallthru
      _
    %s793 = sld [smem:[#allocation4 + $0xf]]
    %s794 = scalar_lea.vmem %s2, %s793
    %s795 = scalar_lea.vmem [#allocation2], 15
    %s796 = scalar_lea.sflag [#allocation3], 15
    %p798 = scmp.lt.u32.totalorder 1, 8
    %p799 = pneg %p798
    // Predicated region
    $region524: #{tpu_custom_call.1} parent=1 // pred_check
      _
    $region525: #{tpu_custom_call.1} parent=1 // pred_check_branch
      %801 = sbr.rel (%p798) target = $region527
    $region526: #{tpu_custom_call.1} parent=1 // pred_region
      %s816 = sand.u32 1, 7
      %p817 = scmp.eq.s32.totalorder %s816, 0
      %p818 = pneg %p817
      // Predicated region
      $region539: #{tpu_custom_call.1} parent=526 // pred_check
        _
      $region540: #{tpu_custom_call.1} parent=526 // pred_check_branch
        %820 = sbr.rel (%p817) target = $region542
      $region541: #{tpu_custom_call.1} parent=526 // pred_region
        %s821 = sand.u32 1, 7
        %s822 = ssub.s32 1, %s821
        %s823 = scalar_lea.vmem %s794, %s822
        %s824 = ssub.s32 1, %s821
        %s825 = scalar_lea.vmem %s795, %s824 [#allocation2]
        %s826 = sshllo.u32 0, %s821
        loop: start=0, step=1, limit=1
        $region543: #{tpu_custom_call.1} parent=541 // loop_pre_header
          _
        $region544: #{tpu_custom_call.1} parent=541 // loop_header
          %s828 = sphi 0, %s832
          %p829 = scmp.ge.s32.totalorder %s828, 1
          %s833 = sphi %s823, %s823
          %s834 = sphi %s825, %s825
        $region545: #{tpu_custom_call.1} parent=541 // loop_header_branch
          %831 = sbr.rel (%p829) target = $region549
        $region546: #{tpu_custom_call.1} parent=541 // loop_body
          %v835 = vld [vmem:[%s833] sm:%s826]
          %836 = vst [vmem:[%s834] sm:%s826] %v835
        $region547: #{tpu_custom_call.1} parent=541 // loop_footer
          %s832 = sadd.s32 1, %s828
        $region548: #{tpu_custom_call.1} parent=541 // loop_footer_branch
          %827 = sbr.rel target = $region544
        $region549: #{tpu_custom_call.1} parent=541 // loop_exit
          _
      $region542: #{tpu_custom_call.1} parent=526 // pred_fallthru
        _
    $region527: #{tpu_custom_call.1} parent=1 // pred_fallthru
      _
    // Predicated region
    $region528: #{tpu_custom_call.1} parent=1 // pred_check
      %p802 = pneg %p798
    $region529: #{tpu_custom_call.1} parent=1 // pred_check_branch
      %804 = sbr.rel (%p802) target = $region531
    $region530: #{tpu_custom_call.1} parent=1 // pred_region
      %s805 = sshllo.u32 0, 1
      loop: start=0, step=1, limit=1
      $region532: #{tpu_custom_call.1} parent=530 // loop_pre_header
        _
      $region533: #{tpu_custom_call.1} parent=530 // loop_header
        %s807 = sphi 0, %s811
        %p808 = scmp.ge.s32.totalorder %s807, 1
        %s812 = sphi %s794, %s794
        %s813 = sphi %s795, %s795
      $region534: #{tpu_custom_call.1} parent=530 // loop_header_branch
        %810 = sbr.rel (%p808) target = $region538
      $region535: #{tpu_custom_call.1} parent=530 // loop_body
        %v814 = vld [vmem:[%s812] sm:%s805]
        %815 = vst [vmem:[%s813] sm:%s805] %v814
      $region536: #{tpu_custom_call.1} parent=530 // loop_footer
        %s811 = sadd.s32 1, %s807
      $region537: #{tpu_custom_call.1} parent=530 // loop_footer_branch
        %806 = sbr.rel target = $region533
      $region538: #{tpu_custom_call.1} parent=530 // loop_exit
        _
    $region531: #{tpu_custom_call.1} parent=1 // pred_fallthru
      _
    // Predicated region
    $region550: #{tpu_custom_call.1} parent=1 // pred_check
      _
    $region551: #{tpu_custom_call.1} parent=1 // pred_check_branch
      %839 = sbr.rel (0) target = $region553
    $region552: #{tpu_custom_call.1} parent=1 // pred_region
      %840 = vsyncadd %s796, 16
    $region553: #{tpu_custom_call.1} parent=1 // pred_fallthru
      _
    %s841 = smul.u32 1, 1
    %s842 = sshll.u32 %s841, 4
    %843 = dma.done [#allocation3], %s842
    %s844 = sshll.u32 %s841, 4
    %845 = dma.done %s124, %s844
    %s846 = sshll.u32 %s841, 4
    %847 = dma.done %s172, %s846
    %s848 = sshll.u32 %s841, 4
    %849 = dma.done %s220, %s848
    %s850 = sshll.u32 %s841, 4
    %851 = dma.done %s268, %s850
    %s852 = sshll.u32 %s841, 4
    %853 = dma.done %s316, %s852
    %s854 = sshll.u32 %s841, 4
    %855 = dma.done %s364, %s854
    %s856 = sshll.u32 %s841, 4
    %857 = dma.done %s412, %s856
    %s858 = sshll.u32 %s841, 4
    %859 = dma.done %s460, %s858
    %s860 = sshll.u32 %s841, 4
    %861 = dma.done %s508, %s860
    %s862 = sshll.u32 %s841, 4
    %863 = dma.done %s556, %s862
    %s864 = sshll.u32 %s841, 4
    %865 = dma.done %s604, %s864
    %s866 = sshll.u32 %s841, 4
    %867 = dma.done %s652, %s866
    %s868 = sshll.u32 %s841, 4
    %869 = dma.done %s700, %s868
    %s870 = sshll.u32 %s841, 4
    %871 = dma.done %s748, %s870
    %s872 = sshll.u32 %s841, 4
    %873 = dma.done %s796, %s872
    %v874 = vld [vmem:[#allocation2] sm:$0xff]
    %v875 = vld [vmem:[#allocation2 + $0x8] sm:$0xff]
    %v876 = vld [vmem:[%s1] sm:$0xff]
    %v877 = vld [vmem:[%s1 + $0x8] sm:$0xff]
    %v878 = vld [vmem:[%s3] sm:$0xff]
    %v879 = vld [vmem:[%s3 + $0x8] sm:$0xff]
    %v880 = vld [vmem:[%s3 + $0x10] sm:$0xff]
    %v881 = vld [vmem:[%s3 + $0x18] sm:$0xff]
    %vm882 = vcmask 261120
    %v884 = vsel %vm882, %v874, 0
    %v887 = vsel %vm882, %v875, 0
    %889 = vmatprep.subr.mxu0 0.0
    %890 = vmatpush1.msra.mxu0 %v878
    %891 = vmatprep.subr.mxu0 0.0
    %892 = vmatpush1.msra.mxu0 %v879
    %893 = vmatprep.subr.mxu0 0.0
    %894 = vmatpush1.msra.mxu0 %v880
    %895 = vmatprep.subr.mxu0 0.0
    %896 = vmatpush1.msra.mxu0 %v881
    %897 = vmatprep.subr.mxu0 0.0
    %898 = vmatpush1.msra.mxu0 0.0
    %899 = vmatprep.subr.mxu0 0.0
    %900 = vmatpush1.msra.mxu0 0.0
    %901 = vmatprep.subr.mxu0 0.0
    %902 = vmatpush1.msra.mxu0 0.0
    %903 = vmatprep.subr.mxu0 0.0
    %904 = vmatpush1.msra.mxu0 0.0
    %905 = vmatprep.subr.mxu0 0.0
    %906 = vmatpush1.msra.mxu0 0.0
    %907 = vmatprep.subr.mxu0 0.0
    %908 = vmatpush1.msra.mxu0 0.0
    %909 = vmatprep.subr.mxu0 0.0
    %910 = vmatpush1.msra.mxu0 0.0
    %911 = vmatprep.subr.mxu0 0.0
    %912 = vmatpush1.msra.mxu0 0.0
    %913 = vmatprep.subr.mxu0 0.0
    %914 = vmatpush1.msra.mxu0 0.0
    %915 = vmatprep.subr.mxu0 0.0
    %916 = vmatpush1.msra.mxu0 0.0
    %917 = vmatprep.subr.mxu0 0.0
    %918 = vmatpush1.msra.mxu0 0.0
    %919 = vmatprep.subr.mxu0 0.0
    %920 = vmatpush1.msra.mxu0 0.0
    %921 = vmatprep.subr.mxu0 0.0
    %922 = vmatpush1.msra.mxu0 0.0
    %923 = vmatprep.subr.mxu0 0.0
    %924 = vmatpush1.msra.mxu0 0.0
    %925 = vmatprep.subr.mxu0 0.0
    %926 = vmatpush1.msra.mxu0 0.0
    %927 = vmatprep.subr.mxu0 0.0
    %928 = vmatpush1.msra.mxu0 0.0
    %929 = vmatprep.subr.mxu0 0.0
    %930 = vmatpush1.msra.mxu0 0.0
    %931 = vmatprep.subr.mxu0 0.0
    %932 = vmatpush1.msra.mxu0 0.0
    %933 = vmatprep.subr.mxu0 0.0
    %934 = vmatpush1.msra.mxu0 0.0
    %935 = vmatprep.subr.mxu0 0.0
    %936 = vmatpush1.msra.mxu0 0.0
    %937 = vmatprep.subr.mxu0 0.0
    %938 = vmatpush1.msra.mxu0 0.0
    %939 = vmatprep.subr.mxu0 0.0
    %940 = vmatpush1.msra.mxu0 0.0
    %941 = vmatprep.subr.mxu0 0.0
    %942 = vmatpush1.msra.mxu0 0.0
    %943 = vmatprep.subr.mxu0 0.0
    %944 = vmatpush1.msra.mxu0 0.0
    %945 = vmatprep.subr.mxu0 0.0
    %946 = vmatpush1.msra.mxu0 0.0
    %947 = vmatprep.subr.mxu0 0.0
    %948 = vmatpush1.msra.mxu0 0.0
    %949 = vmatprep.subr.mxu0 0.0
    %950 = vmatpush1.msra.mxu0 0.0
    %951 = vmatprep.subr.mxu0 0.0
    %952 = vmatpush1.msra.mxu0 0.0
    %953 = vmatprep.mubr.f32.mxu0 0.0
    %954 = vmatmul.mubr.f32.gmra.mrb[0].mxu0 %v884
    %v955 = vpop.f32.mrb[0].mxu0
    %v956 = vadd.f32 0.0, %v955
    %v957 = vpop.f32.mrb[0].mxu0
    %958 = vmatprep.mubr.f32.mxu0 0.0
    %959 = vmatmul.mubr.f32.gmra.mrb[0].mxu0 %v887
    %v960 = vpop.f32.mrb[0].mxu0
    %v961 = vadd.f32 0.0, %v960
    %v962 = vpop.f32.mrb[0].mxu0
    %963 = vdwg.mxu0
    %v964 = vld [vmem:[%s4] sm:$0x1]
    %v966 = vlaneseq
    %v967 = vshrl.u32 %v966, 7
    %v968 = vsub.s32 0, %v967
    %v969 = vrot.slane %v964, %v968
    %vm971 = vcmask 130048
    %v973 = vsel %vm971, %v876, 0
    %v976 = vsel %vm971, %v877, 0
    %978 = vmatprep.subr.mxu0 0.0
    %979 = vmatpush1.msra.mxu0 %v956
    %980 = vmatprep.subr.mxu0 0.0
    %981 = vmatpush1.msra.mxu0 %v961
    %982 = vmatprep.subr.mxu0 0.0
    %983 = vmatpush1.msra.mxu0 0.0
    %984 = vmatprep.subr.mxu0 0.0
    %985 = vmatpush1.msra.mxu0 0.0
    %986 = vmatprep.subr.mxu0 0.0
    %987 = vmatpush1.msra.mxu0 0.0
    %988 = vmatprep.subr.mxu0 0.0
    %989 = vmatpush1.msra.mxu0 0.0
    %990 = vmatprep.subr.mxu0 0.0
    %991 = vmatpush1.msra.mxu0 0.0
    %992 = vmatprep.subr.mxu0 0.0
    %993 = vmatpush1.msra.mxu0 0.0
    %994 = vmatprep.subr.mxu0 0.0
    %995 = vmatpush1.msra.mxu0 0.0
    %996 = vmatprep.subr.mxu0 0.0
    %997 = vmatpush1.msra.mxu0 0.0
    %998 = vmatprep.subr.mxu0 0.0
    %999 = vmatpush1.msra.mxu0 0.0
    %1000 = vmatprep.subr.mxu0 0.0
    %1001 = vmatpush1.msra.mxu0 0.0
    %1002 = vmatprep.subr.mxu0 0.0
    %1003 = vmatpush1.msra.mxu0 0.0
    %1004 = vmatprep.subr.mxu0 0.0
    %1005 = vmatpush1.msra.mxu0 0.0
    %1006 = vmatprep.subr.mxu0 0.0
    %1007 = vmatpush1.msra.mxu0 0.0
    %1008 = vmatprep.subr.mxu0 0.0
    %1009 = vmatpush1.msra.mxu0 0.0
    %1010 = vmatprep.subr.mxu0 0.0
    %1011 = vmatpush1.msra.mxu0 0.0
    %1012 = vmatprep.subr.mxu0 0.0
    %1013 = vmatpush1.msra.mxu0 0.0
    %1014 = vmatprep.subr.mxu0 0.0
    %1015 = vmatpush1.msra.mxu0 0.0
    %1016 = vmatprep.subr.mxu0 0.0
    %1017 = vmatpush1.msra.mxu0 0.0
    %1018 = vmatprep.subr.mxu0 0.0
    %1019 = vmatpush1.msra.mxu0 0.0
    %1020 = vmatprep.subr.mxu0 0.0
    %1021 = vmatpush1.msra.mxu0 0.0
    %1022 = vmatprep.subr.mxu0 0.0
    %1023 = vmatpush1.msra.mxu0 0.0
    %1024 = vmatprep.subr.mxu0 0.0
    %1025 = vmatpush1.msra.mxu0 0.0
    %1026 = vmatprep.subr.mxu0 0.0
    %1027 = vmatpush1.msra.mxu0 0.0
    %1028 = vmatprep.subr.mxu0 0.0
    %1029 = vmatpush1.msra.mxu0 0.0
    %1030 = vmatprep.subr.mxu0 0.0
    %1031 = vmatpush1.msra.mxu0 0.0
    %1032 = vmatprep.subr.mxu0 0.0
    %1033 = vmatpush1.msra.mxu0 0.0
    %1034 = vmatprep.subr.mxu0 0.0
    %1035 = vmatpush1.msra.mxu0 0.0
    %1036 = vmatprep.subr.mxu0 0.0
    %1037 = vmatpush1.msra.mxu0 0.0
    %1038 = vmatprep.subr.mxu0 0.0
    %1039 = vmatpush1.msra.mxu0 0.0
    %1040 = vmatprep.subr.mxu0 0.0
    %1041 = vmatpush1.msra.mxu0 0.0
    %1042 = vmatprep.mubr.f32.mxu0 0.0
    %1043 = vmatmul.mubr.f32.gmra.mrb[0].mxu0 %v973
    %v1044 = vpop.f32.mrb[0].mxu0
    %v1045 = vadd.f32 %v969, %v1044
    %v1046 = vpop.f32.mrb[0].mxu0
    %1047 = vmatprep.mubr.f32.mxu0 0.0
    %1048 = vmatmul.mubr.f32.gmra.mrb[0].mxu0 %v976
    %v1049 = vpop.f32.mrb[0].mxu0
    %v1050 = vadd.f32 %v969, %v1049
    %v1051 = vpop.f32.mrb[0].mxu0
    %1052 = vdwg.mxu0
    %v1053 = vmax.f32 %v1045, 0.0
    %v1054 = vmax.f32 %v1050, 0.0
    %v1055 = vld [vmem:[%s5] sm:$0xff]
    %v1056 = vld [vmem:[%s5 + $0x8] sm:$0xff]
    %v1057 = vld [vmem:[%s5 + $0x10] sm:$0xff]
    %v1058 = vld [vmem:[%s5 + $0x18] sm:$0xff]
    %v1060 = vsel %vm882, %v1053, 0
    %v1063 = vsel %vm882, %v1054, 0
    %1065 = vmatprep.subr.mxu0 0.0
    %1066 = vmatpush1.msra.mxu0 %v1055
    %1067 = vmatprep.subr.mxu0 0.0
    %1068 = vmatpush1.msra.mxu0 %v1056
    %1069 = vmatprep.subr.mxu0 0.0
    %1070 = vmatpush1.msra.mxu0 %v1057
    %1071 = vmatprep.subr.mxu0 0.0
    %1072 = vmatpush1.msra.mxu0 %v1058
    %1073 = vmatprep.subr.mxu0 0.0
    %1074 = vmatpush1.msra.mxu0 0.0
    %1075 = vmatprep.subr.mxu0 0.0
    %1076 = vmatpush1.msra.mxu0 0.0
    %1077 = vmatprep.subr.mxu0 0.0
    %1078 = vmatpush1.msra.mxu0 0.0
    %1079 = vmatprep.subr.mxu0 0.0
    %1080 = vmatpush1.msra.mxu0 0.0
    %1081 = vmatprep.subr.mxu0 0.0
    %1082 = vmatpush1.msra.mxu0 0.0
    %1083 = vmatprep.subr.mxu0 0.0
    %1084 = vmatpush1.msra.mxu0 0.0
    %1085 = vmatprep.subr.mxu0 0.0
    %1086 = vmatpush1.msra.mxu0 0.0
    %1087 = vmatprep.subr.mxu0 0.0
    %1088 = vmatpush1.msra.mxu0 0.0
    %1089 = vmatprep.subr.mxu0 0.0
    %1090 = vmatpush1.msra.mxu0 0.0
    %1091 = vmatprep.subr.mxu0 0.0
    %1092 = vmatpush1.msra.mxu0 0.0
    %1093 = vmatprep.subr.mxu0 0.0
    %1094 = vmatpush1.msra.mxu0 0.0
    %1095 = vmatprep.subr.mxu0 0.0
    %1096 = vmatpush1.msra.mxu0 0.0
    %1097 = vmatprep.subr.mxu0 0.0
    %1098 = vmatpush1.msra.mxu0 0.0
    %1099 = vmatprep.subr.mxu0 0.0
    %1100 = vmatpush1.msra.mxu0 0.0
    %1101 = vmatprep.subr.mxu0 0.0
    %1102 = vmatpush1.msra.mxu0 0.0
    %1103 = vmatprep.subr.mxu0 0.0
    %1104 = vmatpush1.msra.mxu0 0.0
    %1105 = vmatprep.subr.mxu0 0.0
    %1106 = vmatpush1.msra.mxu0 0.0
    %1107 = vmatprep.subr.mxu0 0.0
    %1108 = vmatpush1.msra.mxu0 0.0
    %1109 = vmatprep.subr.mxu0 0.0
    %1110 = vmatpush1.msra.mxu0 0.0
    %1111 = vmatprep.subr.mxu0 0.0
    %1112 = vmatpush1.msra.mxu0 0.0
    %1113 = vmatprep.subr.mxu0 0.0
    %1114 = vmatpush1.msra.mxu0 0.0
    %1115 = vmatprep.subr.mxu0 0.0
    %1116 = vmatpush1.msra.mxu0 0.0
    %1117 = vmatprep.subr.mxu0 0.0
    %1118 = vmatpush1.msra.mxu0 0.0
    %1119 = vmatprep.subr.mxu0 0.0
    %1120 = vmatpush1.msra.mxu0 0.0
    %1121 = vmatprep.subr.mxu0 0.0
    %1122 = vmatpush1.msra.mxu0 0.0
    %1123 = vmatprep.subr.mxu0 0.0
    %1124 = vmatpush1.msra.mxu0 0.0
    %1125 = vmatprep.subr.mxu0 0.0
    %1126 = vmatpush1.msra.mxu0 0.0
    %1127 = vmatprep.subr.mxu0 0.0
    %1128 = vmatpush1.msra.mxu0 0.0
    %1129 = vmatprep.mubr.f32.mxu0 0.0
    %1130 = vmatmul.mubr.f32.gmra.mrb[0].mxu0 %v1060
    %v1131 = vpop.f32.mrb[0].mxu0
    %v1132 = vadd.f32 0.0, %v1131
    %v1133 = vpop.f32.mrb[0].mxu0
    %1134 = vmatprep.mubr.f32.mxu0 0.0
    %1135 = vmatmul.mubr.f32.gmra.mrb[0].mxu0 %v1063
    %v1136 = vpop.f32.mrb[0].mxu0
    %v1137 = vadd.f32 0.0, %v1136
    %v1138 = vpop.f32.mrb[0].mxu0
    %1139 = vdwg.mxu0
    %1140 = vmatprep.subr.mxu0 0.0
    %1141 = vmatpush1.msra.mxu0 %v1132
    %1142 = vmatprep.subr.mxu0 0.0
    %1143 = vmatpush1.msra.mxu0 %v1137
    %1144 = vmatprep.subr.mxu0 0.0
    %1145 = vmatpush1.msra.mxu0 0.0
    %1146 = vmatprep.subr.mxu0 0.0
    %1147 = vmatpush1.msra.mxu0 0.0
    %1148 = vmatprep.subr.mxu0 0.0
    %1149 = vmatpush1.msra.mxu0 0.0
    %1150 = vmatprep.subr.mxu0 0.0
    %1151 = vmatpush1.msra.mxu0 0.0
    %1152 = vmatprep.subr.mxu0 0.0
    %1153 = vmatpush1.msra.mxu0 0.0
    %1154 = vmatprep.subr.mxu0 0.0
    %1155 = vmatpush1.msra.mxu0 0.0
    %1156 = vmatprep.subr.mxu0 0.0
    %1157 = vmatpush1.msra.mxu0 0.0
    %1158 = vmatprep.subr.mxu0 0.0
    %1159 = vmatpush1.msra.mxu0 0.0
    %1160 = vmatprep.subr.mxu0 0.0
    %1161 = vmatpush1.msra.mxu0 0.0
    %1162 = vmatprep.subr.mxu0 0.0
    %1163 = vmatpush1.msra.mxu0 0.0
    %1164 = vmatprep.subr.mxu0 0.0
    %1165 = vmatpush1.msra.mxu0 0.0
    %1166 = vmatprep.subr.mxu0 0.0
    %1167 = vmatpush1.msra.mxu0 0.0
    %1168 = vmatprep.subr.mxu0 0.0
    %1169 = vmatpush1.msra.mxu0 0.0
    %1170 = vmatprep.subr.mxu0 0.0
    %1171 = vmatpush1.msra.mxu0 0.0
    %1172 = vmatprep.subr.mxu0 0.0
    %1173 = vmatpush1.msra.mxu0 0.0
    %1174 = vmatprep.subr.mxu0 0.0
    %1175 = vmatpush1.msra.mxu0 0.0
    %1176 = vmatprep.subr.mxu0 0.0
    %1177 = vmatpush1.msra.mxu0 0.0
    %1178 = vmatprep.subr.mxu0 0.0
    %1179 = vmatpush1.msra.mxu0 0.0
    %1180 = vmatprep.subr.mxu0 0.0
    %1181 = vmatpush1.msra.mxu0 0.0
    %1182 = vmatprep.subr.mxu0 0.0
    %1183 = vmatpush1.msra.mxu0 0.0
    %1184 = vmatprep.subr.mxu0 0.0
    %1185 = vmatpush1.msra.mxu0 0.0
    %1186 = vmatprep.subr.mxu0 0.0
    %1187 = vmatpush1.msra.mxu0 0.0
    %1188 = vmatprep.subr.mxu0 0.0
    %1189 = vmatpush1.msra.mxu0 0.0
    %1190 = vmatprep.subr.mxu0 0.0
    %1191 = vmatpush1.msra.mxu0 0.0
    %1192 = vmatprep.subr.mxu0 0.0
    %1193 = vmatpush1.msra.mxu0 0.0
    %1194 = vmatprep.subr.mxu0 0.0
    %1195 = vmatpush1.msra.mxu0 0.0
    %1196 = vmatprep.subr.mxu0 0.0
    %1197 = vmatpush1.msra.mxu0 0.0
    %1198 = vmatprep.subr.mxu0 0.0
    %1199 = vmatpush1.msra.mxu0 0.0
    %1200 = vmatprep.subr.mxu0 0.0
    %1201 = vmatpush1.msra.mxu0 0.0
    %1202 = vmatprep.subr.mxu0 0.0
    %1203 = vmatpush1.msra.mxu0 0.0
    %1204 = vmatprep.mubr.f32.mxu0 0.0
    %1205 = vmatmul.mubr.f32.gmra.mrb[0].mxu0 %v973
    %v1206 = vpop.f32.mrb[0].mxu0
    %v1207 = vadd.f32 0.0, %v1206
    %v1208 = vpop.f32.mrb[0].mxu0
    %1209 = vmatprep.mubr.f32.mxu0 0.0
    %1210 = vmatmul.mubr.f32.gmra.mrb[0].mxu0 %v976
    %v1211 = vpop.f32.mrb[0].mxu0
    %v1212 = vadd.f32 0.0, %v1211
    %v1213 = vpop.f32.mrb[0].mxu0
    %1214 = vdwg.mxu0
    %v1215 = vld [vmem:[%s8] sm:$0xf]
    %v1216 = vld [vmem:[%s8 + $0x4] sm:$0xf]
    %v1217 = vld [vmem:[%s9] sm:$0xf]
    %v1218 = vld [vmem:[%s9 + $0x4] sm:$0xf]
    %v1219 = vld [vmem:[%s9 + $0x8] sm:$0xf]
    %v1220 = vld [vmem:[%s9 + $0xc] sm:$0xf]
    %v1221 = vld [vmem:[%s9 + $0x10] sm:$0xf]
    %v1222 = vld [vmem:[%s9 + $0x14] sm:$0xf]
    %v1223 = vld [vmem:[%s9 + $0x18] sm:$0xf]
    %v1224 = vld [vmem:[%s9 + $0x1c] sm:$0xf]
    %v1227 = vunpack.c.l.b16 %v1215
    %v1228 = vunpack.c.l.b16 %v1216
    %v1229 = vpack.c.b16 %v1228, %v1227
    %v1238 = vunpack.c.l.b16 %v1217
    %v1239 = vunpack.c.l.b16 %v1218
    %v1240 = vunpack.c.l.b16 %v1219
    %v1241 = vunpack.c.l.b16 %v1220
    %v1242 = vunpack.c.l.b16 %v1221
    %v1243 = vunpack.c.l.b16 %v1222
    %v1244 = vunpack.c.l.b16 %v1223
    %v1245 = vunpack.c.l.b16 %v1224
    %v1246 = vpack.c.b16 %v1239, %v1238
    %v1247 = vpack.c.b16 %v1241, %v1240
    %v1248 = vpack.c.b16 %v1243, %v1242
    %v1249 = vpack.c.b16 %v1245, %v1244
    %vm1254 = vcmask 523264
    %v1256 = vsel %vm1254, %v1229, 0
    %1258 = vmatprep.subr.bf16.mxu0 0
    %1259 = vmatpush1.bf16.msra.mxu0 %v1246
    %1260 = vmatprep.subr.bf16.mxu0 0
    %1261 = vmatpush1.bf16.msra.mxu0 %v1247
    %1262 = vmatprep.subr.bf16.mxu0 0
    %1263 = vmatpush1.bf16.msra.mxu0 %v1248
    %1264 = vmatprep.subr.bf16.mxu0 0
    %1265 = vmatpush1.bf16.msra.mxu0 %v1249
    %1266 = vmatprep.subr.bf16.mxu0 0
    %1267 = vmatpush1.bf16.msra.mxu0 0
    %1268 = vmatprep.subr.bf16.mxu0 0
    %1269 = vmatpush1.bf16.msra.mxu0 0
    %1270 = vmatprep.subr.bf16.mxu0 0
    %1271 = vmatpush1.bf16.msra.mxu0 0
    %1272 = vmatprep.subr.bf16.mxu0 0
    %1273 = vmatpush1.bf16.msra.mxu0 0
    %1274 = vmatprep.subr.bf16.mxu0 0
    %1275 = vmatpush1.bf16.msra.mxu0 0
    %1276 = vmatprep.subr.bf16.mxu0 0
    %1277 = vmatpush1.bf16.msra.mxu0 0
    %1278 = vmatprep.subr.bf16.mxu0 0
    %1279 = vmatpush1.bf16.msra.mxu0 0
    %1280 = vmatprep.subr.bf16.mxu0 0
    %1281 = vmatpush1.bf16.msra.mxu0 0
    %1282 = vmatprep.subr.bf16.mxu0 0
    %1283 = vmatpush1.bf16.msra.mxu0 0
    %1284 = vmatprep.subr.bf16.mxu0 0
    %1285 = vmatpush1.bf16.msra.mxu0 0
    %1286 = vmatprep.subr.bf16.mxu0 0
    %1287 = vmatpush1.bf16.msra.mxu0 0
    %1288 = vmatprep.subr.bf16.mxu0 0
    %1289 = vmatpush1.bf16.msra.mxu0 0
    %1290 = vmatprep.mubr.bf16.mxu0 0
    %1291 = vmatmul.mubr.bf16.gmra.mrb[0].mxu0 %v1256
    %v1292 = vpop.f32.mrb[0].mxu0
    %v1293 = vadd.f32 0.0, %v1292
    %v1294 = vpop.f32.mrb[0].mxu0
    %v1295 = vpop.f32.mrb[0].mxu0
    %v1296 = vadd.f32 0.0, %v1295
    %v1297 = vpop.f32.mrb[0].mxu0
    %1298 = vdwg.mxu0
    %v1299 = vld [vmem:[%s10] sm:$0xff]
    %v1300 = vld [vmem:[%s10 + $0x8] sm:$0xff]
    %v1301 = vld [vmem:[%s10 + $0x10] sm:$0xff]
    %v1302 = vld [vmem:[%s10 + $0x18] sm:$0xff]
    %v1303 = vld [vmem:[%s10 + $0x20] sm:$0xff]
    %v1304 = vld [vmem:[%s10 + $0x28] sm:$0xff]
    %v1305 = vld [vmem:[%s10 + $0x30] sm:$0xff]
    %v1306 = vld [vmem:[%s10 + $0x38] sm:$0xff]
    %v1307 = vld [vmem:[%s11] sm:$0xf]
    %v1308 = vld [vmem:[%s11 + $0x4] sm:$0xf]
    %v1309 = vld [vmem:[%s11 + $0x8] sm:$0xf]
    %v1310 = vld [vmem:[%s11 + $0xc] sm:$0xf]
    %v1311 = vld [vmem:[%s11 + $0x10] sm:$0xf]
    %v1312 = vld [vmem:[%s11 + $0x14] sm:$0xf]
    %v1313 = vld [vmem:[%s11 + $0x18] sm:$0xf]
    %v1314 = vld [vmem:[%s11 + $0x1c] sm:$0xf]
    %v1315 = vld [vmem:[%s11 + $0x20] sm:$0xf]
    %v1316 = vld [vmem:[%s11 + $0x24] sm:$0xf]
    %v1317 = vld [vmem:[%s11 + $0x28] sm:$0xf]
    %v1318 = vld [vmem:[%s11 + $0x2c] sm:$0xf]
    %v1319 = vld [vmem:[%s11 + $0x30] sm:$0xf]
    %v1320 = vld [vmem:[%s11 + $0x34] sm:$0xf]
    %v1321 = vld [vmem:[%s11 + $0x38] sm:$0xf]
    %v1322 = vld [vmem:[%s11 + $0x3c] sm:$0xf]
    %v1323 = vld [vmem:[%s11 + $0x40] sm:$0xf]
    %v1324 = vld [vmem:[%s11 + $0x44] sm:$0xf]
    %v1325 = vld [vmem:[%s11 + $0x48] sm:$0xf]
    %v1326 = vld [vmem:[%s11 + $0x4c] sm:$0xf]
    %v1327 = vld [vmem:[%s11 + $0x50] sm:$0xf]
    %v1328 = vld [vmem:[%s11 + $0x54] sm:$0xf]
    %v1329 = vld [vmem:[%s11 + $0x58] sm:$0xf]
    %v1330 = vld [vmem:[%s11 + $0x5c] sm:$0xf]
    %v1331 = vld [vmem:[%s11 + $0x60] sm:$0xf]
    %v1332 = vld [vmem:[%s11 + $0x64] sm:$0xf]
    %v1333 = vld [vmem:[%s11 + $0x68] sm:$0xf]
    %v1334 = vld [vmem:[%s11 + $0x6c] sm:$0xf]
    %v1335 = vld [vmem:[%s11 + $0x70] sm:$0xf]
    %v1336 = vld [vmem:[%s11 + $0x74] sm:$0xf]
    %v1337 = vld [vmem:[%s11 + $0x78] sm:$0xf]
    %v1338 = vld [vmem:[%s11 + $0x7c] sm:$0xf]
    %v1339 = vld [vmem:[%s11 + $0x80] sm:$0xf]
    %v1340 = vld [vmem:[%s11 + $0x84] sm:$0xf]
    %v1341 = vld [vmem:[%s11 + $0x88] sm:$0xf]
    %v1342 = vld [vmem:[%s11 + $0x8c] sm:$0xf]
    %v1343 = vld [vmem:[%s11 + $0x90] sm:$0xf]
    %v1344 = vld [vmem:[%s11 + $0x94] sm:$0xf]
    %v1345 = vld [vmem:[%s11 + $0x98] sm:$0xf]
    %v1346 = vld [vmem:[%s11 + $0x9c] sm:$0xf]
    %v1347 = vld [vmem:[%s11 + $0xa0] sm:$0xf]
    %v1348 = vld [vmem:[%s11 + $0xa4] sm:$0xf]
    %v1349 = vld [vmem:[%s11 + $0xa8] sm:$0xf]
    %v1350 = vld [vmem:[%s11 + $0xac] sm:$0xf]
    %v1351 = vld [vmem:[%s11 + $0xb0] sm:$0xf]
    %v1352 = vld [vmem:[%s11 + $0xb4] sm:$0xf]
    %v1353 = vld [vmem:[%s11 + $0xb8] sm:$0xf]
    %v1354 = vld [vmem:[%s11 + $0xbc] sm:$0xf]
    %v1355 = vld [vmem:[%s11 + $0xc0] sm:$0xf]
    %v1356 = vld [vmem:[%s11 + $0xc4] sm:$0xf]
    %v1357 = vld [vmem:[%s11 + $0xc8] sm:$0xf]
    %v1358 = vld [vmem:[%s11 + $0xcc] sm:$0xf]
    %v1359 = vld [vmem:[%s11 + $0xd0] sm:$0xf]
    %v1360 = vld [vmem:[%s11 + $0xd4] sm:$0xf]
    %v1361 = vld [vmem:[%s11 + $0xd8] sm:$0xf]
    %v1362 = vld [vmem:[%s11 + $0xdc] sm:$0xf]
    %v1363 = vld [vmem:[%s11 + $0xe0] sm:$0xf]
    %v1364 = vld [vmem:[%s11 + $0xe4] sm:$0xf]
    %v1365 = vld [vmem:[%s11 + $0xe8] sm:$0xf]
    %v1366 = vld [vmem:[%s11 + $0xec] sm:$0xf]
    %v1367 = vld [vmem:[%s11 + $0xf0] sm:$0xf]
    %v1368 = vld [vmem:[%s11 + $0xf4] sm:$0xf]
    %v1369 = vld [vmem:[%s11 + $0xf8] sm:$0xf]
    %v1370 = vld [vmem:[%s11 + $0xfc] sm:$0xf]
    %v1371 = vld [vmem:[%s11 + $0x100] sm:$0xf]
    %v1372 = vld [vmem:[%s11 + $0x104] sm:$0xf]
    %v1373 = vld [vmem:[%s11 + $0x108] sm:$0xf]
    %v1374 = vld [vmem:[%s11 + $0x10c] sm:$0xf]
    %v1375 = vld [vmem:[%s11 + $0x110] sm:$0xf]
    %v1376 = vld [vmem:[%s11 + $0x114] sm:$0xf]
    %v1377 = vld [vmem:[%s11 + $0x118] sm:$0xf]
    %v1378 = vld [vmem:[%s11 + $0x11c] sm:$0xf]
    %v1379 = vld [vmem:[%s11 + $0x120] sm:$0xf]
    %v1380 = vld [vmem:[%s11 + $0x124] sm:$0xf]
    %v1381 = vld [vmem:[%s11 + $0x128] sm:$0xf]
    %v1382 = vld [vmem:[%s11 + $0x12c] sm:$0xf]
    %v1383 = vld [vmem:[%s11 + $0x130] sm:$0xf]
    %v1384 = vld [vmem:[%s11 + $0x134] sm:$0xf]
    %v1385 = vld [vmem:[%s11 + $0x138] sm:$0xf]
    %v1386 = vld [vmem:[%s11 + $0x13c] sm:$0xf]
    %v1387 = vld [vmem:[%s11 + $0x140] sm:$0xf]
    %v1388 = vld [vmem:[%s11 + $0x144] sm:$0xf]
    %v1389 = vld [vmem:[%s11 + $0x148] sm:$0xf]
    %v1390 = vld [vmem:[%s11 + $0x14c] sm:$0xf]
    %v1391 = vld [vmem:[%s11 + $0x150] sm:$0xf]
    %v1392 = vld [vmem:[%s11 + $0x154] sm:$0xf]
    %v1393 = vld [vmem:[%s11 + $0x158] sm:$0xf]
    %v1394 = vld [vmem:[%s11 + $0x15c] sm:$0xf]
    %v1395 = vld [vmem:[%s11 + $0x160] sm:$0xf]
    %v1396 = vld [vmem:[%s11 + $0x164] sm:$0xf]
    %v1397 = vld [vmem:[%s11 + $0x168] sm:$0xf]
    %v1398 = vld [vmem:[%s11 + $0x16c] sm:$0xf]
    %v1399 = vld [vmem:[%s11 + $0x170] sm:$0xf]
    %v1400 = vld [vmem:[%s11 + $0x174] sm:$0xf]
    %v1401 = vld [vmem:[%s11 + $0x178] sm:$0xf]
    %v1402 = vld [vmem:[%s11 + $0x17c] sm:$0xf]
    %v1403 = vld [vmem:[%s11 + $0x180] sm:$0xf]
    %v1404 = vld [vmem:[%s11 + $0x184] sm:$0xf]
    %v1405 = vld [vmem:[%s11 + $0x188] sm:$0xf]
    %v1406 = vld [vmem:[%s11 + $0x18c] sm:$0xf]
    %v1407 = vld [vmem:[%s11 + $0x190] sm:$0xf]
    %v1408 = vld [vmem:[%s11 + $0x194] sm:$0xf]
    %v1409 = vld [vmem:[%s11 + $0x198] sm:$0xf]
    %v1410 = vld [vmem:[%s11 + $0x19c] sm:$0xf]
    %v1411 = vld [vmem:[%s11 + $0x1a0] sm:$0xf]
    %v1412 = vld [vmem:[%s11 + $0x1a4] sm:$0xf]
    %v1413 = vld [vmem:[%s11 + $0x1a8] sm:$0xf]
    %v1414 = vld [vmem:[%s11 + $0x1ac] sm:$0xf]
    %v1415 = vld [vmem:[%s11 + $0x1b0] sm:$0xf]
    %v1416 = vld [vmem:[%s11 + $0x1b4] sm:$0xf]
    %v1417 = vld [vmem:[%s11 + $0x1b8] sm:$0xf]
    %v1418 = vld [vmem:[%s11 + $0x1bc] sm:$0xf]
    %v1419 = vld [vmem:[%s11 + $0x1c0] sm:$0xf]
    %v1420 = vld [vmem:[%s11 + $0x1c4] sm:$0xf]
    %v1421 = vld [vmem:[%s11 + $0x1c8] sm:$0xf]
    %v1422 = vld [vmem:[%s11 + $0x1cc] sm:$0xf]
    %v1423 = vld [vmem:[%s11 + $0x1d0] sm:$0xf]
    %v1424 = vld [vmem:[%s11 + $0x1d4] sm:$0xf]
    %v1425 = vld [vmem:[%s11 + $0x1d8] sm:$0xf]
    %v1426 = vld [vmem:[%s11 + $0x1dc] sm:$0xf]
    %v1427 = vld [vmem:[%s11 + $0x1e0] sm:$0xf]
    %v1428 = vld [vmem:[%s11 + $0x1e4] sm:$0xf]
    %v1429 = vld [vmem:[%s11 + $0x1e8] sm:$0xf]
    %v1430 = vld [vmem:[%s11 + $0x1ec] sm:$0xf]
    %v1431 = vld [vmem:[%s11 + $0x1f0] sm:$0xf]
    %v1440 = vunpack.c.l.b16 %v1299
    %v1441 = vunpack.c.h.b16 %v1299
    %v1442 = vunpack.c.l.b16 %v1300
    %v1443 = vunpack.c.h.b16 %v1300
    %v1444 = vunpack.c.l.b16 %v1301
    %v1445 = vunpack.c.h.b16 %v1301
    %v1446 = vunpack.c.l.b16 %v1302
    %v1447 = vunpack.c.h.b16 %v1302
    %v1448 = vunpack.c.l.b16 %v1303
    %v1449 = vunpack.c.h.b16 %v1303
    %v1450 = vunpack.c.l.b16 %v1304
    %v1451 = vunpack.c.h.b16 %v1304
    %v1452 = vunpack.c.l.b16 %v1305
    %v1453 = vunpack.c.h.b16 %v1305
    %v1454 = vunpack.c.l.b16 %v1306
    %v1455 = vunpack.c.h.b16 %v1306
    %v1456 = vpack.c.b16 %v1448, %v1440
    %v1457 = vpack.c.b16 %v1449, %v1441
    %v1458 = vpack.c.b16 %v1450, %v1442
    %v1459 = vpack.c.b16 %v1451, %v1443
    %v1460 = vpack.c.b16 %v1452, %v1444
    %v1461 = vpack.c.b16 %v1453, %v1445
    %v1462 = vpack.c.b16 %v1454, %v1446
    %v1463 = vpack.c.b16 %v1455, %v1447
    %v1596 = vunpack.c.l.b16 %v1307
    %v1597 = vunpack.c.l.b16 %v1308
    %v1598 = vunpack.c.l.b16 %v1309
    %v1599 = vunpack.c.l.b16 %v1310
    %v1600 = vunpack.c.l.b16 %v1311
    %v1601 = vunpack.c.l.b16 %v1312
    %v1602 = vunpack.c.l.b16 %v1313
    %v1603 = vunpack.c.l.b16 %v1314
    %v1604 = vunpack.c.l.b16 %v1315
    %v1605 = vunpack.c.l.b16 %v1316
    %v1606 = vunpack.c.l.b16 %v1317
    %v1607 = vunpack.c.l.b16 %v1318
    %v1608 = vunpack.c.l.b16 %v1319
    %v1609 = vunpack.c.l.b16 %v1320
    %v1610 = vunpack.c.l.b16 %v1321
    %v1611 = vunpack.c.l.b16 %v1322
    %v1612 = vunpack.c.l.b16 %v1323
    %v1613 = vunpack.c.l.b16 %v1324
    %v1614 = vunpack.c.l.b16 %v1325
    %v1615 = vunpack.c.l.b16 %v1326
    %v1616 = vunpack.c.l.b16 %v1327
    %v1617 = vunpack.c.l.b16 %v1328
    %v1618 = vunpack.c.l.b16 %v1329
    %v1619 = vunpack.c.l.b16 %v1330
    %v1620 = vunpack.c.l.b16 %v1331
    %v1621 = vunpack.c.l.b16 %v1332
    %v1622 = vunpack.c.l.b16 %v1333
    %v1623 = vunpack.c.l.b16 %v1334
    %v1624 = vunpack.c.l.b16 %v1335
    %v1625 = vunpack.c.l.b16 %v1336
    %v1626 = vunpack.c.l.b16 %v1337
    %v1627 = vunpack.c.l.b16 %v1338
    %v1628 = vunpack.c.l.b16 %v1339
    %v1629 = vunpack.c.l.b16 %v1340
    %v1630 = vunpack.c.l.b16 %v1341
    %v1631 = vunpack.c.l.b16 %v1342
    %v1632 = vunpack.c.l.b16 %v1343
    %v1633 = vunpack.c.l.b16 %v1344
    %v1634 = vunpack.c.l.b16 %v1345
    %v1635 = vunpack.c.l.b16 %v1346
    %v1636 = vunpack.c.l.b16 %v1347
    %v1637 = vunpack.c.l.b16 %v1348
    %v1638 = vunpack.c.l.b16 %v1349
    %v1639 = vunpack.c.l.b16 %v1350
    %v1640 = vunpack.c.l.b16 %v1351
    %v1641 = vunpack.c.l.b16 %v1352
    %v1642 = vunpack.c.l.b16 %v1353
    %v1643 = vunpack.c.l.b16 %v1354
    %v1644 = vunpack.c.l.b16 %v1355
    %v1645 = vunpack.c.l.b16 %v1356
    %v1646 = vunpack.c.l.b16 %v1357
    %v1647 = vunpack.c.l.b16 %v1358
    %v1648 = vunpack.c.l.b16 %v1359
    %v1649 = vunpack.c.l.b16 %v1360
    %v1650 = vunpack.c.l.b16 %v1361
    %v1651 = vunpack.c.l.b16 %v1362
    %v1652 = vunpack.c.l.b16 %v1363
    %v1653 = vunpack.c.l.b16 %v1364
    %v1654 = vunpack.c.l.b16 %v1365
    %v1655 = vunpack.c.l.b16 %v1366
    %v1656 = vunpack.c.l.b16 %v1367
    %v1657 = vunpack.c.l.b16 %v1368
    %v1658 = vunpack.c.l.b16 %v1369
    %v1659 = vunpack.c.l.b16 %v1370
    %v1660 = vunpack.c.l.b16 %v1371
    %v1661 = vunpack.c.l.b16 %v1372
    %v1662 = vunpack.c.l.b16 %v1373
    %v1663 = vunpack.c.l.b16 %v1374
    %v1664 = vunpack.c.l.b16 %v1375
    %v1665 = vunpack.c.l.b16 %v1376
    %v1666 = vunpack.c.l.b16 %v1377
    %v1667 = vunpack.c.l.b16 %v1378
    %v1668 = vunpack.c.l.b16 %v1379
    %v1669 = vunpack.c.l.b16 %v1380
    %v1670 = vunpack.c.l.b16 %v1381
    %v1671 = vunpack.c.l.b16 %v1382
    %v1672 = vunpack.c.l.b16 %v1383
    %v1673 = vunpack.c.l.b16 %v1384
    %v1674 = vunpack.c.l.b16 %v1385
    %v1675 = vunpack.c.l.b16 %v1386
    %v1676 = vunpack.c.l.b16 %v1387
    %v1677 = vunpack.c.l.b16 %v1388
    %v1678 = vunpack.c.l.b16 %v1389
    %v1679 = vunpack.c.l.b16 %v1390
    %v1680 = vunpack.c.l.b16 %v1391
    %v1681 = vunpack.c.l.b16 %v1392
    %v1682 = vunpack.c.l.b16 %v1393
    %v1683 = vunpack.c.l.b16 %v1394
    %v1684 = vunpack.c.l.b16 %v1395
    %v1685 = vunpack.c.l.b16 %v1396
    %v1686 = vunpack.c.l.b16 %v1397
    %v1687 = vunpack.c.l.b16 %v1398
    %v1688 = vunpack.c.l.b16 %v1399
    %v1689 = vunpack.c.l.b16 %v1400
    %v1690 = vunpack.c.l.b16 %v1401
    %v1691 = vunpack.c.l.b16 %v1402
    %v1692 = vunpack.c.l.b16 %v1403
    %v1693 = vunpack.c.l.b16 %v1404
    %v1694 = vunpack.c.l.b16 %v1405
    %v1695 = vunpack.c.l.b16 %v1406
    %v1696 = vunpack.c.l.b16 %v1407
    %v1697 = vunpack.c.l.b16 %v1408
    %v1698 = vunpack.c.l.b16 %v1409
    %v1699 = vunpack.c.l.b16 %v1410
    %v1700 = vunpack.c.l.b16 %v1411
    %v1701 = vunpack.c.l.b16 %v1412
    %v1702 = vunpack.c.l.b16 %v1413
    %v1703 = vunpack.c.l.b16 %v1414
    %v1704 = vunpack.c.l.b16 %v1415
    %v1705 = vunpack.c.l.b16 %v1416
    %v1706 = vunpack.c.l.b16 %v1417
    %v1707 = vunpack.c.l.b16 %v1418
    %v1708 = vunpack.c.l.b16 %v1419
    %v1709 = vunpack.c.l.b16 %v1420
    %v1710 = vunpack.c.l.b16 %v1421
    %v1711 = vunpack.c.l.b16 %v1422
    %v1712 = vunpack.c.l.b16 %v1423
    %v1713 = vunpack.c.l.b16 %v1424
    %v1714 = vunpack.c.l.b16 %v1425
    %v1715 = vunpack.c.l.b16 %v1426
    %v1716 = vunpack.c.l.b16 %v1427
    %v1717 = vunpack.c.l.b16 %v1428
    %v1718 = vunpack.c.l.b16 %v1429
    %v1719 = vunpack.c.l.b16 %v1430
    %v1720 = vunpack.c.l.b16 %v1431
    %v1721 = vpack.c.b16 %v1597, %v1596
    %v1722 = vpack.c.b16 %v1599, %v1598
    %v1723 = vpack.c.b16 %v1601, %v1600
    %v1724 = vpack.c.b16 %v1603, %v1602
    %v1725 = vpack.c.b16 %v1605, %v1604
    %v1726 = vpack.c.b16 %v1607, %v1606
    %v1727 = vpack.c.b16 %v1609, %v1608
    %v1728 = vpack.c.b16 %v1611, %v1610
    %v1729 = vpack.c.b16 %v1613, %v1612
    %v1730 = vpack.c.b16 %v1615, %v1614
    %v1731 = vpack.c.b16 %v1617, %v1616
    %v1732 = vpack.c.b16 %v1619, %v1618
    %v1733 = vpack.c.b16 %v1621, %v1620
    %v1734 = vpack.c.b16 %v1623, %v1622
    %v1735 = vpack.c.b16 %v1625, %v1624
    %v1736 = vpack.c.b16 %v1627, %v1626
    %v1737 = vpack.c.b16 %v1629, %v1628
    %v1738 = vpack.c.b16 %v1631, %v1630
    %v1739 = vpack.c.b16 %v1633, %v1632
    %v1740 = vpack.c.b16 %v1635, %v1634
    %v1741 = vpack.c.b16 %v1637, %v1636
    %v1742 = vpack.c.b16 %v1639, %v1638
    %v1743 = vpack.c.b16 %v1641, %v1640
    %v1744 = vpack.c.b16 %v1643, %v1642
    %v1745 = vpack.c.b16 %v1645, %v1644
    %v1746 = vpack.c.b16 %v1647, %v1646
    %v1747 = vpack.c.b16 %v1649, %v1648
    %v1748 = vpack.c.b16 %v1651, %v1650
    %v1749 = vpack.c.b16 %v1653, %v1652
    %v1750 = vpack.c.b16 %v1655, %v1654
    %v1751 = vpack.c.b16 %v1657, %v1656
    %v1752 = vpack.c.b16 %v1659, %v1658
    %v1753 = vpack.c.b16 %v1661, %v1660
    %v1754 = vpack.c.b16 %v1663, %v1662
    %v1755 = vpack.c.b16 %v1665, %v1664
    %v1756 = vpack.c.b16 %v1667, %v1666
    %v1757 = vpack.c.b16 %v1669, %v1668
    %v1758 = vpack.c.b16 %v1671, %v1670
    %v1759 = vpack.c.b16 %v1673, %v1672
    %v1760 = vpack.c.b16 %v1675, %v1674
    %v1761 = vpack.c.b16 %v1677, %v1676
    %v1762 = vpack.c.b16 %v1679, %v1678
    %v1763 = vpack.c.b16 %v1681, %v1680
    %v1764 = vpack.c.b16 %v1683, %v1682
    %v1765 = vpack.c.b16 %v1685, %v1684
    %v1766 = vpack.c.b16 %v1687, %v1686
    %v1767 = vpack.c.b16 %v1689, %v1688
    %v1768 = vpack.c.b16 %v1691, %v1690
    %v1769 = vpack.c.b16 %v1693, %v1692
    %v1770 = vpack.c.b16 %v1695, %v1694
    %v1771 = vpack.c.b16 %v1697, %v1696
    %v1772 = vpack.c.b16 %v1699, %v1698
    %v1773 = vpack.c.b16 %v1701, %v1700
    %v1774 = vpack.c.b16 %v1703, %v1702
    %v1775 = vpack.c.b16 %v1705, %v1704
    %v1776 = vpack.c.b16 %v1707, %v1706
    %v1777 = vpack.c.b16 %v1709, %v1708
    %v1778 = vpack.c.b16 %v1711, %v1710
    %v1779 = vpack.c.b16 %v1713, %v1712
    %v1780 = vpack.c.b16 %v1715, %v1714
    %v1781 = vpack.c.b16 %v1717, %v1716
    %v1782 = vpack.c.b16 %v1719, %v1718
    %v1783 = vpack.c.b16 %v1720, %v1720
    %vm1846 = vcmask 850944
    %v1848 = vsel %vm1846, %v1463, 0
    %vm1850 = vcmask 1043456
    %v1852 = vsel %vm1850, %v1783, 0
    %1854 = vmatprep.subr.bf16.mxu0 0
    %1855 = vmatpush1.bf16.msra.mxu0 %v1721
    %1856 = vmatprep.subr.bf16.mxu0 0
    %1857 = vmatpush1.bf16.msra.mxu0 %v1722
    %1858 = vmatprep.subr.bf16.mxu0 0
    %1859 = vmatpush1.bf16.msra.mxu0 %v1723
    %1860 = vmatprep.subr.bf16.mxu0 0
    %1861 = vmatpush1.bf16.msra.mxu0 %v1724
    %1862 = vmatprep.subr.bf16.mxu0 0
    %1863 = vmatpush1.bf16.msra.mxu0 %v1725
    %1864 = vmatprep.subr.bf16.mxu0 0
    %1865 = vmatpush1.bf16.msra.mxu0 %v1726
    %1866 = vmatprep.subr.bf16.mxu0 0
    %1867 = vmatpush1.bf16.msra.mxu0 %v1727
    %1868 = vmatprep.subr.bf16.mxu0 0
    %1869 = vmatpush1.bf16.msra.mxu0 %v1728
    %1870 = vmatprep.subr.bf16.mxu0 0
    %1871 = vmatpush1.bf16.msra.mxu0 %v1729
    %1872 = vmatprep.subr.bf16.mxu0 0
    %1873 = vmatpush1.bf16.msra.mxu0 %v1730
    %1874 = vmatprep.subr.bf16.mxu0 0
    %1875 = vmatpush1.bf16.msra.mxu0 %v1731
    %1876 = vmatprep.subr.bf16.mxu0 0
    %1877 = vmatpush1.bf16.msra.mxu0 %v1732
    %1878 = vmatprep.subr.bf16.mxu0 0
    %1879 = vmatpush1.bf16.msra.mxu0 %v1733
    %1880 = vmatprep.subr.bf16.mxu0 0
    %1881 = vmatpush1.bf16.msra.mxu0 %v1734
    %1882 = vmatprep.subr.bf16.mxu0 0
    %1883 = vmatpush1.bf16.msra.mxu0 %v1735
    %1884 = vmatprep.subr.bf16.mxu0 0
    %1885 = vmatpush1.bf16.msra.mxu0 %v1736
    %1886 = vmatprep.mubr.bf16.mxu0 %v1457
    %1887 = vmatmul.mubr.bf16.gmra.mrb[0].mxu0 %v1456
    %v1888 = vpop.f32.mrb[0].mxu0
    %v1889 = vadd.f32 0.0, %v1888
    %v1890 = vpop.f32.mrb[0].mxu0
    %v1891 = vpop.f32.mrb[0].mxu0
    %v1892 = vadd.f32 0.0, %v1891
    %v1893 = vpop.f32.mrb[0].mxu0
    %1894 = vdwg.mxu0
    %1895 = vmatprep.subr.bf16.mxu0 0
    %1896 = vmatpush1.bf16.msra.mxu0 %v1737
    %1897 = vmatprep.subr.bf16.mxu0 0
    %1898 = vmatpush1.bf16.msra.mxu0 %v1738
    %1899 = vmatprep.subr.bf16.mxu0 0
    %1900 = vmatpush1.bf16.msra.mxu0 %v1739
    %1901 = vmatprep.subr.bf16.mxu0 0
    %1902 = vmatpush1.bf16.msra.mxu0 %v1740
    %1903 = vmatprep.subr.bf16.mxu0 0
    %1904 = vmatpush1.bf16.msra.mxu0 %v1741
    %1905 = vmatprep.subr.bf16.mxu0 0
    %1906 = vmatpush1.bf16.msra.mxu0 %v1742
    %1907 = vmatprep.subr.bf16.mxu0 0
    %1908 = vmatpush1.bf16.msra.mxu0 %v1743
    %1909 = vmatprep.subr.bf16.mxu0 0
    %1910 = vmatpush1.bf16.msra.mxu0 %v1744
    %1911 = vmatprep.subr.bf16.mxu0 0
    %1912 = vmatpush1.bf16.msra.mxu0 %v1745
    %1913 = vmatprep.subr.bf16.mxu0 0
    %1914 = vmatpush1.bf16.msra.mxu0 %v1746
    %1915 = vmatprep.subr.bf16.mxu0 0
    %1916 = vmatpush1.bf16.msra.mxu0 %v1747
    %1917 = vmatprep.subr.bf16.mxu0 0
    %1918 = vmatpush1.bf16.msra.mxu0 %v1748
    %1919 = vmatprep.subr.bf16.mxu0 0
    %1920 = vmatpush1.bf16.msra.mxu0 %v1749
    %1921 = vmatprep.subr.bf16.mxu0 0
    %1922 = vmatpush1.bf16.msra.mxu0 %v1750
    %1923 = vmatprep.subr.bf16.mxu0 0
    %1924 = vmatpush1.bf16.msra.mxu0 %v1751
    %1925 = vmatprep.subr.bf16.mxu0 0
    %1926 = vmatpush1.bf16.msra.mxu0 %v1752
    %1927 = vmatprep.mubr.bf16.mxu0 %v1459
    %1928 = vmatmul.mubr.bf16.gmra.mrb[0].mxu0 %v1458
    %v1929 = vpop.f32.mrb[0].mxu0
    %v1930 = vadd.f32 %v1889, %v1929
    %v1931 = vpop.f32.mrb[0].mxu0
    %v1932 = vpop.f32.mrb[0].mxu0
    %v1933 = vadd.f32 %v1892, %v1932
    %v1934 = vpop.f32.mrb[0].mxu0
    %1935 = vdwg.mxu0
    %1936 = vmatprep.subr.bf16.mxu0 0
    %1937 = vmatpush1.bf16.msra.mxu0 %v1753
    %1938 = vmatprep.subr.bf16.mxu0 0
    %1939 = vmatpush1.bf16.msra.mxu0 %v1754
    %1940 = vmatprep.subr.bf16.mxu0 0
    %1941 = vmatpush1.bf16.msra.mxu0 %v1755
    %1942 = vmatprep.subr.bf16.mxu0 0
    %1943 = vmatpush1.bf16.msra.mxu0 %v1756
    %1944 = vmatprep.subr.bf16.mxu0 0
    %1945 = vmatpush1.bf16.msra.mxu0 %v1757
    %1946 = vmatprep.subr.bf16.mxu0 0
    %1947 = vmatpush1.bf16.msra.mxu0 %v1758
    %1948 = vmatprep.subr.bf16.mxu0 0
    %1949 = vmatpush1.bf16.msra.mxu0 %v1759
    %1950 = vmatprep.subr.bf16.mxu0 0
    %1951 = vmatpush1.bf16.msra.mxu0 %v1760
    %1952 = vmatprep.subr.bf16.mxu0 0
    %1953 = vmatpush1.bf16.msra.mxu0 %v1761
    %1954 = vmatprep.subr.bf16.mxu0 0
    %1955 = vmatpush1.bf16.msra.mxu0 %v1762
    %1956 = vmatprep.subr.bf16.mxu0 0
    %1957 = vmatpush1.bf16.msra.mxu0 %v1763
    %1958 = vmatprep.subr.bf16.mxu0 0
    %1959 = vmatpush1.bf16.msra.mxu0 %v1764
    %1960 = vmatprep.subr.bf16.mxu0 0
    %1961 = vmatpush1.bf16.msra.mxu0 %v1765
    %1962 = vmatprep.subr.bf16.mxu0 0
    %1963 = vmatpush1.bf16.msra.mxu0 %v1766
    %1964 = vmatprep.subr.bf16.mxu0 0
    %1965 = vmatpush1.bf16.msra.mxu0 %v1767
    %1966 = vmatprep.subr.bf16.mxu0 0
    %1967 = vmatpush1.bf16.msra.mxu0 %v1768
    %1968 = vmatprep.mubr.bf16.mxu0 %v1461
    %1969 = vmatmul.mubr.bf16.gmra.mrb[0].mxu0 %v1460
    %v1970 = vpop.f32.mrb[0].mxu0
    %v1971 = vadd.f32 %v1930, %v1970
    %v1972 = vpop.f32.mrb[0].mxu0
    %v1973 = vpop.f32.mrb[0].mxu0
    %v1974 = vadd.f32 %v1933, %v1973
    %v1975 = vpop.f32.mrb[0].mxu0
    %1976 = vdwg.mxu0
    %1977 = vmatprep.subr.bf16.mxu0 0
    %1978 = vmatpush1.bf16.msra.mxu0 %v1769
    %1979 = vmatprep.subr.bf16.mxu0 0
    %1980 = vmatpush1.bf16.msra.mxu0 %v1770
    %1981 = vmatprep.subr.bf16.mxu0 0
    %1982 = vmatpush1.bf16.msra.mxu0 %v1771
    %1983 = vmatprep.subr.bf16.mxu0 0
    %1984 = vmatpush1.bf16.msra.mxu0 %v1772
    %1985 = vmatprep.subr.bf16.mxu0 0
    %1986 = vmatpush1.bf16.msra.mxu0 %v1773
    %1987 = vmatprep.subr.bf16.mxu0 0
    %1988 = vmatpush1.bf16.msra.mxu0 %v1774
    %1989 = vmatprep.subr.bf16.mxu0 0
    %1990 = vmatpush1.bf16.msra.mxu0 %v1775
    %1991 = vmatprep.subr.bf16.mxu0 0
    %1992 = vmatpush1.bf16.msra.mxu0 %v1776
    %1993 = vmatprep.subr.bf16.mxu0 0
    %1994 = vmatpush1.bf16.msra.mxu0 %v1777
    %1995 = vmatprep.subr.bf16.mxu0 0
    %1996 = vmatpush1.bf16.msra.mxu0 %v1778
    %1997 = vmatprep.subr.bf16.mxu0 0
    %1998 = vmatpush1.bf16.msra.mxu0 %v1779
    %1999 = vmatprep.subr.bf16.mxu0 0
    %2000 = vmatpush1.bf16.msra.mxu0 %v1780
    %2001 = vmatprep.subr.bf16.mxu0 0
    %2002 = vmatpush1.bf16.msra.mxu0 %v1781
    %2003 = vmatprep.subr.bf16.mxu0 0
    %2004 = vmatpush1.bf16.msra.mxu0 %v1782
    %2005 = vmatprep.subr.bf16.mxu0 0
    %2006 = vmatpush1.bf16.msra.mxu0 %v1852
    %2007 = vmatprep.subr.bf16.mxu0 0
    %2008 = vmatpush1.bf16.msra.mxu0 0
    %2009 = vmatprep.mubr.bf16.mxu0 %v1848
    %2010 = vmatmul.mubr.bf16.gmra.mrb[0].mxu0 %v1462
    %v2011 = vpop.f32.mrb[0].mxu0
    %v2012 = vadd.f32 %v1971, %v2011
    %v2013 = vpop.f32.mrb[0].mxu0
    %v2014 = vpop.f32.mrb[0].mxu0
    %v2015 = vadd.f32 %v1974, %v2014
    %v2016 = vpop.f32.mrb[0].mxu0
    %2017 = vdwg.mxu0
    %v2018 = vld [vmem:[%s12] sm:$0xff]
    %v2019 = vld [vmem:[%s12 + $0x8] sm:$0xff]
    %v2020 = vld [vmem:[%s12 + $0x10] sm:$0xff]
    %v2021 = vld [vmem:[%s12 + $0x18] sm:$0xff]
    %v2022 = vld [vmem:[%s12 + $0x20] sm:$0xff]
    %v2023 = vld [vmem:[%s12 + $0x28] sm:$0xff]
    %v2024 = vld [vmem:[%s12 + $0x30] sm:$0xff]
    %v2025 = vld [vmem:[%s12 + $0x38] sm:$0xff]
    %v2026 = vld [vmem:[%s13] sm:$0xf]
    %v2027 = vld [vmem:[%s13 + $0x4] sm:$0xf]
    %v2028 = vld [vmem:[%s13 + $0x8] sm:$0xf]
    %v2029 = vld [vmem:[%s13 + $0xc] sm:$0xf]
    %v2030 = vld [vmem:[%s13 + $0x10] sm:$0xf]
    %v2031 = vld [vmem:[%s13 + $0x14] sm:$0xf]
    %v2032 = vld [vmem:[%s13 + $0x18] sm:$0xf]
    %v2033 = vld [vmem:[%s13 + $0x1c] sm:$0xf]
    %v2034 = vld [vmem:[%s13 + $0x20] sm:$0xf]
    %v2035 = vld [vmem:[%s13 + $0x24] sm:$0xf]
    %v2036 = vld [vmem:[%s13 + $0x28] sm:$0xf]
    %v2037 = vld [vmem:[%s13 + $0x2c] sm:$0xf]
    %v2038 = vld [vmem:[%s13 + $0x30] sm:$0xf]
    %v2039 = vld [vmem:[%s13 + $0x34] sm:$0xf]
    %v2040 = vld [vmem:[%s13 + $0x38] sm:$0xf]
    %v2041 = vld [vmem:[%s13 + $0x3c] sm:$0xf]
    %v2042 = vld [vmem:[%s13 + $0x40] sm:$0xf]
    %v2043 = vld [vmem:[%s13 + $0x44] sm:$0xf]
    %v2044 = vld [vmem:[%s13 + $0x48] sm:$0xf]
    %v2045 = vld [vmem:[%s13 + $0x4c] sm:$0xf]
    %v2046 = vld [vmem:[%s13 + $0x50] sm:$0xf]
    %v2047 = vld [vmem:[%s13 + $0x54] sm:$0xf]
    %v2048 = vld [vmem:[%s13 + $0x58] sm:$0xf]
    %v2049 = vld [vmem:[%s13 + $0x5c] sm:$0xf]
    %v2050 = vld [vmem:[%s13 + $0x60] sm:$0xf]
    %v2051 = vld [vmem:[%s13 + $0x64] sm:$0xf]
    %v2052 = vld [vmem:[%s13 + $0x68] sm:$0xf]
    %v2053 = vld [vmem:[%s13 + $0x6c] sm:$0xf]
    %v2054 = vld [vmem:[%s13 + $0x70] sm:$0xf]
    %v2055 = vld [vmem:[%s13 + $0x74] sm:$0xf]
    %v2056 = vld [vmem:[%s13 + $0x78] sm:$0xf]
    %v2057 = vld [vmem:[%s13 + $0x7c] sm:$0xf]
    %v2058 = vld [vmem:[%s13 + $0x80] sm:$0xf]
    %v2059 = vld [vmem:[%s13 + $0x84] sm:$0xf]
    %v2060 = vld [vmem:[%s13 + $0x88] sm:$0xf]
    %v2061 = vld [vmem:[%s13 + $0x8c] sm:$0xf]
    %v2062 = vld [vmem:[%s13 + $0x90] sm:$0xf]
    %v2063 = vld [vmem:[%s13 + $0x94] sm:$0xf]
    %v2064 = vld [vmem:[%s13 + $0x98] sm:$0xf]
    %v2065 = vld [vmem:[%s13 + $0x9c] sm:$0xf]
    %v2066 = vld [vmem:[%s13 + $0xa0] sm:$0xf]
    %v2067 = vld [vmem:[%s13 + $0xa4] sm:$0xf]
    %v2068 = vld [vmem:[%s13 + $0xa8] sm:$0xf]
    %v2069 = vld [vmem:[%s13 + $0xac] sm:$0xf]
    %v2070 = vld [vmem:[%s13 + $0xb0] sm:$0xf]
    %v2071 = vld [vmem:[%s13 + $0xb4] sm:$0xf]
    %v2072 = vld [vmem:[%s13 + $0xb8] sm:$0xf]
    %v2073 = vld [vmem:[%s13 + $0xbc] sm:$0xf]
    %v2074 = vld [vmem:[%s13 + $0xc0] sm:$0xf]
    %v2075 = vld [vmem:[%s13 + $0xc4] sm:$0xf]
    %v2076 = vld [vmem:[%s13 + $0xc8] sm:$0xf]
    %v2077 = vld [vmem:[%s13 + $0xcc] sm:$0xf]
    %v2078 = vld [vmem:[%s13 + $0xd0] sm:$0xf]
    %v2079 = vld [vmem:[%s13 + $0xd4] sm:$0xf]
    %v2080 = vld [vmem:[%s13 + $0xd8] sm:$0xf]
    %v2081 = vld [vmem:[%s13 + $0xdc] sm:$0xf]
    %v2082 = vld [vmem:[%s13 + $0xe0] sm:$0xf]
    %v2083 = vld [vmem:[%s13 + $0xe4] sm:$0xf]
    %v2084 = vld [vmem:[%s13 + $0xe8] sm:$0xf]
    %v2085 = vld [vmem:[%s13 + $0xec] sm:$0xf]
    %v2086 = vld [vmem:[%s13 + $0xf0] sm:$0xf]
    %v2087 = vld [vmem:[%s13 + $0xf4] sm:$0xf]
    %v2088 = vld [vmem:[%s13 + $0xf8] sm:$0xf]
    %v2089 = vld [vmem:[%s13 + $0xfc] sm:$0xf]
    %v2090 = vld [vmem:[%s13 + $0x100] sm:$0xf]
    %v2091 = vld [vmem:[%s13 + $0x104] sm:$0xf]
    %v2092 = vld [vmem:[%s13 + $0x108] sm:$0xf]
    %v2093 = vld [vmem:[%s13 + $0x10c] sm:$0xf]
    %v2094 = vld [vmem:[%s13 + $0x110] sm:$0xf]
    %v2095 = vld [vmem:[%s13 + $0x114] sm:$0xf]
    %v2096 = vld [vmem:[%s13 + $0x118] sm:$0xf]
    %v2097 = vld [vmem:[%s13 + $0x11c] sm:$0xf]
    %v2098 = vld [vmem:[%s13 + $0x120] sm:$0xf]
    %v2099 = vld [vmem:[%s13 + $0x124] sm:$0xf]
    %v2100 = vld [vmem:[%s13 + $0x128] sm:$0xf]
    %v2101 = vld [vmem:[%s13 + $0x12c] sm:$0xf]
    %v2102 = vld [vmem:[%s13 + $0x130] sm:$0xf]
    %v2103 = vld [vmem:[%s13 + $0x134] sm:$0xf]
    %v2104 = vld [vmem:[%s13 + $0x138] sm:$0xf]
    %v2105 = vld [vmem:[%s13 + $0x13c] sm:$0xf]
    %v2106 = vld [vmem:[%s13 + $0x140] sm:$0xf]
    %v2107 = vld [vmem:[%s13 + $0x144] sm:$0xf]
    %v2108 = vld [vmem:[%s13 + $0x148] sm:$0xf]
    %v2109 = vld [vmem:[%s13 + $0x14c] sm:$0xf]
    %v2110 = vld [vmem:[%s13 + $0x150] sm:$0xf]
    %v2111 = vld [vmem:[%s13 + $0x154] sm:$0xf]
    %v2112 = vld [vmem:[%s13 + $0x158] sm:$0xf]
    %v2113 = vld [vmem:[%s13 + $0x15c] sm:$0xf]
    %v2114 = vld [vmem:[%s13 + $0x160] sm:$0xf]
    %v2115 = vld [vmem:[%s13 + $0x164] sm:$0xf]
    %v2116 = vld [vmem:[%s13 + $0x168] sm:$0xf]
    %v2117 = vld [vmem:[%s13 + $0x16c] sm:$0xf]
    %v2118 = vld [vmem:[%s13 + $0x170] sm:$0xf]
    %v2119 = vld [vmem:[%s13 + $0x174] sm:$0xf]
    %v2120 = vld [vmem:[%s13 + $0x178] sm:$0xf]
    %v2121 = vld [vmem:[%s13 + $0x17c] sm:$0xf]
    %v2122 = vld [vmem:[%s13 + $0x180] sm:$0xf]
    %v2123 = vld [vmem:[%s13 + $0x184] sm:$0xf]
    %v2124 = vld [vmem:[%s13 + $0x188] sm:$0xf]
    %v2125 = vld [vmem:[%s13 + $0x18c] sm:$0xf]
    %v2126 = vld [vmem:[%s13 + $0x190] sm:$0xf]
    %v2127 = vld [vmem:[%s13 + $0x194] sm:$0xf]
    %v2128 = vld [vmem:[%s13 + $0x198] sm:$0xf]
    %v2129 = vld [vmem:[%s13 + $0x19c] sm:$0xf]
    %v2130 = vld [vmem:[%s13 + $0x1a0] sm:$0xf]
    %v2131 = vld [vmem:[%s13 + $0x1a4] sm:$0xf]
    %v2132 = vld [vmem:[%s13 + $0x1a8] sm:$0xf]
    %v2133 = vld [vmem:[%s13 + $0x1ac] sm:$0xf]
    %v2134 = vld [vmem:[%s13 + $0x1b0] sm:$0xf]
    %v2135 = vld [vmem:[%s13 + $0x1b4] sm:$0xf]
    %v2136 = vld [vmem:[%s13 + $0x1b8] sm:$0xf]
    %v2137 = vld [vmem:[%s13 + $0x1bc] sm:$0xf]
    %v2138 = vld [vmem:[%s13 + $0x1c0] sm:$0xf]
    %v2139 = vld [vmem:[%s13 + $0x1c4] sm:$0xf]
    %v2140 = vld [vmem:[%s13 + $0x1c8] sm:$0xf]
    %v2141 = vld [vmem:[%s13 + $0x1cc] sm:$0xf]
    %v2142 = vld [vmem:[%s13 + $0x1d0] sm:$0xf]
    %v2143 = vld [vmem:[%s13 + $0x1d4] sm:$0xf]
    %v2144 = vld [vmem:[%s13 + $0x1d8] sm:$0xf]
    %v2145 = vld [vmem:[%s13 + $0x1dc] sm:$0xf]
    %v2146 = vld [vmem:[%s13 + $0x1e0] sm:$0xf]
    %v2147 = vld [vmem:[%s13 + $0x1e4] sm:$0xf]
    %v2148 = vld [vmem:[%s13 + $0x1e8] sm:$0xf]
    %v2149 = vld [vmem:[%s13 + $0x1ec] sm:$0xf]
    %v2150 = vld [vmem:[%s13 + $0x1f0] sm:$0xf]
    %v2159 = vunpack.c.l.b16 %v2018
    %v2160 = vunpack.c.h.b16 %v2018
    %v2161 = vunpack.c.l.b16 %v2019
    %v2162 = vunpack.c.h.b16 %v2019
    %v2163 = vunpack.c.l.b16 %v2020
    %v2164 = vunpack.c.h.b16 %v2020
    %v2165 = vunpack.c.l.b16 %v2021
    %v2166 = vunpack.c.h.b16 %v2021
    %v2167 = vunpack.c.l.b16 %v2022
    %v2168 = vunpack.c.h.b16 %v2022
    %v2169 = vunpack.c.l.b16 %v2023
    %v2170 = vunpack.c.h.b16 %v2023
    %v2171 = vunpack.c.l.b16 %v2024
    %v2172 = vunpack.c.h.b16 %v2024
    %v2173 = vunpack.c.l.b16 %v2025
    %v2174 = vunpack.c.h.b16 %v2025
    %v2175 = vpack.c.b16 %v2167, %v2159
    %v2176 = vpack.c.b16 %v2168, %v2160
    %v2177 = vpack.c.b16 %v2169, %v2161
    %v2178 = vpack.c.b16 %v2170, %v2162
    %v2179 = vpack.c.b16 %v2171, %v2163
    %v2180 = vpack.c.b16 %v2172, %v2164
    %v2181 = vpack.c.b16 %v2173, %v2165
    %v2182 = vpack.c.b16 %v2174, %v2166
    %v2315 = vunpack.c.l.b16 %v2026
    %v2316 = vunpack.c.l.b16 %v2027
    %v2317 = vunpack.c.l.b16 %v2028
    %v2318 = vunpack.c.l.b16 %v2029
    %v2319 = vunpack.c.l.b16 %v2030
    %v2320 = vunpack.c.l.b16 %v2031
    %v2321 = vunpack.c.l.b16 %v2032
    %v2322 = vunpack.c.l.b16 %v2033
    %v2323 = vunpack.c.l.b16 %v2034
    %v2324 = vunpack.c.l.b16 %v2035
    %v2325 = vunpack.c.l.b16 %v2036
    %v2326 = vunpack.c.l.b16 %v2037
    %v2327 = vunpack.c.l.b16 %v2038
    %v2328 = vunpack.c.l.b16 %v2039
    %v2329 = vunpack.c.l.b16 %v2040
    %v2330 = vunpack.c.l.b16 %v2041
    %v2331 = vunpack.c.l.b16 %v2042
    %v2332 = vunpack.c.l.b16 %v2043
    %v2333 = vunpack.c.l.b16 %v2044
    %v2334 = vunpack.c.l.b16 %v2045
    %v2335 = vunpack.c.l.b16 %v2046
    %v2336 = vunpack.c.l.b16 %v2047
    %v2337 = vunpack.c.l.b16 %v2048
    %v2338 = vunpack.c.l.b16 %v2049
    %v2339 = vunpack.c.l.b16 %v2050
    %v2340 = vunpack.c.l.b16 %v2051
    %v2341 = vunpack.c.l.b16 %v2052
    %v2342 = vunpack.c.l.b16 %v2053
    %v2343 = vunpack.c.l.b16 %v2054
    %v2344 = vunpack.c.l.b16 %v2055
    %v2345 = vunpack.c.l.b16 %v2056
    %v2346 = vunpack.c.l.b16 %v2057
    %v2347 = vunpack.c.l.b16 %v2058
    %v2348 = vunpack.c.l.b16 %v2059
    %v2349 = vunpack.c.l.b16 %v2060
    %v2350 = vunpack.c.l.b16 %v2061
    %v2351 = vunpack.c.l.b16 %v2062
    %v2352 = vunpack.c.l.b16 %v2063
    %v2353 = vunpack.c.l.b16 %v2064
    %v2354 = vunpack.c.l.b16 %v2065
    %v2355 = vunpack.c.l.b16 %v2066
    %v2356 = vunpack.c.l.b16 %v2067
    %v2357 = vunpack.c.l.b16 %v2068
    %v2358 = vunpack.c.l.b16 %v2069
    %v2359 = vunpack.c.l.b16 %v2070
    %v2360 = vunpack.c.l.b16 %v2071
    %v2361 = vunpack.c.l.b16 %v2072
    %v2362 = vunpack.c.l.b16 %v2073
    %v2363 = vunpack.c.l.b16 %v2074
    %v2364 = vunpack.c.l.b16 %v2075
    %v2365 = vunpack.c.l.b16 %v2076
    %v2366 = vunpack.c.l.b16 %v2077
    %v2367 = vunpack.c.l.b16 %v2078
    %v2368 = vunpack.c.l.b16 %v2079
    %v2369 = vunpack.c.l.b16 %v2080
    %v2370 = vunpack.c.l.b16 %v2081
    %v2371 = vunpack.c.l.b16 %v2082
    %v2372 = vunpack.c.l.b16 %v2083
    %v2373 = vunpack.c.l.b16 %v2084
    %v2374 = vunpack.c.l.b16 %v2085
    %v2375 = vunpack.c.l.b16 %v2086
    %v2376 = vunpack.c.l.b16 %v2087
    %v2377 = vunpack.c.l.b16 %v2088
    %v2378 = vunpack.c.l.b16 %v2089
    %v2379 = vunpack.c.l.b16 %v2090
    %v2380 = vunpack.c.l.b16 %v2091
    %v2381 = vunpack.c.l.b16 %v2092
    %v2382 = vunpack.c.l.b16 %v2093
    %v2383 = vunpack.c.l.b16 %v2094
    %v2384 = vunpack.c.l.b16 %v2095
    %v2385 = vunpack.c.l.b16 %v2096
    %v2386 = vunpack.c.l.b16 %v2097
    %v2387 = vunpack.c.l.b16 %v2098
    %v2388 = vunpack.c.l.b16 %v2099
    %v2389 = vunpack.c.l.b16 %v2100
    %v2390 = vunpack.c.l.b16 %v2101
    %v2391 = vunpack.c.l.b16 %v2102
    %v2392 = vunpack.c.l.b16 %v2103
    %v2393 = vunpack.c.l.b16 %v2104
    %v2394 = vunpack.c.l.b16 %v2105
    %v2395 = vunpack.c.l.b16 %v2106
    %v2396 = vunpack.c.l.b16 %v2107
    %v2397 = vunpack.c.l.b16 %v2108
    %v2398 = vunpack.c.l.b16 %v2109
    %v2399 = vunpack.c.l.b16 %v2110
    %v2400 = vunpack.c.l.b16 %v2111
    %v2401 = vunpack.c.l.b16 %v2112
    %v2402 = vunpack.c.l.b16 %v2113
    %v2403 = vunpack.c.l.b16 %v2114
    %v2404 = vunpack.c.l.b16 %v2115
    %v2405 = vunpack.c.l.b16 %v2116
    %v2406 = vunpack.c.l.b16 %v2117
    %v2407 = vunpack.c.l.b16 %v2118
    %v2408 = vunpack.c.l.b16 %v2119
    %v2409 = vunpack.c.l.b16 %v2120
    %v2410 = vunpack.c.l.b16 %v2121
    %v2411 = vunpack.c.l.b16 %v2122
    %v2412 = vunpack.c.l.b16 %v2123
    %v2413 = vunpack.c.l.b16 %v2124
    %v2414 = vunpack.c.l.b16 %v2125
    %v2415 = vunpack.c.l.b16 %v2126
    %v2416 = vunpack.c.l.b16 %v2127
    %v2417 = vunpack.c.l.b16 %v2128
    %v2418 = vunpack.c.l.b16 %v2129
    %v2419 = vunpack.c.l.b16 %v2130
    %v2420 = vunpack.c.l.b16 %v2131
    %v2421 = vunpack.c.l.b16 %v2132
    %v2422 = vunpack.c.l.b16 %v2133
    %v2423 = vunpack.c.l.b16 %v2134
    %v2424 = vunpack.c.l.b16 %v2135
    %v2425 = vunpack.c.l.b16 %v2136
    %v2426 = vunpack.c.l.b16 %v2137
    %v2427 = vunpack.c.l.b16 %v2138
    %v2428 = vunpack.c.l.b16 %v2139
    %v2429 = vunpack.c.l.b16 %v2140
    %v2430 = vunpack.c.l.b16 %v2141
    %v2431 = vunpack.c.l.b16 %v2142
    %v2432 = vunpack.c.l.b16 %v2143
    %v2433 = vunpack.c.l.b16 %v2144
    %v2434 = vunpack.c.l.b16 %v2145
    %v2435 = vunpack.c.l.b16 %v2146
    %v2436 = vunpack.c.l.b16 %v2147
    %v2437 = vunpack.c.l.b16 %v2148
    %v2438 = vunpack.c.l.b16 %v2149
    %v2439 = vunpack.c.l.b16 %v2150
    %v2440 = vpack.c.b16 %v2316, %v2315
    %v2441 = vpack.c.b16 %v2318, %v2317
    %v2442 = vpack.c.b16 %v2320, %v2319
    %v2443 = vpack.c.b16 %v2322, %v2321
    %v2444 = vpack.c.b16 %v2324, %v2323
    %v2445 = vpack.c.b16 %v2326, %v2325
    %v2446 = vpack.c.b16 %v2328, %v2327
    %v2447 = vpack.c.b16 %v2330, %v2329
    %v2448 = vpack.c.b16 %v2332, %v2331
    %v2449 = vpack.c.b16 %v2334, %v2333
    %v2450 = vpack.c.b16 %v2336, %v2335
    %v2451 = vpack.c.b16 %v2338, %v2337
    %v2452 = vpack.c.b16 %v2340, %v2339
    %v2453 = vpack.c.b16 %v2342, %v2341
    %v2454 = vpack.c.b16 %v2344, %v2343
    %v2455 = vpack.c.b16 %v2346, %v2345
    %v2456 = vpack.c.b16 %v2348, %v2347
    %v2457 = vpack.c.b16 %v2350, %v2349
    %v2458 = vpack.c.b16 %v2352, %v2351
    %v2459 = vpack.c.b16 %v2354, %v2353
    %v2460 = vpack.c.b16 %v2356, %v2355
    %v2461 = vpack.c.b16 %v2358, %v2357
    %v2462 = vpack.c.b16 %v2360, %v2359
    %v2463 = vpack.c.b16 %v2362, %v2361
    %v2464 = vpack.c.b16 %v2364, %v2363
    %v2465 = vpack.c.b16 %v2366, %v2365
    %v2466 = vpack.c.b16 %v2368, %v2367
    %v2467 = vpack.c.b16 %v2370, %v2369
    %v2468 = vpack.c.b16 %v2372, %v2371
    %v2469 = vpack.c.b16 %v2374, %v2373
    %v2470 = vpack.c.b16 %v2376, %v2375
    %v2471 = vpack.c.b16 %v2378, %v2377
    %v2472 = vpack.c.b16 %v2380, %v2379
    %v2473 = vpack.c.b16 %v2382, %v2381
    %v2474 = vpack.c.b16 %v2384, %v2383
    %v2475 = vpack.c.b16 %v2386, %v2385
    %v2476 = vpack.c.b16 %v2388, %v2387
    %v2477 = vpack.c.b16 %v2390, %v2389
    %v2478 = vpack.c.b16 %v2392, %v2391
    %v2479 = vpack.c.b16 %v2394, %v2393
    %v2480 = vpack.c.b16 %v2396, %v2395
    %v2481 = vpack.c.b16 %v2398, %v2397
    %v2482 = vpack.c.b16 %v2400, %v2399
    %v2483 = vpack.c.b16 %v2402, %v2401
    %v2484 = vpack.c.b16 %v2404, %v2403
    %v2485 = vpack.c.b16 %v2406, %v2405
    %v2486 = vpack.c.b16 %v2408, %v2407
    %v2487 = vpack.c.b16 %v2410, %v2409
    %v2488 = vpack.c.b16 %v2412, %v2411
    %v2489 = vpack.c.b16 %v2414, %v2413
    %v2490 = vpack.c.b16 %v2416, %v2415
    %v2491 = vpack.c.b16 %v2418, %v2417
    %v2492 = vpack.c.b16 %v2420, %v2419
    %v2493 = vpack.c.b16 %v2422, %v2421
    %v2494 = vpack.c.b16 %v2424, %v2423
    %v2495 = vpack.c.b16 %v2426, %v2425
    %v2496 = vpack.c.b16 %v2428, %v2427
    %v2497 = vpack.c.b16 %v2430, %v2429
    %v2498 = vpack.c.b16 %v2432, %v2431
    %v2499 = vpack.c.b16 %v2434, %v2433
    %v2500 = vpack.c.b16 %v2436, %v2435
    %v2501 = vpack.c.b16 %v2438, %v2437
    %v2502 = vpack.c.b16 %v2439, %v2439
    %v2566 = vsel %vm1846, %v2182, 0
    %v2569 = vsel %vm1850, %v2502, 0
    %2571 = vmatprep.subr.bf16.mxu0 0
    %2572 = vmatpush1.bf16.msra.mxu0 %v2440
    %2573 = vmatprep.subr.bf16.mxu0 0
    %2574 = vmatpush1.bf16.msra.mxu0 %v2441
    %2575 = vmatprep.subr.bf16.mxu0 0
    %2576 = vmatpush1.bf16.msra.mxu0 %v2442
    %2577 = vmatprep.subr.bf16.mxu0 0
    %2578 = vmatpush1.bf16.msra.mxu0 %v2443
    %2579 = vmatprep.subr.bf16.mxu0 0
    %2580 = vmatpush1.bf16.msra.mxu0 %v2444
    %2581 = vmatprep.subr.bf16.mxu0 0
    %2582 = vmatpush1.bf16.msra.mxu0 %v2445
    %2583 = vmatprep.subr.bf16.mxu0 0
    %2584 = vmatpush1.bf16.msra.mxu0 %v2446
    %2585 = vmatprep.subr.bf16.mxu0 0
    %2586 = vmatpush1.bf16.msra.mxu0 %v2447
    %2587 = vmatprep.subr.bf16.mxu0 0
    %2588 = vmatpush1.bf16.msra.mxu0 %v2448
    %2589 = vmatprep.subr.bf16.mxu0 0
    %2590 = vmatpush1.bf16.msra.mxu0 %v2449
    %2591 = vmatprep.subr.bf16.mxu0 0
    %2592 = vmatpush1.bf16.msra.mxu0 %v2450
    %2593 = vmatprep.subr.bf16.mxu0 0
    %2594 = vmatpush1.bf16.msra.mxu0 %v2451
    %2595 = vmatprep.subr.bf16.mxu0 0
    %2596 = vmatpush1.bf16.msra.mxu0 %v2452
    %2597 = vmatprep.subr.bf16.mxu0 0
    %2598 = vmatpush1.bf16.msra.mxu0 %v2453
    %2599 = vmatprep.subr.bf16.mxu0 0
    %2600 = vmatpush1.bf16.msra.mxu0 %v2454
    %2601 = vmatprep.subr.bf16.mxu0 0
    %2602 = vmatpush1.bf16.msra.mxu0 %v2455
    %2603 = vmatprep.mubr.bf16.mxu0 %v2176
    %2604 = vmatmul.mubr.bf16.gmra.mrb[0].mxu0 %v2175
    %v2605 = vpop.f32.mrb[0].mxu0
    %v2606 = vadd.f32 0.0, %v2605
    %v2607 = vpop.f32.mrb[0].mxu0
    %v2608 = vpop.f32.mrb[0].mxu0
    %v2609 = vadd.f32 0.0, %v2608
    %v2610 = vpop.f32.mrb[0].mxu0
    %2611 = vdwg.mxu0
    %2612 = vmatprep.subr.bf16.mxu0 0
    %2613 = vmatpush1.bf16.msra.mxu0 %v2456
    %2614 = vmatprep.subr.bf16.mxu0 0
    %2615 = vmatpush1.bf16.msra.mxu0 %v2457
    %2616 = vmatprep.subr.bf16.mxu0 0
    %2617 = vmatpush1.bf16.msra.mxu0 %v2458
    %2618 = vmatprep.subr.bf16.mxu0 0
    %2619 = vmatpush1.bf16.msra.mxu0 %v2459
    %2620 = vmatprep.subr.bf16.mxu0 0
    %2621 = vmatpush1.bf16.msra.mxu0 %v2460
    %2622 = vmatprep.subr.bf16.mxu0 0
    %2623 = vmatpush1.bf16.msra.mxu0 %v2461
    %2624 = vmatprep.subr.bf16.mxu0 0
    %2625 = vmatpush1.bf16.msra.mxu0 %v2462
    %2626 = vmatprep.subr.bf16.mxu0 0
    %2627 = vmatpush1.bf16.msra.mxu0 %v2463
    %2628 = vmatprep.subr.bf16.mxu0 0
    %2629 = vmatpush1.bf16.msra.mxu0 %v2464
    %2630 = vmatprep.subr.bf16.mxu0 0
    %2631 = vmatpush1.bf16.msra.mxu0 %v2465
    %2632 = vmatprep.subr.bf16.mxu0 0
    %2633 = vmatpush1.bf16.msra.mxu0 %v2466
    %2634 = vmatprep.subr.bf16.mxu0 0
    %2635 = vmatpush1.bf16.msra.mxu0 %v2467
    %2636 = vmatprep.subr.bf16.mxu0 0
    %2637 = vmatpush1.bf16.msra.mxu0 %v2468
    %2638 = vmatprep.subr.bf16.mxu0 0
    %2639 = vmatpush1.bf16.msra.mxu0 %v2469
    %2640 = vmatprep.subr.bf16.mxu0 0
    %2641 = vmatpush1.bf16.msra.mxu0 %v2470
    %2642 = vmatprep.subr.bf16.mxu0 0
    %2643 = vmatpush1.bf16.msra.mxu0 %v2471
    %2644 = vmatprep.mubr.bf16.mxu0 %v2178
    %2645 = vmatmul.mubr.bf16.gmra.mrb[0].mxu0 %v2177
    %v2646 = vpop.f32.mrb[0].mxu0
    %v2647 = vadd.f32 %v2606, %v2646
    %v2648 = vpop.f32.mrb[0].mxu0
    %v2649 = vpop.f32.mrb[0].mxu0
    %v2650 = vadd.f32 %v2609, %v2649
    %v2651 = vpop.f32.mrb[0].mxu0
    %2652 = vdwg.mxu0
    %2653 = vmatprep.subr.bf16.mxu0 0
    %2654 = vmatpush1.bf16.msra.mxu0 %v2472
    %2655 = vmatprep.subr.bf16.mxu0 0
    %2656 = vmatpush1.bf16.msra.mxu0 %v2473
    %2657 = vmatprep.subr.bf16.mxu0 0
    %2658 = vmatpush1.bf16.msra.mxu0 %v2474
    %2659 = vmatprep.subr.bf16.mxu0 0
    %2660 = vmatpush1.bf16.msra.mxu0 %v2475
    %2661 = vmatprep.subr.bf16.mxu0 0
    %2662 = vmatpush1.bf16.msra.mxu0 %v2476
    %2663 = vmatprep.subr.bf16.mxu0 0
    %2664 = vmatpush1.bf16.msra.mxu0 %v2477
    %2665 = vmatprep.subr.bf16.mxu0 0
    %2666 = vmatpush1.bf16.msra.mxu0 %v2478
    %2667 = vmatprep.subr.bf16.mxu0 0
    %2668 = vmatpush1.bf16.msra.mxu0 %v2479
    %2669 = vmatprep.subr.bf16.mxu0 0
    %2670 = vmatpush1.bf16.msra.mxu0 %v2480
    %2671 = vmatprep.subr.bf16.mxu0 0
    %2672 = vmatpush1.bf16.msra.mxu0 %v2481
    %2673 = vmatprep.subr.bf16.mxu0 0
    %2674 = vmatpush1.bf16.msra.mxu0 %v2482
    %2675 = vmatprep.subr.bf16.mxu0 0
    %2676 = vmatpush1.bf16.msra.mxu0 %v2483
    %2677 = vmatprep.subr.bf16.mxu0 0
    %2678 = vmatpush1.bf16.msra.mxu0 %v2484
    %2679 = vmatprep.subr.bf16.mxu0 0
    %2680 = vmatpush1.bf16.msra.mxu0 %v2485
    %2681 = vmatprep.subr.bf16.mxu0 0
    %2682 = vmatpush1.bf16.msra.mxu0 %v2486
    %2683 = vmatprep.subr.bf16.mxu0 0
    %2684 = vmatpush1.bf16.msra.mxu0 %v2487
    %2685 = vmatprep.mubr.bf16.mxu0 %v2180
    %2686 = vmatmul.mubr.bf16.gmra.mrb[0].mxu0 %v2179
    %v2687 = vpop.f32.mrb[0].mxu0
    %v2688 = vadd.f32 %v2647, %v2687
    %v2689 = vpop.f32.mrb[0].mxu0
    %v2690 = vpop.f32.mrb[0].mxu0
    %v2691 = vadd.f32 %v2650, %v2690
    %v2692 = vpop.f32.mrb[0].mxu0
    %2693 = vdwg.mxu0
    %2694 = vmatprep.subr.bf16.mxu0 0
    %2695 = vmatpush1.bf16.msra.mxu0 %v2488
    %2696 = vmatprep.subr.bf16.mxu0 0
    %2697 = vmatpush1.bf16.msra.mxu0 %v2489
    %2698 = vmatprep.subr.bf16.mxu0 0
    %2699 = vmatpush1.bf16.msra.mxu0 %v2490
    %2700 = vmatprep.subr.bf16.mxu0 0
    %2701 = vmatpush1.bf16.msra.mxu0 %v2491
    %2702 = vmatprep.subr.bf16.mxu0 0
    %2703 = vmatpush1.bf16.msra.mxu0 %v2492
    %2704 = vmatprep.subr.bf16.mxu0 0
    %2705 = vmatpush1.bf16.msra.mxu0 %v2493
    %2706 = vmatprep.subr.bf16.mxu0 0
    %2707 = vmatpush1.bf16.msra.mxu0 %v2494
    %2708 = vmatprep.subr.bf16.mxu0 0
    %2709 = vmatpush1.bf16.msra.mxu0 %v2495
    %2710 = vmatprep.subr.bf16.mxu0 0
    %2711 = vmatpush1.bf16.msra.mxu0 %v2496
    %2712 = vmatprep.subr.bf16.mxu0 0
    %2713 = vmatpush1.bf16.msra.mxu0 %v2497
    %2714 = vmatprep.subr.bf16.mxu0 0
    %2715 = vmatpush1.bf16.msra.mxu0 %v2498
    %2716 = vmatprep.subr.bf16.mxu0 0
    %2717 = vmatpush1.bf16.msra.mxu0 %v2499
    %2718 = vmatprep.subr.bf16.mxu0 0
    %2719 = vmatpush1.bf16.msra.mxu0 %v2500
    %2720 = vmatprep.subr.bf16.mxu0 0
    %2721 = vmatpush1.bf16.msra.mxu0 %v2501
    %2722 = vmatprep.subr.bf16.mxu0 0
    %2723 = vmatpush1.bf16.msra.mxu0 %v2569
    %2724 = vmatprep.subr.bf16.mxu0 0
    %2725 = vmatpush1.bf16.msra.mxu0 0
    %2726 = vmatprep.mubr.bf16.mxu0 %v2566
    %2727 = vmatmul.mubr.bf16.gmra.mrb[0].mxu0 %v2181
    %v2728 = vpop.f32.mrb[0].mxu0
    %v2729 = vadd.f32 %v2688, %v2728
    %v2730 = vpop.f32.mrb[0].mxu0
    %v2731 = vpop.f32.mrb[0].mxu0
    %v2732 = vadd.f32 %v2691, %v2731
    %v2733 = vpop.f32.mrb[0].mxu0
    %2734 = vdwg.mxu0
    %v2735 = vld [vmem:[%s14] sm:$0xff]
    %v2736 = vld [vmem:[%s14 + $0x8] sm:$0xf]
    %v2737 = vld [vmem:[%s14 + $0xc] sm:$0xff]
    %v2738 = vld [vmem:[%s14 + $0x14] sm:$0xf]
    %v2739 = vld [vmem:[%s15] sm:$0xf]
    %v2740 = vld [vmem:[%s15 + $0x4] sm:$0xf]
    %v2741 = vld [vmem:[%s15 + $0x8] sm:$0xf]
    %v2742 = vld [vmem:[%s15 + $0xc] sm:$0xf]
    %v2743 = vld [vmem:[%s15 + $0x10] sm:$0xf]
    %v2744 = vld [vmem:[%s15 + $0x14] sm:$0xf]
    %v2745 = vld [vmem:[%s15 + $0x18] sm:$0xf]
    %v2746 = vld [vmem:[%s15 + $0x1c] sm:$0xf]
    %v2747 = vld [vmem:[%s15 + $0x20] sm:$0xf]
    %v2748 = vld [vmem:[%s15 + $0x24] sm:$0xf]
    %v2749 = vld [vmem:[%s15 + $0x28] sm:$0xf]
    %v2750 = vld [vmem:[%s15 + $0x2c] sm:$0xf]
    %v2751 = vld [vmem:[%s15 + $0x30] sm:$0xf]
    %v2752 = vld [vmem:[%s15 + $0x34] sm:$0xf]
    %v2753 = vld [vmem:[%s15 + $0x38] sm:$0xf]
    %v2754 = vld [vmem:[%s15 + $0x3c] sm:$0xf]
    %v2755 = vld [vmem:[%s15 + $0x40] sm:$0xf]
    %v2756 = vld [vmem:[%s15 + $0x44] sm:$0xf]
    %v2757 = vld [vmem:[%s15 + $0x48] sm:$0xf]
    %v2758 = vld [vmem:[%s15 + $0x4c] sm:$0xf]
    %v2759 = vld [vmem:[%s15 + $0x50] sm:$0xf]
    %v2760 = vld [vmem:[%s15 + $0x54] sm:$0xf]
    %v2761 = vld [vmem:[%s15 + $0x58] sm:$0xf]
    %v2762 = vld [vmem:[%s15 + $0x5c] sm:$0xf]
    %v2763 = vld [vmem:[%s15 + $0x60] sm:$0xf]
    %v2764 = vld [vmem:[%s15 + $0x64] sm:$0xf]
    %v2765 = vld [vmem:[%s15 + $0x68] sm:$0xf]
    %v2766 = vld [vmem:[%s15 + $0x6c] sm:$0xf]
    %v2767 = vld [vmem:[%s15 + $0x70] sm:$0xf]
    %v2768 = vld [vmem:[%s15 + $0x74] sm:$0xf]
    %v2769 = vld [vmem:[%s15 + $0x78] sm:$0xf]
    %v2770 = vld [vmem:[%s15 + $0x7c] sm:$0xf]
    %v2771 = vld [vmem:[%s15 + $0x80] sm:$0xf]
    %v2772 = vld [vmem:[%s15 + $0x84] sm:$0xf]
    %v2773 = vld [vmem:[%s15 + $0x88] sm:$0xf]
    %v2774 = vld [vmem:[%s15 + $0x8c] sm:$0xf]
    %v2775 = vld [vmem:[%s15 + $0x90] sm:$0xf]
    %v2776 = vld [vmem:[%s15 + $0x94] sm:$0x3]
    %v2781 = vunpack.c.l.b16 %v2735
    %v2782 = vunpack.c.h.b16 %v2735
    %v2783 = vunpack.c.l.b16 %v2736
    %v2784 = vunpack.c.l.b16 %v2737
    %v2785 = vunpack.c.h.b16 %v2737
    %v2786 = vunpack.c.l.b16 %v2738
    %v2787 = vpack.c.b16 %v2784, %v2781
    %v2788 = vpack.c.b16 %v2785, %v2782
    %v2789 = vpack.c.b16 %v2786, %v2783
    %v2830 = vunpack.c.l.b16 %v2739
    %v2831 = vunpack.c.l.b16 %v2740
    %v2832 = vunpack.c.l.b16 %v2741
    %v2833 = vunpack.c.l.b16 %v2742
    %v2834 = vunpack.c.l.b16 %v2743
    %v2835 = vunpack.c.l.b16 %v2744
    %v2836 = vunpack.c.l.b16 %v2745
    %v2837 = vunpack.c.l.b16 %v2746
    %v2838 = vunpack.c.l.b16 %v2747
    %v2839 = vunpack.c.l.b16 %v2748
    %v2840 = vunpack.c.l.b16 %v2749
    %v2841 = vunpack.c.l.b16 %v2750
    %v2842 = vunpack.c.l.b16 %v2751
    %v2843 = vunpack.c.l.b16 %v2752
    %v2844 = vunpack.c.l.b16 %v2753
    %v2845 = vunpack.c.l.b16 %v2754
    %v2846 = vunpack.c.l.b16 %v2755
    %v2847 = vunpack.c.l.b16 %v2756
    %v2848 = vunpack.c.l.b16 %v2757
    %v2849 = vunpack.c.l.b16 %v2758
    %v2850 = vunpack.c.l.b16 %v2759
    %v2851 = vunpack.c.l.b16 %v2760
    %v2852 = vunpack.c.l.b16 %v2761
    %v2853 = vunpack.c.l.b16 %v2762
    %v2854 = vunpack.c.l.b16 %v2763
    %v2855 = vunpack.c.l.b16 %v2764
    %v2856 = vunpack.c.l.b16 %v2765
    %v2857 = vunpack.c.l.b16 %v2766
    %v2858 = vunpack.c.l.b16 %v2767
    %v2859 = vunpack.c.l.b16 %v2768
    %v2860 = vunpack.c.l.b16 %v2769
    %v2861 = vunpack.c.l.b16 %v2770
    %v2862 = vunpack.c.l.b16 %v2771
    %v2863 = vunpack.c.l.b16 %v2772
    %v2864 = vunpack.c.l.b16 %v2773
    %v2865 = vunpack.c.l.b16 %v2774
    %v2866 = vunpack.c.l.b16 %v2775
    %v2867 = vunpack.c.l.b16 %v2776
    %v2868 = vpack.c.b16 %v2831, %v2830
    %v2869 = vpack.c.b16 %v2833, %v2832
    %v2870 = vpack.c.b16 %v2835, %v2834
    %v2871 = vpack.c.b16 %v2837, %v2836
    %v2872 = vpack.c.b16 %v2839, %v2838
    %v2873 = vpack.c.b16 %v2841, %v2840
    %v2874 = vpack.c.b16 %v2843, %v2842
    %v2875 = vpack.c.b16 %v2845, %v2844
    %v2876 = vpack.c.b16 %v2847, %v2846
    %v2877 = vpack.c.b16 %v2849, %v2848
    %v2878 = vpack.c.b16 %v2851, %v2850
    %v2879 = vpack.c.b16 %v2853, %v2852
    %v2880 = vpack.c.b16 %v2855, %v2854
    %v2881 = vpack.c.b16 %v2857, %v2856
    %v2882 = vpack.c.b16 %v2859, %v2858
    %v2883 = vpack.c.b16 %v2861, %v2860
    %v2884 = vpack.c.b16 %v2863, %v2862
    %v2885 = vpack.c.b16 %v2865, %v2864
    %v2886 = vpack.c.b16 %v2867, %v2866
    %vm2905 = vcmask 359424
    %v2907 = vsel %vm2905, %v2789, 0
    %vm2909 = vcmask 1045504
    %v2911 = vsel %vm2909, %v2886, 0
    %2913 = vmatprep.subr.bf16.mxu0 0
    %2914 = vmatpush1.bf16.msra.mxu0 %v2868
    %2915 = vmatprep.subr.bf16.mxu0 0
    %2916 = vmatpush1.bf16.msra.mxu0 %v2869
    %2917 = vmatprep.subr.bf16.mxu0 0
    %2918 = vmatpush1.bf16.msra.mxu0 %v2870
    %2919 = vmatprep.subr.bf16.mxu0 0
    %2920 = vmatpush1.bf16.msra.mxu0 %v2871
    %2921 = vmatprep.subr.bf16.mxu0 0
    %2922 = vmatpush1.bf16.msra.mxu0 %v2872
    %2923 = vmatprep.subr.bf16.mxu0 0
    %2924 = vmatpush1.bf16.msra.mxu0 %v2873
    %2925 = vmatprep.subr.bf16.mxu0 0
    %2926 = vmatpush1.bf16.msra.mxu0 %v2874
    %2927 = vmatprep.subr.bf16.mxu0 0
    %2928 = vmatpush1.bf16.msra.mxu0 %v2875
    %2929 = vmatprep.subr.bf16.mxu0 0
    %2930 = vmatpush1.bf16.msra.mxu0 %v2876
    %2931 = vmatprep.subr.bf16.mxu0 0
    %2932 = vmatpush1.bf16.msra.mxu0 %v2877
    %2933 = vmatprep.subr.bf16.mxu0 0
    %2934 = vmatpush1.bf16.msra.mxu0 %v2878
    %2935 = vmatprep.subr.bf16.mxu0 0
    %2936 = vmatpush1.bf16.msra.mxu0 %v2879
    %2937 = vmatprep.subr.bf16.mxu0 0
    %2938 = vmatpush1.bf16.msra.mxu0 %v2880
    %2939 = vmatprep.subr.bf16.mxu0 0
    %2940 = vmatpush1.bf16.msra.mxu0 %v2881
    %2941 = vmatprep.subr.bf16.mxu0 0
    %2942 = vmatpush1.bf16.msra.mxu0 %v2882
    %2943 = vmatprep.subr.bf16.mxu0 0
    %2944 = vmatpush1.bf16.msra.mxu0 %v2883
    %2945 = vmatprep.mubr.bf16.mxu0 %v2788
    %2946 = vmatmul.mubr.bf16.gmra.mrb[0].mxu0 %v2787
    %v2947 = vpop.f32.mrb[0].mxu0
    %v2948 = vadd.f32 0.0, %v2947
    %v2949 = vpop.f32.mrb[0].mxu0
    %v2950 = vpop.f32.mrb[0].mxu0
    %v2951 = vadd.f32 0.0, %v2950
    %v2952 = vpop.f32.mrb[0].mxu0
    %2953 = vdwg.mxu0
    %2954 = vmatprep.subr.bf16.mxu0 0
    %2955 = vmatpush1.bf16.msra.mxu0 %v2884
    %2956 = vmatprep.subr.bf16.mxu0 0
    %2957 = vmatpush1.bf16.msra.mxu0 %v2885
    %2958 = vmatprep.subr.bf16.mxu0 0
    %2959 = vmatpush1.bf16.msra.mxu0 %v2911
    %2960 = vmatprep.subr.bf16.mxu0 0
    %2961 = vmatpush1.bf16.msra.mxu0 0
    %2962 = vmatprep.subr.bf16.mxu0 0
    %2963 = vmatpush1.bf16.msra.mxu0 0
    %2964 = vmatprep.subr.bf16.mxu0 0
    %2965 = vmatpush1.bf16.msra.mxu0 0
    %2966 = vmatprep.subr.bf16.mxu0 0
    %2967 = vmatpush1.bf16.msra.mxu0 0
    %2968 = vmatprep.subr.bf16.mxu0 0
    %2969 = vmatpush1.bf16.msra.mxu0 0
    %2970 = vmatprep.subr.bf16.mxu0 0
    %2971 = vmatpush1.bf16.msra.mxu0 0
    %2972 = vmatprep.subr.bf16.mxu0 0
    %2973 = vmatpush1.bf16.msra.mxu0 0
    %2974 = vmatprep.subr.bf16.mxu0 0
    %2975 = vmatpush1.bf16.msra.mxu0 0
    %2976 = vmatprep.subr.bf16.mxu0 0
    %2977 = vmatpush1.bf16.msra.mxu0 0
    %2978 = vmatprep.subr.bf16.mxu0 0
    %2979 = vmatpush1.bf16.msra.mxu0 0
    %2980 = vmatprep.subr.bf16.mxu0 0
    %2981 = vmatpush1.bf16.msra.mxu0 0
    %2982 = vmatprep.subr.bf16.mxu0 0
    %2983 = vmatpush1.bf16.msra.mxu0 0
    %2984 = vmatprep.subr.bf16.mxu0 0
    %2985 = vmatpush1.bf16.msra.mxu0 0
    %2986 = vmatprep.mubr.bf16.mxu0 0
    %2987 = vmatmul.mubr.bf16.gmra.mrb[0].mxu0 %v2907
    %v2988 = vpop.f32.mrb[0].mxu0
    %v2989 = vadd.f32 %v2948, %v2988
    %v2990 = vpop.f32.mrb[0].mxu0
    %v2991 = vpop.f32.mrb[0].mxu0
    %v2992 = vadd.f32 %v2951, %v2991
    %v2993 = vpop.f32.mrb[0].mxu0
    %2994 = vdwg.mxu0
    %v2995 = vld [vmem:[%s16] sm:$0xf]
    %v2996 = vld [vmem:[%s16 + $0x4] sm:$0xf]
    %v2997 = vld [vmem:[%s17] sm:$0xf]
    %v2998 = vld [vmem:[%s17 + $0x4] sm:$0xf]
    %v2999 = vld [vmem:[%s17 + $0x8] sm:$0xf]
    %v3000 = vld [vmem:[%s17 + $0xc] sm:$0xf]
    %v3001 = vld [vmem:[%s17 + $0x10] sm:$0xf]
    %v3002 = vld [vmem:[%s17 + $0x14] sm:$0xf]
    %v3003 = vld [vmem:[%s17 + $0x18] sm:$0xf]
    %v3004 = vld [vmem:[%s17 + $0x1c] sm:$0xf]
    %v3005 = vld [vmem:[%s17 + $0x20] sm:$0xf]
    %v3006 = vld [vmem:[%s17 + $0x24] sm:$0xf]
    %v3007 = vld [vmem:[%s17 + $0x28] sm:$0xf]
    %v3008 = vld [vmem:[%s17 + $0x2c] sm:$0xf]
    %v3009 = vld [vmem:[%s17 + $0x30] sm:$0x3]
    %v3012 = vunpack.c.l.b16 %v2995
    %v3013 = vunpack.c.l.b16 %v2996
    %v3014 = vpack.c.b16 %v3013, %v3012
    %v3028 = vunpack.c.l.b16 %v2997
    %v3029 = vunpack.c.l.b16 %v2998
    %v3030 = vunpack.c.l.b16 %v2999
    %v3031 = vunpack.c.l.b16 %v3000
    %v3032 = vunpack.c.l.b16 %v3001
    %v3033 = vunpack.c.l.b16 %v3002
    %v3034 = vunpack.c.l.b16 %v3003
    %v3035 = vunpack.c.l.b16 %v3004
    %v3036 = vunpack.c.l.b16 %v3005
    %v3037 = vunpack.c.l.b16 %v3006
    %v3038 = vunpack.c.l.b16 %v3007
    %v3039 = vunpack.c.l.b16 %v3008
    %v3040 = vunpack.c.l.b16 %v3009
    %v3041 = vpack.c.b16 %v3029, %v3028
    %v3042 = vpack.c.b16 %v3031, %v3030
    %v3043 = vpack.c.b16 %v3033, %v3032
    %v3044 = vpack.c.b16 %v3035, %v3034
    %v3045 = vpack.c.b16 %v3037, %v3036
    %v3046 = vpack.c.b16 %v3039, %v3038
    %v3047 = vpack.c.b16 %v3040, %v3040
    %vm3054 = vcmask 818176
    %v3056 = vsel %vm3054, %v3014, 0
    %vm3058 = vcmask 1041408
    %v3060 = vsel %vm3058, %v3047, 0
    %3062 = vmatprep.subr.bf16.mxu0 0
    %3063 = vmatpush1.bf16.msra.mxu0 %v3041
    %3064 = vmatprep.subr.bf16.mxu0 0
    %3065 = vmatpush1.bf16.msra.mxu0 %v3042
    %3066 = vmatprep.subr.bf16.mxu0 0
    %3067 = vmatpush1.bf16.msra.mxu0 %v3043
    %3068 = vmatprep.subr.bf16.mxu0 0
    %3069 = vmatpush1.bf16.msra.mxu0 %v3044
    %3070 = vmatprep.subr.bf16.mxu0 0
    %3071 = vmatpush1.bf16.msra.mxu0 %v3045
    %3072 = vmatprep.subr.bf16.mxu0 0
    %3073 = vmatpush1.bf16.msra.mxu0 %v3046
    %3074 = vmatprep.subr.bf16.mxu0 0
    %3075 = vmatpush1.bf16.msra.mxu0 %v3060
    %3076 = vmatprep.subr.bf16.mxu0 0
    %3077 = vmatpush1.bf16.msra.mxu0 0
    %3078 = vmatprep.subr.bf16.mxu0 0
    %3079 = vmatpush1.bf16.msra.mxu0 0
    %3080 = vmatprep.subr.bf16.mxu0 0
    %3081 = vmatpush1.bf16.msra.mxu0 0
    %3082 = vmatprep.subr.bf16.mxu0 0
    %3083 = vmatpush1.bf16.msra.mxu0 0
    %3084 = vmatprep.subr.bf16.mxu0 0
    %3085 = vmatpush1.bf16.msra.mxu0 0
    %3086 = vmatprep.subr.bf16.mxu0 0
    %3087 = vmatpush1.bf16.msra.mxu0 0
    %3088 = vmatprep.subr.bf16.mxu0 0
    %3089 = vmatpush1.bf16.msra.mxu0 0
    %3090 = vmatprep.subr.bf16.mxu0 0
    %3091 = vmatpush1.bf16.msra.mxu0 0
    %3092 = vmatprep.subr.bf16.mxu0 0
    %3093 = vmatpush1.bf16.msra.mxu0 0
    %3094 = vmatprep.mubr.bf16.mxu0 0
    %3095 = vmatmul.mubr.bf16.gmra.mrb[0].mxu0 %v3056
    %v3096 = vpop.f32.mrb[0].mxu0
    %v3097 = vadd.f32 0.0, %v3096
    %v3098 = vpop.f32.mrb[0].mxu0
    %v3099 = vpop.f32.mrb[0].mxu0
    %v3100 = vadd.f32 0.0, %v3099
    %v3101 = vpop.f32.mrb[0].mxu0
    %3102 = vdwg.mxu0
    %3105 = vrot.lane.b32.xlu0 %v2729, 32
    %v3106 = vpop.permute.xlu0 %3105
    %3107 = vrot.lane.b32.xlu0 %v2732, 32
    %v3108 = vpop.permute.xlu0 %3107
    %3113 = vrot.lane.b32.xlu0 %v2012, 64
    %v3114 = vpop.permute.xlu0 %3113
    %3115 = vrot.lane.b32.xlu0 %v2015, 64
    %v3116 = vpop.permute.xlu0 %3115
    %3121 = vrot.lane.b32.xlu0 %v1207, 96
    %v3122 = vpop.permute.xlu0 %3121
    %3123 = vrot.lane.b32.xlu0 %v1212, 96
    %v3124 = vpop.permute.xlu0 %3123
    %3129 = vrot.lane.b32.xlu0 %v3097, 32
    %v3130 = vpop.permute.xlu0 %3129
    %3131 = vrot.lane.b32.xlu0 %v3100, 32
    %v3132 = vpop.permute.xlu0 %3131
    %v3135 = vsel %vm882, %v1293, %v3106
    %v3136 = vsel %vm882, %v1296, %v3108
    %v3137 = vsel %vm1254, %v3135, %v3114
    %v3138 = vsel %vm1254, %v3136, %v3116
    %vm3139 = vcmask 785408
    %v3140 = vsel %vm3139, %v3137, %v3122
    %v3141 = vsel %vm3139, %v3138, %v3124
    %v3142 = vsel %vm882, %v2989, %v3130
    %v3143 = vsel %vm882, %v2992, %v3132
    %v3144 = vld [vmem:[%s6] sm:$0x3]
    %v3146 = vlaneseq
    %v3147 = vshrl.u32 %v3146, 7
    %v3148 = vsub.s32 0, %v3147
    %v3149 = vrot.slane %v3144, %v3148
    %v3150 = vlaneseq
    %v3151 = vshrl.u32 %v3150, 7
    %v3152 = vsub.s32 1, %v3151
    %v3153 = vrot.slane %v3144, %v3152
    %v3156 = vadd.f32 %v3140, %v3149
    %v3157 = vadd.f32 %v3142, %v3153
    %v3158 = vadd.f32 %v3141, %v3149
    %v3159 = vadd.f32 %v3143, %v3153
    %3160 = vst [vmem:[#allocation7] sm:$0xff] %v3156
    %3161 = vst.msk [vmem:[#allocation7 + $0x8] sm:$0xff] %vm1254, %v3157
    %3162 = vst [vmem:[#allocation7 + $0x10] sm:$0xff] %v3158
    %3163 = vst.msk [vmem:[#allocation7 + $0x18] sm:$0xff] %vm1254, %v3159
    %v3164 = vld [vmem:[%s7] sm:$0x3]
    %v3166 = vlaneseq
    %v3167 = vshrl.u32 %v3166, 7
    %v3168 = vsub.s32 0, %v3167
    %v3169 = vrot.slane %v3164, %v3168
    %v3170 = vlaneseq
    %v3171 = vshrl.u32 %v3170, 7
    %v3172 = vsub.s32 1, %v3171
    %v3173 = vrot.slane %v3164, %v3172
    %v3176 = vmul.f32 %v3156, %v3169
    %v3177 = vmul.f32 %v3157, %v3173
    %v3178 = vmul.f32 %v3158, %v3169
    %v3179 = vmul.f32 %v3159, %v3173
    %3180 = vst [vmem:[#allocation8] sm:$0xff] %v3176
    %3181 = vst.msk [vmem:[#allocation8 + $0x8] sm:$0xff] %vm1254, %v3177
    %3182 = vst [vmem:[#allocation8 + $0x10] sm:$0xff] %v3178
    %3183 = vst.msk [vmem:[#allocation8 + $0x18] sm:$0xff] %vm1254, %v3179
    // Predicated region
    $region554: #{tpu_custom_call.1} parent=1 // pred_check
      _
    $region555: #{tpu_custom_call.1} parent=1 // pred_check_branch
      %3185 = sbr.rel (0) target = $region557
    $region556: #{tpu_custom_call.1} parent=1 // pred_region
      %s3187 = ssub.s32 512, 512
      %3188 = vsyncadd [#allocation5], %s3187
      %s3189 = sshll.u32 [#allocation7], 4
      %s3190 = int_to_ptr.vmem [resolvable:$true] %s3189
      %3195 = dma.vmem_to_hbm [thread:$0]  %s3190, 512, %s18, [#allocation5], 256, 256, 16
    $region557: #{tpu_custom_call.1} parent=1 // pred_fallthru
      _
    // Predicated region
    $region558: #{tpu_custom_call.1} parent=1 // pred_check
      _
    $region559: #{tpu_custom_call.1} parent=1 // pred_check_branch
      %3197 = sbr.rel (0) target = $region561
    $region560: #{tpu_custom_call.1} parent=1 // pred_region
      %s3199 = ssub.s32 512, 512
      %3200 = vsyncadd [#allocation9], %s3199
      %s3201 = sshll.u32 [#allocation8], 4
      %s3202 = int_to_ptr.vmem [resolvable:$true] %s3201
      %3207 = dma.vmem_to_hbm [thread:$0]  %s3202, 512, %s19, [#allocation9], 256, 256, 16
    $region561: #{tpu_custom_call.1} parent=1 // pred_fallthru
      _
    // Predicated region
    $region562: #{tpu_custom_call.1} parent=1 // pred_check
      _
    $region563: #{tpu_custom_call.1} parent=1 // pred_check_branch
      %3209 = sbr.rel (0) target = $region565
    $region564: #{tpu_custom_call.1} parent=1 // pred_region
      %3210 = dma.done [#allocation5], 512
    $region565: #{tpu_custom_call.1} parent=1 // pred_fallthru
      _
    // Predicated region
    $region566: #{tpu_custom_call.1} parent=1 // pred_check
      _
    $region567: #{tpu_custom_call.1} parent=1 // pred_check_branch
      %3212 = sbr.rel (0) target = $region569
    $region568: #{tpu_custom_call.1} parent=1 // pred_region
      %3213 = dma.done [#allocation9], 512
    $region569: #{tpu_custom_call.1} parent=1 // pred_fallthru
      _
    %3214 = vsyncpa [#allocation5], 1
    %3215 = vsyncpa [#allocation9], 1
    %3216 = vsyncpa [#allocation6], 1
  %3217 = vsyncmov [#allocation3]
  %s3218 = vpop.sfrf %3217
  %p3219 = scmp.eq.s32.totalorder %s3218, 0
  %p3220 = pneg %p3219
  %3222 = shalt.err (%p3220)
  %s3223 = scalar_lea.sflag [#allocation3], 1
  %3224 = vsyncmov %s3223
  %s3225 = vpop.sfrf %3224
  %p3226 = scmp.eq.s32.totalorder %s3225, 0
  %p3227 = pneg %p3226
  %3229 = shalt.err (%p3227)
  %s3230 = scalar_lea.sflag [#allocation3], 2
  %3231 = vsyncmov %s3230
  %s3232 = vpop.sfrf %3231
  %p3233 = scmp.eq.s32.totalorder %s3232, 0
  %p3234 = pneg %p3233
  %3236 = shalt.err (%p3234)
  %s3237 = scalar_lea.sflag [#allocation3], 3
  %3238 = vsyncmov %s3237
  %s3239 = vpop.sfrf %3238
  %p3240 = scmp.eq.s32.totalorder %s3239, 0
  %p3241 = pneg %p3240
  %3243 = shalt.err (%p3241)
  %s3244 = scalar_lea.sflag [#allocation3], 4
  %3245 = vsyncmov %s3244
  %s3246 = vpop.sfrf %3245
  %p3247 = scmp.eq.s32.totalorder %s3246, 0
  %p3248 = pneg %p3247
  %3250 = shalt.err (%p3248)
  %s3251 = scalar_lea.sflag [#allocation3], 5
  %3252 = vsyncmov %s3251
  %s3253 = vpop.sfrf %3252
  %p3254 = scmp.eq.s32.totalorder %s3253, 0
  %p3255 = pneg %p3254
  %3257 = shalt.err (%p3255)
  %s3258 = scalar_lea.sflag [#allocation3], 6
  %3259 = vsyncmov %s3258
  %s3260 = vpop.sfrf %3259
  %p3261 = scmp.eq.s32.totalorder %s3260, 0
  %p3262 = pneg %p3261
  %3264 = shalt.err (%p3262)
  %s3265 = scalar_lea.sflag [#allocation3], 7
  %3266 = vsyncmov %s3265
  %s3267 = vpop.sfrf %3266
  %p3268 = scmp.eq.s32.totalorder %s3267, 0
  %p3269 = pneg %p3268
  %3271 = shalt.err (%p3269)
  %s3272 = scalar_lea.sflag [#allocation3], 8
  %3273 = vsyncmov %s3272
  %s3274 = vpop.sfrf %3273
  %p3275 = scmp.eq.s32.totalorder %s3274, 0
  %p3276 = pneg %p3275
  %3278 = shalt.err (%p3276)
  %s3279 = scalar_lea.sflag [#allocation3], 9
  %3280 = vsyncmov %s3279
  %s3281 = vpop.sfrf %3280
  %p3282 = scmp.eq.s32.totalorder %s3281, 0
  %p3283 = pneg %p3282
  %3285 = shalt.err (%p3283)
  %s3286 = scalar_lea.sflag [#allocation3], 10
  %3287 = vsyncmov %s3286
  %s3288 = vpop.sfrf %3287
  %p3289 = scmp.eq.s32.totalorder %s3288, 0
  %p3290 = pneg %p3289
  %3292 = shalt.err (%p3290)
  %s3293 = scalar_lea.sflag [#allocation3], 11
  %3294 = vsyncmov %s3293
  %s3295 = vpop.sfrf %3294
  %p3296 = scmp.eq.s32.totalorder %s3295, 0
  %p3297 = pneg %p3296
  %3299 = shalt.err (%p3297)
  %s3300 = scalar_lea.sflag [#allocation3], 12
  %3301 = vsyncmov %s3300
  %s3302 = vpop.sfrf %3301
  %p3303 = scmp.eq.s32.totalorder %s3302, 0
  %p3304 = pneg %p3303
  %3306 = shalt.err (%p3304)
  %s3307 = scalar_lea.sflag [#allocation3], 13
  %3308 = vsyncmov %s3307
  %s3309 = vpop.sfrf %3308
  %p3310 = scmp.eq.s32.totalorder %s3309, 0
  %p3311 = pneg %p3310
  %3313 = shalt.err (%p3311)
  %s3314 = scalar_lea.sflag [#allocation3], 14
  %3315 = vsyncmov %s3314
  %s3316 = vpop.sfrf %3315
  %p3317 = scmp.eq.s32.totalorder %s3316, 0
  %p3318 = pneg %p3317
  %3320 = shalt.err (%p3318)
  %s3321 = scalar_lea.sflag [#allocation3], 15
  %3322 = vsyncmov %s3321
  %s3323 = vpop.sfrf %3322
  %p3324 = scmp.eq.s32.totalorder %s3323, 0
  %p3325 = pneg %p3324
  %3327 = shalt.err (%p3325)

</llo_original>
